<compile_context>
chip_gen: v5e
topology: v5e:2x2
jax: 0.10.0
libtpu: 0.0.40
codegen_flags: <defaults>
</compile_context>

<pallas_src>
import functools

import jax
import jax.numpy as jnp
from jax import lax
from jax.experimental import pallas as pl
from jax.experimental.pallas import tpu as pltpu


# ----------------------------------------------------------------------------
# small helpers
# ----------------------------------------------------------------------------
def _round_up(x, m):
    return ((x + m - 1) // m) * m


def _pad_axis(x, axis, mult):
    pad = (-x.shape[axis]) % mult
    if pad == 0:
        return x
    widths = [(0, 0)] * x.ndim
    widths[axis] = (0, pad)
    return jnp.pad(x, widths)


def _pad_gates(w, d1_to, d2_to):
    """(3, d1, d2) -> (3, d1_to, d2_to), zero padded per gate (keeps math exact)."""
    return jnp.pad(w, ((0, 0), (0, d1_to - w.shape[1]), (0, d2_to - w.shape[2])))


def _cat_gates(w):
    """(3, D, Hp) -> (D, 3*Hp): gates [r | z | n] concatenated on the lane axis."""
    return jnp.transpose(w, (1, 0, 2)).reshape(w.shape[1], 3 * w.shape[2])


def _pick_tile(dim, cap, mult):
    """Largest tile <= cap that is a multiple of `mult` and divides `dim`."""
    if dim % mult:
        return dim
    t = min(dim, max(cap, mult))
    t -= t % mult
    while dim % t:
        t -= mult
    return t


def _vmem_limit(need_bytes):
    """Explicit scoped-VMEM limit: needed bytes + headroom, clamped so it is
    valid on every generation (>= 32 MiB, <= 48 MiB for v7x's 64 MiB VMEM)."""
    return int(min(max(need_bytes + (8 << 20), 32 << 20), 48 << 20))


# ----------------------------------------------------------------------------
# Tiled matmul + bias kernel (vocab projection).
# bf16 MXU operands, f32 accumulation, lane-dense (>=128-wide) output tiles.
# ----------------------------------------------------------------------------
def _matmul_bias_kernel(x_ref, w_ref, b_ref, o_ref):
    acc = jnp.dot(x_ref[...], w_ref[...], preferred_element_type=jnp.float32)
    o_ref[...] = (acc + b_ref[...]).astype(o_ref.dtype)


def matmul_bias(x, w, b, *, out_dtype=jnp.float32, tm_cap=512, tn_cap=512):
    M, K = x.shape
    Kw, N = w.shape
    assert K == Kw and M % 8 == 0 and K % 128 == 0 and N % 128 == 0, (x.shape, w.shape)
    # 16-row M tiles (bf16 packs two rows per sublane); fall back to 8 if needed.
    tm = _pick_tile(M, tm_cap, 16)
    if tm == M and (M % 16):
        tm = _pick_tile(M, tm_cap, 8)
    # Prefer 256-wide N tiles (matches the v6e/v7x 256x256 MXU).
    tn = _pick_tile(N, tn_cap, 256) if N % 256 == 0 else _pick_tile(N, tn_cap, 128)
    xbytes = jnp.dtype(x.dtype).itemsize
    need = 2 * (tm * K * xbytes + K * tn * 2 + tn * 4 + tm * tn * 4)  # 2 buffers
    return pl.pallas_call(
        _matmul_bias_kernel,
        out_shape=jax.ShapeDtypeStruct((M, N), out_dtype),
        grid_spec=pltpu.PrefetchScalarGridSpec(
            num_scalar_prefetch=0,
            grid=(M // tm, N // tn),
            in_specs=[
                pl.BlockSpec((tm, K), lambda i, j: (i, 0)),
                pl.BlockSpec((K, tn), lambda i, j: (0, j)),
                pl.BlockSpec((1, tn), lambda i, j: (0, j)),
            ],
            out_specs=pl.BlockSpec((tm, tn), lambda i, j: (i, j)),
        ),
        compiler_params=pltpu.CompilerParams(
            dimension_semantics=("parallel", "parallel"),
            vmem_limit_bytes=_vmem_limit(need)),
    )(x, w, b)


# ----------------------------------------------------------------------------
# GRU recurrence kernel.  One grid step == one chunk of `t_chunk` time steps.
# The input-side projection (x @ W_ih) is computed in-kernel from a bf16 x
# chunk (no gates_x HBM slab).  The resident final-state output block
# (constant index_map) is the cross-chunk carry; within a chunk h is carried
# in registers by lax.fori_loop.  `store_out=False` (encoder) skips the
# per-step hidden-state writeback entirely.
# ----------------------------------------------------------------------------
def _gru_chunk_kernel(x_ref, h0_ref, wih_ref, whh_ref, bx_ref, bhn_ref,
                      *out_refs, seq_len, hidden, t_chunk, unroll, store_out):
    if store_out:
        out_ref, hfin_ref = out_refs
    else:
        (hfin_ref,) = out_refs

    c = pl.program_id(0)

    @pl.when(c == 0)
    def _():
        hfin_ref[...] = h0_ref[...]

    w_ih = wih_ref[...]                        # (E_pad, 3*H_pad) bf16, resident
    w_hh = whh_ref[...]                        # (H_pad, 3*H_pad) bf16, resident
    n_b = x_ref.shape[1]
    # Hoist bias broadcasts out of the unrolled loop (no CSE of broadcast_in_dim).
    # bx already contains b_ir+b_hr | b_iz+b_hz | b_in; only b_hn stays separate.
    b_x = jnp.broadcast_to(bx_ref[...], (n_b, 3 * hidden))    # (B_pad, 3*H_pad) f32
    b_hn = jnp.broadcast_to(bhn_ref[...], (n_b, hidden))      # (B_pad, H_pad)   f32

    def step(t, h):
        x_t = x_ref[t]                                         # (B_pad, E_pad) bf16
        gx = jnp.dot(x_t, w_ih, preferred_element_type=jnp.float32) + b_x
        hh = jnp.dot(h.astype(w_hh.dtype), w_hh,
                     preferred_element_type=jnp.float32)
        r = jax.nn.sigmoid(gx[:, :hidden] + hh[:, :hidden])
        z = jax.nn.sigmoid(gx[:, hidden:2 * hidden] + hh[:, hidden:2 * hidden])
        n = jnp.tanh(gx[:, 2 * hidden:] + r * (hh[:, 2 * hidden:] + b_hn))
        h_new = (1.0 - z) * n + z * h
        if store_out:
            out_ref[t] = h_new.astype(out_ref.dtype)           # bf16 writeback
        # Mask padded tail time steps so the carried state stays exact.
        return jnp.where(c * t_chunk + t < seq_len, h_new, h)

    h_last = lax.fori_loop(0, t_chunk, step, hfin_ref[...], unroll=unroll)
    hfin_ref[...] = h_last


def gru_forward(x_t, h0, w_ih_cat, w_hh_cat, b_x, b_hn, *, hidden_pad, t_chunk,
                seq_len, collect_outputs, out_dtype=jnp.bfloat16, unroll=8):
    """x_t: (S_pad, B_pad, E_pad) bf16 time-major embedded inputs.
    h0: (B_pad, H_pad) f32.  Returns (out or None, h_final (B_pad, H_pad) f32)."""
    S_pad, B_pad, E_pad = x_t.shape
    G = 3 * hidden_pad
    unroll = min(unroll, t_chunk)
    kernel = functools.partial(_gru_chunk_kernel, seq_len=seq_len,
                               hidden=hidden_pad, t_chunk=t_chunk,
                               unroll=unroll, store_out=collect_outputs)

    out_shape, out_specs = [], []
    if collect_outputs:
        out_shape.append(jax.ShapeDtypeStruct((S_pad, B_pad, hidden_pad), out_dtype))
        out_specs.append(pl.BlockSpec((t_chunk, B_pad, hidden_pad),
                                      lambda c: (c, 0, 0)))
    out_shape.append(jax.ShapeDtypeStruct((B_pad, hidden_pad), jnp.float32))
    out_specs.append(pl.BlockSpec((B_pad, hidden_pad), lambda c: (0, 0)))

    # VMEM budget (double-buffered chunks + resident weights/biases/states).
    need = 2 * t_chunk * B_pad * E_pad * 2
    if collect_outputs:
        need += 2 * t_chunk * B_pad * hidden_pad * 2
    need += 2 * (E_pad * G + hidden_pad * G) * 2
    need += 4 * B_pad * hidden_pad * 4
    need += 4 * (G + hidden_pad) * 4

    res = pl.pallas_call(
        kernel,
        out_shape=out_shape,
        grid_spec=pltpu.PrefetchScalarGridSpec(
            num_scalar_prefetch=0,
            grid=(S_pad // t_chunk,),
            in_specs=[
                pl.BlockSpec((t_chunk, B_pad, E_pad), lambda c: (c, 0, 0)),  # x chunk
                pl.BlockSpec((B_pad, hidden_pad),     lambda c: (0, 0)),     # h0
                pl.BlockSpec((E_pad, G),              lambda c: (0, 0)),     # W_ih fused
                pl.BlockSpec((hidden_pad, G),         lambda c: (0, 0)),     # W_hh fused
                pl.BlockSpec((1, G),                  lambda c: (0, 0)),     # folded b_x
                pl.BlockSpec((1, hidden_pad),         lambda c: (0, 0)),     # b_hn
            ],
            out_specs=out_specs,
        ),
        compiler_params=pltpu.CompilerParams(
            dimension_semantics=("arbitrary",),      # sequential recurrence
            vmem_limit_bytes=_vmem_limit(need)),
    )(x_t, h0, w_ih_cat, w_hh_cat, b_x, b_hn)

    if collect_outputs:
        return res[0], res[1]
    return None, res[0]


# ----------------------------------------------------------------------------
# One GRU layer (embedding gather + fused-in-kernel input projection + recurrence).
# ----------------------------------------------------------------------------
def gru_layer(tokens, emb_table, gru_params, h0_pad, *, collect_outputs,
              t_chunk_cap=32):
    """tokens: (B, S) int32; emb_table: (V, E) f32; h0_pad: (B_pad, H_pad) f32.
    Returns (out (S, B_pad, H_pad) bf16 time-major or None, h_final (B_pad, H_pad) f32)."""
    w_ih, w_hh, b_ih, b_hh = gru_params          # stacked [r, z, n], f32
    B, S = tokens.shape
    E, H = w_ih.shape[1], w_ih.shape[2]
    B_pad, H_pad = h0_pad.shape
    E_pad = _round_up(E, 128)

    # Fused, padded, bf16 weights.  (In production these would be prepared once.)
    w_ih_cat = _cat_gates(_pad_gates(w_ih, E_pad, H_pad)).astype(jnp.bfloat16)
    w_hh_cat = _cat_gates(_pad_gates(w_hh, H_pad, H_pad)).astype(jnp.bfloat16)
    # Fold b_hr / b_hz into the input-side bias; only b_hn stays inside r*(...).
    b_ih_p = _pad_gates(b_ih, 1, H_pad)          # (3, 1, H_pad) f32
    b_hh_p = _pad_gates(b_hh, 1, H_pad)
    b_x = jnp.concatenate([b_ih_p[0] + b_hh_p[0],
                           b_ih_p[1] + b_hh_p[1],
                           b_ih_p[2]], axis=-1)  # (1, 3*H_pad) f32
    b_hn = b_hh_p[2]                             # (1, H_pad)   f32

    # Embedding gather directly into time-major layout (no slab transpose),
    # cast to bf16 for the in-kernel MXU input projection.
    emb_pad = _pad_axis(emb_table, 1, 128).astype(jnp.bfloat16)    # (V, E_pad)
    tok_pad = _pad_axis(tokens, 0, 8)                              # (B_pad, S)
    x_t = jnp.take(emb_pad, tok_pad.T, axis=0)                     # (S, B_pad, E_pad)

    S_pad8 = _round_up(S, 8)
    t_chunk = _pick_tile(S_pad8, t_chunk_cap, 8)
    x_t = _pad_axis(x_t, 0, t_chunk)                               # pad time axis

    out_t, h_fin = gru_forward(x_t, h0_pad, w_ih_cat, w_hh_cat, b_x, b_hn,
                               hidden_pad=H_pad, t_chunk=t_chunk, seq_len=S,
                               collect_outputs=collect_outputs)
    if collect_outputs:
        return out_t[:S], h_fin
    return None, h_fin


# ----------------------------------------------------------------------------
# Parameter construction (deterministic, synthetic)
# ----------------------------------------------------------------------------
def make_gru_params(key, input_dim, hidden_dim):
    ks = jax.random.split(key, 4)
    scale = 1.0 / jnp.sqrt(hidden_dim)
    # Stacked gate order matches PyTorch nn.GRU: [reset, update, new].
    w_ih = jax.random.uniform(ks[0], (3, input_dim, hidden_dim),
                              minval=-scale, maxval=scale, dtype=jnp.float32)
    w_hh = jax.random.uniform(ks[1], (3, hidden_dim, hidden_dim),
                              minval=-scale, maxval=scale, dtype=jnp.float32)
    b_ih = jax.random.uniform(ks[2], (3, 1, hidden_dim),
                              minval=-scale, maxval=scale, dtype=jnp.float32)
    b_hh = jax.random.uniform(ks[3], (3, 1, hidden_dim),
                              minval=-scale, maxval=scale, dtype=jnp.float32)
    return w_ih, w_hh, b_ih, b_hh


def make_seq2seq_params(key, vocab_src, vocab_tgt, emb_dim, hidden_dim):
    ks = jax.random.split(key, 5)
    return {
        "enc_embedding": jax.random.normal(ks[0], (vocab_src, emb_dim),
                                           dtype=jnp.float32) * 0.1,
        "enc_gru": make_gru_params(ks[1], emb_dim, hidden_dim),
        "dec_embedding": jax.random.normal(ks[2], (vocab_tgt, emb_dim),
                                           dtype=jnp.float32) * 0.1,
        "dec_gru": make_gru_params(ks[3], emb_dim, hidden_dim),
        "out_w": jax.random.normal(ks[4], (hidden_dim, vocab_tgt),
                                   dtype=jnp.float32) * 0.1,
        "out_b": jnp.zeros((1, vocab_tgt), dtype=jnp.float32),
    }


# ----------------------------------------------------------------------------
# Seq2Seq forward (teacher forcing)
# ----------------------------------------------------------------------------
@jax.jit
def seq2seq_forward(params, enc_x, dec_x):
    """enc_x: (B, S_enc) int32 token ids; dec_x: (B, S_dec) int32 token ids."""
    B, _ = enc_x.shape
    _, S_dec = dec_x.shape
    H = params["out_w"].shape[0]
    V_tgt = params["out_w"].shape[1]
    B_pad = _round_up(B, 8)
    H_pad = _round_up(H, 128)
    V_pad = _round_up(V_tgt, 128)

    # ----- encoder: per-step hidden states are unused -> not written at all --
    h0 = jnp.zeros((B_pad, H_pad), dtype=jnp.float32)
    _enc_out, enc_final = gru_layer(enc_x, params["enc_embedding"],
                                    params["enc_gru"], h0, collect_outputs=False)
    # TODO(synk): decoder ignores encoder_output (no attention); reference
    # GRUDecoder body unavailable — it conditions only on the final state.

    # ----- decoder (teacher forcing), initialized with encoder final state ---
    dec_out_t, dec_final = gru_layer(dec_x, params["dec_embedding"],
                                     params["dec_gru"], enc_final,
                                     collect_outputs=True)   # bf16, time-major

    # ----- vocab projection (tiled, lane-dense, bf16 MXU / f32 accumulate) ---
    w_out = jnp.pad(params["out_w"],
                    ((0, H_pad - H), (0, V_pad - V_tgt))).astype(jnp.bfloat16)
    b_out = jnp.pad(params["out_b"], ((0, 0), (0, V_pad - V_tgt)))
    # bf16 hidden states halve this transpose vs. the previous f32 version.
    dec_bm = jnp.transpose(dec_out_t, (1, 0, 2))             # (B_pad, S_dec, H_pad)
    x2d = dec_bm.reshape(B_pad * S_dec, H_pad)               # bf16
    logits2d = matmul_bias(x2d, w_out, b_out, out_dtype=jnp.float32)
    logits = logits2d.reshape(B_pad, S_dec, V_pad)[:B, :, :V_tgt]
    return logits, dec_final[:B, :H][None]                   # (1, B, H) like nn.GRU h_n


# ----------------------------------------------------------------------------
# Pure-JAX reference (f32) for a tolerance check.
# ----------------------------------------------------------------------------
def _gru_ref(x_emb, h0, params):
    w_ih, w_hh, b_ih, b_hh = params
    def step(h, x):
        r = jax.nn.sigmoid(x @ w_ih[0] + b_ih[0] + h @ w_hh[0] + b_hh[0])
        z = jax.nn.sigmoid(x @ w_ih[1] + b_ih[1] + h @ w_hh[1] + b_hh[1])
        n = jnp.tanh(x @ w_ih[2] + b_ih[2] + r * (h @ w_hh[2] + b_hh[2]))
        h = (1.0 - z) * n + z * h
        return h, h
    h_fin, hs = lax.scan(step, h0, x_emb)
    return hs, h_fin


def _seq2seq_ref(params, enc_x, dec_x):
    B = enc_x.shape[0]
    H = params["out_w"].shape[0]
    enc_emb = jnp.transpose(params["enc_embedding"][enc_x], (1, 0, 2))
    dec_emb = jnp.transpose(params["dec_embedding"][dec_x], (1, 0, 2))
    h0 = jnp.zeros((B, H), jnp.float32)
    _, h_enc = _gru_ref(enc_emb, h0, params["enc_gru"])
    dec_hs, h_dec = _gru_ref(dec_emb, h_enc, params["dec_gru"])
    logits = jnp.einsum("sbh,hv->bsv", dec_hs, params["out_w"]) + params["out_b"][0]
    return logits, h_dec[None]


# ----------------------------------------------------------------------------
if __name__ == "__main__":
    # Small, module-consistent shapes.
    B, S_enc, S_dec = 2, 8, 8
    EMB, HID = 32, 32
    V_SRC, V_TGT = 16, 16

    params = make_seq2seq_params(jax.random.PRNGKey(42), V_SRC, V_TGT, EMB, HID)

    key = jax.random.PRNGKey(0)
    k_enc, k_dec = jax.random.split(key)
    enc_x = jax.random.randint(k_enc, (B, S_enc), 0, V_SRC, dtype=jnp.int32)
    dec_x = jax.random.randint(k_dec, (B, S_dec), 0, V_TGT, dtype=jnp.int32)

    logits, dec_final_state = seq2seq_forward(params, enc_x, dec_x)
    jax.block_until_ready((logits, dec_final_state))

    assert logits.shape == (B, S_dec, V_TGT)
    assert dec_final_state.shape == (1, B, HID)
    assert bool(jnp.all(jnp.isfinite(logits)))

    # Loose-tolerance check vs. f32 reference (bf16 MXU operands in the kernel).
    ref_logits, ref_final = _seq2seq_ref(params, enc_x, dec_x)
    assert float(jnp.max(jnp.abs(logits - ref_logits))) < 1e-1
    assert float(jnp.max(jnp.abs(dec_final_state - ref_final))) < 1e-1

    print("KERNEL_OK")
</pallas_src>

<mosaic_0001>
module attributes {stable_mosaic.version = 11 : i64} {
  func.func @_matmul_bias_kernel(%arg0: i32, %arg1: i32, %arg2: memref<64x128xbf16, #tpu.memory_space<vmem>>, %arg3: memref<128x128xbf16, #tpu.memory_space<vmem>>, %arg4: memref<1x128xf32, #tpu.memory_space<vmem>>, %arg5: memref<64x128xf32, #tpu.memory_space<vmem>>) attributes {dimension_semantics = [#tpu.dimension_semantics<parallel>, #tpu.dimension_semantics<parallel>], iteration_bounds = array<i64: 1, 1>, scalar_prefetch = 0 : i64, scratch_operands = 0 : i64, tpu.core_type = #tpu.core_type<tc>, window_params = [{transform_indices = @transform_0, window_bounds = array<i64: 64, 128>}, {transform_indices = @transform_1, window_bounds = array<i64: 128, 128>}, {transform_indices = @transform_2, window_bounds = array<i64: 1, 128>}, {transform_indices = @transform_3, window_bounds = array<i64: 64, 128>}]} {
    %c0 = arith.constant 0 : index
    %c0_0 = arith.constant 0 : index
    %0 = vector.load %arg2[%c0, %c0_0] : memref<64x128xbf16, #tpu.memory_space<vmem>>, vector<64x128xbf16>
    %c0_1 = arith.constant 0 : index
    %c0_2 = arith.constant 0 : index
    %1 = vector.load %arg3[%c0_1, %c0_2] : memref<128x128xbf16, #tpu.memory_space<vmem>>, vector<128x128xbf16>
    %cst = arith.constant dense<0.000000e+00> : vector<64x128xf32>
    %2 = tpu.matmul %0, %1, %cst {dimension_numbers = #tpu.dot_dimension_numbers<[1], [0], [0], [1], [0, 0, 1, 1], [], []>} : vector<64x128xbf16>, vector<128x128xbf16>, vector<64x128xf32> -> vector<64x128xf32>
    %c0_3 = arith.constant 0 : index
    %c0_4 = arith.constant 0 : index
    %3 = vector.load %arg4[%c0_3, %c0_4] : memref<1x128xf32, #tpu.memory_space<vmem>>, vector<1x128xf32>
    %4 = vector.broadcast %3 : vector<1x128xf32> to vector<64x128xf32>
    %5 = arith.addf %2, %4 : vector<64x128xf32>
    %c0_5 = arith.constant 0 : index
    %c0_6 = arith.constant 0 : index
    %6 = vector.load %arg5[%c0_5, %c0_6] : memref<64x128xf32, #tpu.memory_space<vmem>>, vector<64x128xf32>
    tpu.vector_store %arg5[%c0_5, %c0_6], %5 {strides = array<i32>} : memref<64x128xf32, #tpu.memory_space<vmem>>, vector<64x128xf32>,
    return
  }
  func.func @transform_0(%arg0: i32, %arg1: i32) -> (i32, i32) {
    %c0_i32 = arith.constant 0 : i32
    %c0_i32_0 = arith.constant 0 : i32
    return %arg0, %c0_i32 : i32, i32
  }
  func.func @transform_1(%arg0: i32, %arg1: i32) -> (i32, i32) {
    %c0_i32 = arith.constant 0 : i32
    %c0_i32_0 = arith.constant 0 : i32
    return %c0_i32, %arg1 : i32, i32
  }
  func.func @transform_2(%arg0: i32, %arg1: i32) -> (i32, i32) {
    %c0_i32 = arith.constant 0 : i32
    %c0_i32_0 = arith.constant 0 : i32
    return %c0_i32, %arg1 : i32, i32
  }
  func.func @transform_3(%arg0: i32, %arg1: i32) -> (i32, i32) {
    %c0_i32 = arith.constant 0 : i32
    return %arg0, %arg1 : i32, i32
  }
}

module attributes {stable_mosaic.version = 11 : i64} {
  func.func @_gru_chunk_kernel(%arg0: i32, %arg1: memref<8x8x128xbf16, #tpu.memory_space<vmem>>, %arg2: memref<8x128xf32, #tpu.memory_space<vmem>>, %arg3: memref<128x384xbf16, #tpu.memory_space<vmem>>, %arg4: memref<128x384xbf16, #tpu.memory_space<vmem>>, %arg5: memref<1x384xf32, #tpu.memory_space<vmem>>, %arg6: memref<1x128xf32, #tpu.memory_space<vmem>>, %arg7: memref<8x8x128xbf16, #tpu.memory_space<vmem>>, %arg8: memref<8x128xf32, #tpu.memory_space<vmem>>) attributes {dimension_semantics = [#tpu.dimension_semantics<arbitrary>], iteration_bounds = array<i64: 1>, scalar_prefetch = 0 : i64, scratch_operands = 0 : i64, tpu.core_type = #tpu.core_type<tc>, window_params = [{transform_indices = @transform_0, window_bounds = array<i64: 8, 8, 128>}, {pipeline_mode = #tpu.pipeline_mode<synchronous>, transform_indices = @transform_1, window_bounds = array<i64: 8, 128>}, {pipeline_mode = #tpu.pipeline_mode<synchronous>, transform_indices = @transform_2, window_bounds = array<i64: 128, 384>}, {pipeline_mode = #tpu.pipeline_mode<synchronous>, transform_indices = @transform_3, window_bounds = array<i64: 128, 384>}, {pipeline_mode = #tpu.pipeline_mode<synchronous>, transform_indices = @transform_4, window_bounds = array<i64: 1, 384>}, {pipeline_mode = #tpu.pipeline_mode<synchronous>, transform_indices = @transform_5, window_bounds = array<i64: 1, 128>}, {transform_indices = @transform_6, window_bounds = array<i64: 8, 8, 128>}, {pipeline_mode = #tpu.pipeline_mode<synchronous>, transform_indices = @transform_7, window_bounds = array<i64: 8, 128>}]} {
    %c0_i32 = arith.constant 0 : i32
    %0 = arith.cmpi eq, %arg0, %c0_i32 : i32
    %1 = arith.extui %0 : i1 to i32
    %c0_i32_0 = arith.constant 0 : i32
    %2 = arith.cmpi ne, %1, %c0_i32_0 : i32
    scf.if %2 {
      %c0_100 = arith.constant 0 : index
      %c0_101 = arith.constant 0 : index
      %357 = vector.load %arg2[%c0_100, %c0_101] : memref<8x128xf32, #tpu.memory_space<vmem>>, vector<8x128xf32>
      %c0_102 = arith.constant 0 : index
      %c0_103 = arith.constant 0 : index
      %358 = vector.load %arg8[%c0_102, %c0_103] : memref<8x128xf32, #tpu.memory_space<vmem>>, vector<8x128xf32>
      tpu.vector_store %arg8[%c0_102, %c0_103], %357 {strides = array<i32>} : memref<8x128xf32, #tpu.memory_space<vmem>>, vector<8x128xf32>,
    } else {
    }
    %c0 = arith.constant 0 : index
    %c0_1 = arith.constant 0 : index
    %3 = vector.load %arg3[%c0, %c0_1] : memref<128x384xbf16, #tpu.memory_space<vmem>>, vector<128x384xbf16>
    %c0_2 = arith.constant 0 : index
    %c0_3 = arith.constant 0 : index
    %4 = vector.load %arg4[%c0_2, %c0_3] : memref<128x384xbf16, #tpu.memory_space<vmem>>, vector<128x384xbf16>
    %c0_4 = arith.constant 0 : index
    %c0_5 = arith.constant 0 : index
    %5 = vector.load %arg5[%c0_4, %c0_5] : memref<1x384xf32, #tpu.memory_space<vmem>>, vector<1x384xf32>
    %6 = vector.shape_cast %5 : vector<1x384xf32> to vector<1x384xf32>
    %7 = vector.broadcast %6 : vector<1x384xf32> to vector<8x384xf32>
    %c0_6 = arith.constant 0 : index
    %c0_7 = arith.constant 0 : index
    %8 = vector.load %arg6[%c0_6, %c0_7] : memref<1x128xf32, #tpu.memory_space<vmem>>, vector<1x128xf32>
    %9 = vector.shape_cast %8 : vector<1x128xf32> to vector<1x128xf32>
    %10 = vector.broadcast %9 : vector<1x128xf32> to vector<8x128xf32>
    %c0_8 = arith.constant 0 : index
    %c0_9 = arith.constant 0 : index
    %11 = vector.load %arg8[%c0_8, %c0_9] : memref<8x128xf32, #tpu.memory_space<vmem>>, vector<8x128xf32>
    %c0_i32_10 = arith.constant 0 : i32
    %12 = arith.index_cast %c0_i32_10 : i32 to index
    %c0_11 = arith.constant 0 : index
    %c0_12 = arith.constant 0 : index
    %13 = vector.load %arg1[%12, %c0_11, %c0_12] : memref<8x8x128xbf16, #tpu.memory_space<vmem>>, vector<1x8x128xbf16>
    %14 = vector.shape_cast %13 : vector<1x8x128xbf16> to vector<8x128xbf16>
    %cst = arith.constant dense<0.000000e+00> : vector<8x384xf32>
    %15 = tpu.matmul %14, %3, %cst {dimension_numbers = #tpu.dot_dimension_numbers<[1], [0], [0], [1], [0, 0, 1, 1], [], []>} : vector<8x128xbf16>, vector<128x384xbf16>, vector<8x384xf32> -> vector<8x384xf32>
    %16 = arith.addf %15, %7 : vector<8x384xf32>
    %17 = arith.truncf %11 : vector<8x128xf32> to vector<8x128xbf16>
    %cst_13 = arith.constant dense<0.000000e+00> : vector<8x384xf32>
    %18 = tpu.matmul %17, %4, %cst_13 {dimension_numbers = #tpu.dot_dimension_numbers<[1], [0], [0], [1], [0, 0, 1, 1], [], []>} : vector<8x128xbf16>, vector<128x384xbf16>, vector<8x384xf32> -> vector<8x384xf32>
    %19 = vector.extract_strided_slice %16 {offsets = [0, 0], sizes = [8, 128], strides = [1, 1]} : vector<8x384xf32> to vector<8x128xf32>
    %20 = vector.extract_strided_slice %18 {offsets = [0, 0], sizes = [8, 128], strides = [1, 1]} : vector<8x384xf32> to vector<8x128xf32>
    %21 = arith.addf %19, %20 : vector<8x128xf32>
    %22 = arith.negf %21 : vector<8x128xf32>
    %23 = math.exp %22 : vector<8x128xf32>
    %cst_14 = arith.constant 1.000000e+00 : f32
    %24 = vector.broadcast %cst_14 : f32 to vector<8x128xf32>
    %25 = arith.addf %24, %23 : vector<8x128xf32>
    %26 = arith.divf %24, %25 : vector<8x128xf32>
    %27 = vector.extract_strided_slice %16 {offsets = [0, 128], sizes = [8, 128], strides = [1, 1]} : vector<8x384xf32> to vector<8x128xf32>
    %28 = vector.extract_strided_slice %18 {offsets = [0, 128], sizes = [8, 128], strides = [1, 1]} : vector<8x384xf32> to vector<8x128xf32>
    %29 = arith.addf %27, %28 : vector<8x128xf32>
    %30 = arith.negf %29 : vector<8x128xf32>
    %31 = math.exp %30 : vector<8x128xf32>
    %cst_15 = arith.constant 1.000000e+00 : f32
    %32 = vector.broadcast %cst_15 : f32 to vector<8x128xf32>
    %33 = arith.addf %32, %31 : vector<8x128xf32>
    %34 = arith.divf %32, %33 : vector<8x128xf32>
    %35 = vector.extract_strided_slice %16 {offsets = [0, 256], sizes = [8, 128], strides = [1, 1]} : vector<8x384xf32> to vector<8x128xf32>
    %36 = vector.extract_strided_slice %18 {offsets = [0, 256], sizes = [8, 128], strides = [1, 1]} : vector<8x384xf32> to vector<8x128xf32>
    %37 = arith.addf %36, %10 : vector<8x128xf32>
    %38 = arith.mulf %26, %37 : vector<8x128xf32>
    %39 = arith.addf %35, %38 : vector<8x128xf32>
    %40 = math.tanh %39 : vector<8x128xf32>
    %cst_16 = arith.constant 1.000000e+00 : f32
    %41 = vector.broadcast %cst_16 : f32 to vector<8x128xf32>
    %42 = arith.subf %41, %34 : vector<8x128xf32>
    %43 = arith.mulf %42, %40 : vector<8x128xf32>
    %44 = arith.mulf %34, %11 : vector<8x128xf32>
    %45 = arith.addf %43, %44 : vector<8x128xf32>
    %46 = arith.truncf %45 : vector<8x128xf32> to vector<8x128xbf16>
    %47 = arith.index_cast %c0_i32_10 : i32 to index
    %c0_17 = arith.constant 0 : index
    %c0_18 = arith.constant 0 : index
    %48 = vector.load %arg7[%47, %c0_17, %c0_18] : memref<8x8x128xbf16, #tpu.memory_space<vmem>>, vector<1x8x128xbf16>
    %49 = vector.shape_cast %48 : vector<1x8x128xbf16> to vector<8x128xbf16>
    %50 = vector.shape_cast %46 : vector<8x128xbf16> to vector<1x8x128xbf16>
    tpu.vector_store %arg7[%47, %c0_17, %c0_18], %50 {strides = array<i32>} : memref<8x8x128xbf16, #tpu.memory_space<vmem>>, vector<1x8x128xbf16>,
    %c8_i32 = arith.constant 8 : i32
    %51 = arith.muli %arg0, %c8_i32 : i32
    %52 = arith.addi %51, %c0_i32_10 : i32
    %c8_i32_19 = arith.constant 8 : i32
    %53 = arith.cmpi slt, %52, %c8_i32_19 : i32
    %54 = arith.select %53, %45, %11 : vector<8x128xf32>
    %c1_i32 = arith.constant 1 : i32
    %55 = arith.index_cast %c1_i32 : i32 to index
    %c0_20 = arith.constant 0 : index
    %c0_21 = arith.constant 0 : index
    %56 = vector.load %arg1[%55, %c0_20, %c0_21] : memref<8x8x128xbf16, #tpu.memory_space<vmem>>, vector<1x8x128xbf16>
    %57 = vector.shape_cast %56 : vector<1x8x128xbf16> to vector<8x128xbf16>
    %cst_22 = arith.constant dense<0.000000e+00> : vector<8x384xf32>
    %58 = tpu.matmul %57, %3, %cst_22 {dimension_numbers = #tpu.dot_dimension_numbers<[1], [0], [0], [1], [0, 0, 1, 1], [], []>} : vector<8x128xbf16>, vector<128x384xbf16>, vector<8x384xf32> -> vector<8x384xf32>
    %59 = arith.addf %58, %7 : vector<8x384xf32>
    %60 = arith.truncf %54 : vector<8x128xf32> to vector<8x128xbf16>
    %cst_23 = arith.constant dense<0.000000e+00> : vector<8x384xf32>
    %61 = tpu.matmul %60, %4, %cst_23 {dimension_numbers = #tpu.dot_dimension_numbers<[1], [0], [0], [1], [0, 0, 1, 1], [], []>} : vector<8x128xbf16>, vector<128x384xbf16>, vector<8x384xf32> -> vector<8x384xf32>
    %62 = vector.extract_strided_slice %59 {offsets = [0, 0], sizes = [8, 128], strides = [1, 1]} : vector<8x384xf32> to vector<8x128xf32>
    %63 = vector.extract_strided_slice %61 {offsets = [0, 0], sizes = [8, 128], strides = [1, 1]} : vector<8x384xf32> to vector<8x128xf32>
    %64 = arith.addf %62, %63 : vector<8x128xf32>
    %65 = arith.negf %64 : vector<8x128xf32>
    %66 = math.exp %65 : vector<8x128xf32>
    %cst_24 = arith.constant 1.000000e+00 : f32
    %67 = vector.broadcast %cst_24 : f32 to vector<8x128xf32>
    %68 = arith.addf %67, %66 : vector<8x128xf32>
    %69 = arith.divf %67, %68 : vector<8x128xf32>
    %70 = vector.extract_strided_slice %59 {offsets = [0, 128], sizes = [8, 128], strides = [1, 1]} : vector<8x384xf32> to vector<8x128xf32>
    %71 = vector.extract_strided_slice %61 {offsets = [0, 128], sizes = [8, 128], strides = [1, 1]} : vector<8x384xf32> to vector<8x128xf32>
    %72 = arith.addf %70, %71 : vector<8x128xf32>
    %73 = arith.negf %72 : vector<8x128xf32>
    %74 = math.exp %73 : vector<8x128xf32>
    %cst_25 = arith.constant 1.000000e+00 : f32
    %75 = vector.broadcast %cst_25 : f32 to vector<8x128xf32>
    %76 = arith.addf %75, %74 : vector<8x128xf32>
    %77 = arith.divf %75, %76 : vector<8x128xf32>
    %78 = vector.extract_strided_slice %59 {offsets = [0, 256], sizes = [8, 128], strides = [1, 1]} : vector<8x384xf32> to vector<8x128xf32>
    %79 = vector.extract_strided_slice %61 {offsets = [0, 256], sizes = [8, 128], strides = [1, 1]} : vector<8x384xf32> to vector<8x128xf32>
    %80 = arith.addf %79, %10 : vector<8x128xf32>
    %81 = arith.mulf %69, %80 : vector<8x128xf32>
    %82 = arith.addf %78, %81 : vector<8x128xf32>
    %83 = math.tanh %82 : vector<8x128xf32>
    %cst_26 = arith.constant 1.000000e+00 : f32
    %84 = vector.broadcast %cst_26 : f32 to vector<8x128xf32>
    %85 = arith.subf %84, %77 : vector<8x128xf32>
    %86 = arith.mulf %85, %83 : vector<8x128xf32>
    %87 = arith.mulf %77, %54 : vector<8x128xf32>
    %88 = arith.addf %86, %87 : vector<8x128xf32>
    %89 = arith.truncf %88 : vector<8x128xf32> to vector<8x128xbf16>
    %90 = arith.index_cast %c1_i32 : i32 to index
    %c0_27 = arith.constant 0 : index
    %c0_28 = arith.constant 0 : index
    %91 = vector.load %arg7[%90, %c0_27, %c0_28] : memref<8x8x128xbf16, #tpu.memory_space<vmem>>, vector<1x8x128xbf16>
    %92 = vector.shape_cast %91 : vector<1x8x128xbf16> to vector<8x128xbf16>
    %93 = vector.shape_cast %89 : vector<8x128xbf16> to vector<1x8x128xbf16>
    tpu.vector_store %arg7[%90, %c0_27, %c0_28], %93 {strides = array<i32>} : memref<8x8x128xbf16, #tpu.memory_space<vmem>>, vector<1x8x128xbf16>,
    %c8_i32_29 = arith.constant 8 : i32
    %94 = arith.muli %arg0, %c8_i32_29 : i32
    %95 = arith.addi %94, %c1_i32 : i32
    %c8_i32_30 = arith.constant 8 : i32
    %96 = arith.cmpi slt, %95, %c8_i32_30 : i32
    %97 = arith.select %96, %88, %54 : vector<8x128xf32>
    %c2_i32 = arith.constant 2 : i32
    %98 = arith.index_cast %c2_i32 : i32 to index
    %c0_31 = arith.constant 0 : index
    %c0_32 = arith.constant 0 : index
    %99 = vector.load %arg1[%98, %c0_31, %c0_32] : memref<8x8x128xbf16, #tpu.memory_space<vmem>>, vector<1x8x128xbf16>
    %100 = vector.shape_cast %99 : vector<1x8x128xbf16> to vector<8x128xbf16>
    %cst_33 = arith.constant dense<0.000000e+00> : vector<8x384xf32>
    %101 = tpu.matmul %100, %3, %cst_33 {dimension_numbers = #tpu.dot_dimension_numbers<[1], [0], [0], [1], [0, 0, 1, 1], [], []>} : vector<8x128xbf16>, vector<128x384xbf16>, vector<8x384xf32> -> vector<8x384xf32>
    %102 = arith.addf %101, %7 : vector<8x384xf32>
    %103 = arith.truncf %97 : vector<8x128xf32> to vector<8x128xbf16>
    %cst_34 = arith.constant dense<0.000000e+00> : vector<8x384xf32>
    %104 = tpu.matmul %103, %4, %cst_34 {dimension_numbers = #tpu.dot_dimension_numbers<[1], [0], [0], [1], [0, 0, 1, 1], [], []>} : vector<8x128xbf16>, vector<128x384xbf16>, vector<8x384xf32> -> vector<8x384xf32>
    %105 = vector.extract_strided_slice %102 {offsets = [0, 0], sizes = [8, 128], strides = [1, 1]} : vector<8x384xf32> to vector<8x128xf32>
    %106 = vector.extract_strided_slice %104 {offsets = [0, 0], sizes = [8, 128], strides = [1, 1]} : vector<8x384xf32> to vector<8x128xf32>
    %107 = arith.addf %105, %106 : vector<8x128xf32>
    %108 = arith.negf %107 : vector<8x128xf32>
    %109 = math.exp %108 : vector<8x128xf32>
    %cst_35 = arith.constant 1.000000e+00 : f32
    %110 = vector.broadcast %cst_35 : f32 to vector<8x128xf32>
    %111 = arith.addf %110, %109 : vector<8x128xf32>
    %112 = arith.divf %110, %111 : vector<8x128xf32>
    %113 = vector.extract_strided_slice %102 {offsets = [0, 128], sizes = [8, 128], strides = [1, 1]} : vector<8x384xf32> to vector<8x128xf32>
    %114 = vector.extract_strided_slice %104 {offsets = [0, 128], sizes = [8, 128], strides = [1, 1]} : vector<8x384xf32> to vector<8x128xf32>
    %115 = arith.addf %113, %114 : vector<8x128xf32>
    %116 = arith.negf %115 : vector<8x128xf32>
    %117 = math.exp %116 : vector<8x128xf32>
    %cst_36 = arith.constant 1.000000e+00 : f32
    %118 = vector.broadcast %cst_36 : f32 to vector<8x128xf32>
    %119 = arith.addf %118, %117 : vector<8x128xf32>
    %120 = arith.divf %118, %119 : vector<8x128xf32>
    %121 = vector.extract_strided_slice %102 {offsets = [0, 256], sizes = [8, 128], strides = [1, 1]} : vector<8x384xf32> to vector<8x128xf32>
    %122 = vector.extract_strided_slice %104 {offsets = [0, 256], sizes = [8, 128], strides = [1, 1]} : vector<8x384xf32> to vector<8x128xf32>
    %123 = arith.addf %122, %10 : vector<8x128xf32>
    %124 = arith.mulf %112, %123 : vector<8x128xf32>
    %125 = arith.addf %121, %124 : vector<8x128xf32>
    %126 = math.tanh %125 : vector<8x128xf32>
    %cst_37 = arith.constant 1.000000e+00 : f32
    %127 = vector.broadcast %cst_37 : f32 to vector<8x128xf32>
    %128 = arith.subf %127, %120 : vector<8x128xf32>
    %129 = arith.mulf %128, %126 : vector<8x128xf32>
    %130 = arith.mulf %120, %97 : vector<8x128xf32>
    %131 = arith.addf %129, %130 : vector<8x128xf32>
    %132 = arith.truncf %131 : vector<8x128xf32> to vector<8x128xbf16>
    %133 = arith.index_cast %c2_i32 : i32 to index
    %c0_38 = arith.constant 0 : index
    %c0_39 = arith.constant 0 : index
    %134 = vector.load %arg7[%133, %c0_38, %c0_39] : memref<8x8x128xbf16, #tpu.memory_space<vmem>>, vector<1x8x128xbf16>
    %135 = vector.shape_cast %134 : vector<1x8x128xbf16> to vector<8x128xbf16>
    %136 = vector.shape_cast %132 : vector<8x128xbf16> to vector<1x8x128xbf16>
    tpu.vector_store %arg7[%133, %c0_38, %c0_39], %136 {strides = array<i32>} : memref<8x8x128xbf16, #tpu.memory_space<vmem>>, vector<1x8x128xbf16>,
    %c8_i32_40 = arith.constant 8 : i32
    %137 = arith.muli %arg0, %c8_i32_40 : i32
    %138 = arith.addi %137, %c2_i32 : i32
    %c8_i32_41 = arith.constant 8 : i32
    %139 = arith.cmpi slt, %138, %c8_i32_41 : i32
    %140 = arith.select %139, %131, %97 : vector<8x128xf32>
    %c3_i32 = arith.constant 3 : i32
    %141 = arith.index_cast %c3_i32 : i32 to index
    %c0_42 = arith.constant 0 : index
    %c0_43 = arith.constant 0 : index
    %142 = vector.load %arg1[%141, %c0_42, %c0_43] : memref<8x8x128xbf16, #tpu.memory_space<vmem>>, vector<1x8x128xbf16>
    %143 = vector.shape_cast %142 : vector<1x8x128xbf16> to vector<8x128xbf16>
    %cst_44 = arith.constant dense<0.000000e+00> : vector<8x384xf32>
    %144 = tpu.matmul %143, %3, %cst_44 {dimension_numbers = #tpu.dot_dimension_numbers<[1], [0], [0], [1], [0, 0, 1, 1], [], []>} : vector<8x128xbf16>, vector<128x384xbf16>, vector<8x384xf32> -> vector<8x384xf32>
    %145 = arith.addf %144, %7 : vector<8x384xf32>
    %146 = arith.truncf %140 : vector<8x128xf32> to vector<8x128xbf16>
    %cst_45 = arith.constant dense<0.000000e+00> : vector<8x384xf32>
    %147 = tpu.matmul %146, %4, %cst_45 {dimension_numbers = #tpu.dot_dimension_numbers<[1], [0], [0], [1], [0, 0, 1, 1], [], []>} : vector<8x128xbf16>, vector<128x384xbf16>, vector<8x384xf32> -> vector<8x384xf32>
    %148 = vector.extract_strided_slice %145 {offsets = [0, 0], sizes = [8, 128], strides = [1, 1]} : vector<8x384xf32> to vector<8x128xf32>
    %149 = vector.extract_strided_slice %147 {offsets = [0, 0], sizes = [8, 128], strides = [1, 1]} : vector<8x384xf32> to vector<8x128xf32>
    %150 = arith.addf %148, %149 : vector<8x128xf32>
    %151 = arith.negf %150 : vector<8x128xf32>
    %152 = math.exp %151 : vector<8x128xf32>
    %cst_46 = arith.constant 1.000000e+00 : f32
    %153 = vector.broadcast %cst_46 : f32 to vector<8x128xf32>
    %154 = arith.addf %153, %152 : vector<8x128xf32>
    %155 = arith.divf %153, %154 : vector<8x128xf32>
    %156 = vector.extract_strided_slice %145 {offsets = [0, 128], sizes = [8, 128], strides = [1, 1]} : vector<8x384xf32> to vector<8x128xf32>
    %157 = vector.extract_strided_slice %147 {offsets = [0, 128], sizes = [8, 128], strides = [1, 1]} : vector<8x384xf32> to vector<8x128xf32>
    %158 = arith.addf %156, %157 : vector<8x128xf32>
    %159 = arith.negf %158 : vector<8x128xf32>
    %160 = math.exp %159 : vector<8x128xf32>
    %cst_47 = arith.constant 1.000000e+00 : f32
    %161 = vector.broadcast %cst_47 : f32 to vector<8x128xf32>
    %162 = arith.addf %161, %160 : vector<8x128xf32>
    %163 = arith.divf %161, %162 : vector<8x128xf32>
    %164 = vector.extract_strided_slice %145 {offsets = [0, 256], sizes = [8, 128], strides = [1, 1]} : vector<8x384xf32> to vector<8x128xf32>
    %165 = vector.extract_strided_slice %147 {offsets = [0, 256], sizes = [8, 128], strides = [1, 1]} : vector<8x384xf32> to vector<8x128xf32>
    %166 = arith.addf %165, %10 : vector<8x128xf32>
    %167 = arith.mulf %155, %166 : vector<8x128xf32>
    %168 = arith.addf %164, %167 : vector<8x128xf32>
    %169 = math.tanh %168 : vector<8x128xf32>
    %cst_48 = arith.constant 1.000000e+00 : f32
    %170 = vector.broadcast %cst_48 : f32 to vector<8x128xf32>
    %171 = arith.subf %170, %163 : vector<8x128xf32>
    %172 = arith.mulf %171, %169 : vector<8x128xf32>
    %173 = arith.mulf %163, %140 : vector<8x128xf32>
    %174 = arith.addf %172, %173 : vector<8x128xf32>
    %175 = arith.truncf %174 : vector<8x128xf32> to vector<8x128xbf16>
    %176 = arith.index_cast %c3_i32 : i32 to index
    %c0_49 = arith.constant 0 : index
    %c0_50 = arith.constant 0 : index
    %177 = vector.load %arg7[%176, %c0_49, %c0_50] : memref<8x8x128xbf16, #tpu.memory_space<vmem>>, vector<1x8x128xbf16>
    %178 = vector.shape_cast %177 : vector<1x8x128xbf16> to vector<8x128xbf16>
    %179 = vector.shape_cast %175 : vector<8x128xbf16> to vector<1x8x128xbf16>
    tpu.vector_store %arg7[%176, %c0_49, %c0_50], %179 {strides = array<i32>} : memref<8x8x128xbf16, #tpu.memory_space<vmem>>, vector<1x8x128xbf16>,
    %c8_i32_51 = arith.constant 8 : i32
    %180 = arith.muli %arg0, %c8_i32_51 : i32
    %181 = arith.addi %180, %c3_i32 : i32
    %c8_i32_52 = arith.constant 8 : i32
    %182 = arith.cmpi slt, %181, %c8_i32_52 : i32
    %183 = arith.select %182, %174, %140 : vector<8x128xf32>
    %c4_i32 = arith.constant 4 : i32
    %184 = arith.index_cast %c4_i32 : i32 to index
    %c0_53 = arith.constant 0 : index
    %c0_54 = arith.constant 0 : index
    %185 = vector.load %arg1[%184, %c0_53, %c0_54] : memref<8x8x128xbf16, #tpu.memory_space<vmem>>, vector<1x8x128xbf16>
    %186 = vector.shape_cast %185 : vector<1x8x128xbf16> to vector<8x128xbf16>
    %cst_55 = arith.constant dense<0.000000e+00> : vector<8x384xf32>
    %187 = tpu.matmul %186, %3, %cst_55 {dimension_numbers = #tpu.dot_dimension_numbers<[1], [0], [0], [1], [0, 0, 1, 1], [], []>} : vector<8x128xbf16>, vector<128x384xbf16>, vector<8x384xf32> -> vector<8x384xf32>
    %188 = arith.addf %187, %7 : vector<8x384xf32>
    %189 = arith.truncf %183 : vector<8x128xf32> to vector<8x128xbf16>
    %cst_56 = arith.constant dense<0.000000e+00> : vector<8x384xf32>
    %190 = tpu.matmul %189, %4, %cst_56 {dimension_numbers = #tpu.dot_dimension_numbers<[1], [0], [0], [1], [0, 0, 1, 1], [], []>} : vector<8x128xbf16>, vector<128x384xbf16>, vector<8x384xf32> -> vector<8x384xf32>
    %191 = vector.extract_strided_slice %188 {offsets = [0, 0], sizes = [8, 128], strides = [1, 1]} : vector<8x384xf32> to vector<8x128xf32>
    %192 = vector.extract_strided_slice %190 {offsets = [0, 0], sizes = [8, 128], strides = [1, 1]} : vector<8x384xf32> to vector<8x128xf32>
    %193 = arith.addf %191, %192 : vector<8x128xf32>
    %194 = arith.negf %193 : vector<8x128xf32>
    %195 = math.exp %194 : vector<8x128xf32>
    %cst_57 = arith.constant 1.000000e+00 : f32
    %196 = vector.broadcast %cst_57 : f32 to vector<8x128xf32>
    %197 = arith.addf %196, %195 : vector<8x128xf32>
    %198 = arith.divf %196, %197 : vector<8x128xf32>
    %199 = vector.extract_strided_slice %188 {offsets = [0, 128], sizes = [8, 128], strides = [1, 1]} : vector<8x384xf32> to vector<8x128xf32>
    %200 = vector.extract_strided_slice %190 {offsets = [0, 128], sizes = [8, 128], strides = [1, 1]} : vector<8x384xf32> to vector<8x128xf32>
    %201 = arith.addf %199, %200 : vector<8x128xf32>
    %202 = arith.negf %201 : vector<8x128xf32>
    %203 = math.exp %202 : vector<8x128xf32>
    %cst_58 = arith.constant 1.000000e+00 : f32
    %204 = vector.broadcast %cst_58 : f32 to vector<8x128xf32>
    %205 = arith.addf %204, %203 : vector<8x128xf32>
    %206 = arith.divf %204, %205 : vector<8x128xf32>
    %207 = vector.extract_strided_slice %188 {offsets = [0, 256], sizes = [8, 128], strides = [1, 1]} : vector<8x384xf32> to vector<8x128xf32>
    %208 = vector.extract_strided_slice %190 {offsets = [0, 256], sizes = [8, 128], strides = [1, 1]} : vector<8x384xf32> to vector<8x128xf32>
    %209 = arith.addf %208, %10 : vector<8x128xf32>
    %210 = arith.mulf %198, %209 : vector<8x128xf32>
    %211 = arith.addf %207, %210 : vector<8x128xf32>
    %212 = math.tanh %211 : vector<8x128xf32>
    %cst_59 = arith.constant 1.000000e+00 : f32
    %213 = vector.broadcast %cst_59 : f32 to vector<8x128xf32>
    %214 = arith.subf %213, %206 : vector<8x128xf32>
    %215 = arith.mulf %214, %212 : vector<8x128xf32>
    %216 = arith.mulf %206, %183 : vector<8x128xf32>
    %217 = arith.addf %215, %216 : vector<8x128xf32>
    %218 = arith.truncf %217 : vector<8x128xf32> to vector<8x128xbf16>
    %219 = arith.index_cast %c4_i32 : i32 to index
    %c0_60 = arith.constant 0 : index
    %c0_61 = arith.constant 0 : index
    %220 = vector.load %arg7[%219, %c0_60, %c0_61] : memref<8x8x128xbf16, #tpu.memory_space<vmem>>, vector<1x8x128xbf16>
    %221 = vector.shape_cast %220 : vector<1x8x128xbf16> to vector<8x128xbf16>
    %222 = vector.shape_cast %218 : vector<8x128xbf16> to vector<1x8x128xbf16>
    tpu.vector_store %arg7[%219, %c0_60, %c0_61], %222 {strides = array<i32>} : memref<8x8x128xbf16, #tpu.memory_space<vmem>>, vector<1x8x128xbf16>,
    %c8_i32_62 = arith.constant 8 : i32
    %223 = arith.muli %arg0, %c8_i32_62 : i32
    %224 = arith.addi %223, %c4_i32 : i32
    %c8_i32_63 = arith.constant 8 : i32
    %225 = arith.cmpi slt, %224, %c8_i32_63 : i32
    %226 = arith.select %225, %217, %183 : vector<8x128xf32>
    %c5_i32 = arith.constant 5 : i32
    %227 = arith.index_cast %c5_i32 : i32 to index
    %c0_64 = arith.constant 0 : index
    %c0_65 = arith.constant 0 : index
    %228 = vector.load %arg1[%227, %c0_64, %c0_65] : memref<8x8x128xbf16, #tpu.memory_space<vmem>>, vector<1x8x128xbf16>
    %229 = vector.shape_cast %228 : vector<1x8x128xbf16> to vector<8x128xbf16>
    %cst_66 = arith.constant dense<0.000000e+00> : vector<8x384xf32>
    %230 = tpu.matmul %229, %3, %cst_66 {dimension_numbers = #tpu.dot_dimension_numbers<[1], [0], [0], [1], [0, 0, 1, 1], [], []>} : vector<8x128xbf16>, vector<128x384xbf16>, vector<8x384xf32> -> vector<8x384xf32>
    %231 = arith.addf %230, %7 : vector<8x384xf32>
    %232 = arith.truncf %226 : vector<8x128xf32> to vector<8x128xbf16>
    %cst_67 = arith.constant dense<0.000000e+00> : vector<8x384xf32>
    %233 = tpu.matmul %232, %4, %cst_67 {dimension_numbers = #tpu.dot_dimension_numbers<[1], [0], [0], [1], [0, 0, 1, 1], [], []>} : vector<8x128xbf16>, vector<128x384xbf16>, vector<8x384xf32> -> vector<8x384xf32>
    %234 = vector.extract_strided_slice %231 {offsets = [0, 0], sizes = [8, 128], strides = [1, 1]} : vector<8x384xf32> to vector<8x128xf32>
    %235 = vector.extract_strided_slice %233 {offsets = [0, 0], sizes = [8, 128], strides = [1, 1]} : vector<8x384xf32> to vector<8x128xf32>
    %236 = arith.addf %234, %235 : vector<8x128xf32>
    %237 = arith.negf %236 : vector<8x128xf32>
    %238 = math.exp %237 : vector<8x128xf32>
    %cst_68 = arith.constant 1.000000e+00 : f32
    %239 = vector.broadcast %cst_68 : f32 to vector<8x128xf32>
    %240 = arith.addf %239, %238 : vector<8x128xf32>
    %241 = arith.divf %239, %240 : vector<8x128xf32>
    %242 = vector.extract_strided_slice %231 {offsets = [0, 128], sizes = [8, 128], strides = [1, 1]} : vector<8x384xf32> to vector<8x128xf32>
    %243 = vector.extract_strided_slice %233 {offsets = [0, 128], sizes = [8, 128], strides = [1, 1]} : vector<8x384xf32> to vector<8x128xf32>
    %244 = arith.addf %242, %243 : vector<8x128xf32>
    %245 = arith.negf %244 : vector<8x128xf32>
    %246 = math.exp %245 : vector<8x128xf32>
    %cst_69 = arith.constant 1.000000e+00 : f32
    %247 = vector.broadcast %cst_69 : f32 to vector<8x128xf32>
    %248 = arith.addf %247, %246 : vector<8x128xf32>
    %249 = arith.divf %247, %248 : vector<8x128xf32>
    %250 = vector.extract_strided_slice %231 {offsets = [0, 256], sizes = [8, 128], strides = [1, 1]} : vector<8x384xf32> to vector<8x128xf32>
    %251 = vector.extract_strided_slice %233 {offsets = [0, 256], sizes = [8, 128], strides = [1, 1]} : vector<8x384xf32> to vector<8x128xf32>
    %252 = arith.addf %251, %10 : vector<8x128xf32>
    %253 = arith.mulf %241, %252 : vector<8x128xf32>
    %254 = arith.addf %250, %253 : vector<8x128xf32>
    %255 = math.tanh %254 : vector<8x128xf32>
    %cst_70 = arith.constant 1.000000e+00 : f32
    %256 = vector.broadcast %cst_70 : f32 to vector<8x128xf32>
    %257 = arith.subf %256, %249 : vector<8x128xf32>
    %258 = arith.mulf %257, %255 : vector<8x128xf32>
    %259 = arith.mulf %249, %226 : vector<8x128xf32>
    %260 = arith.addf %258, %259 : vector<8x128xf32>
    %261 = arith.truncf %260 : vector<8x128xf32> to vector<8x128xbf16>
    %262 = arith.index_cast %c5_i32 : i32 to index
    %c0_71 = arith.constant 0 : index
    %c0_72 = arith.constant 0 : index
    %263 = vector.load %arg7[%262, %c0_71, %c0_72] : memref<8x8x128xbf16, #tpu.memory_space<vmem>>, vector<1x8x128xbf16>
    %264 = vector.shape_cast %263 : vector<1x8x128xbf16> to vector<8x128xbf16>
    %265 = vector.shape_cast %261 : vector<8x128xbf16> to vector<1x8x128xbf16>
    tpu.vector_store %arg7[%262, %c0_71, %c0_72], %265 {strides = array<i32>} : memref<8x8x128xbf16, #tpu.memory_space<vmem>>, vector<1x8x128xbf16>,
    %c8_i32_73 = arith.constant 8 : i32
    %266 = arith.muli %arg0, %c8_i32_73 : i32
    %267 = arith.addi %266, %c5_i32 : i32
    %c8_i32_74 = arith.constant 8 : i32
    %268 = arith.cmpi slt, %267, %c8_i32_74 : i32
    %269 = arith.select %268, %260, %226 : vector<8x128xf32>
    %c6_i32 = arith.constant 6 : i32
    %270 = arith.index_cast %c6_i32 : i32 to index
    %c0_75 = arith.constant 0 : index
    %c0_76 = arith.constant 0 : index
    %271 = vector.load %arg1[%270, %c0_75, %c0_76] : memref<8x8x128xbf16, #tpu.memory_space<vmem>>, vector<1x8x128xbf16>
    %272 = vector.shape_cast %271 : vector<1x8x128xbf16> to vector<8x128xbf16>
    %cst_77 = arith.constant dense<0.000000e+00> : vector<8x384xf32>
    %273 = tpu.matmul %272, %3, %cst_77 {dimension_numbers = #tpu.dot_dimension_numbers<[1], [0], [0], [1], [0, 0, 1, 1], [], []>} : vector<8x128xbf16>, vector<128x384xbf16>, vector<8x384xf32> -> vector<8x384xf32>
    %274 = arith.addf %273, %7 : vector<8x384xf32>
    %275 = arith.truncf %269 : vector<8x128xf32> to vector<8x128xbf16>
    %cst_78 = arith.constant dense<0.000000e+00> : vector<8x384xf32>
    %276 = tpu.matmul %275, %4, %cst_78 {dimension_numbers = #tpu.dot_dimension_numbers<[1], [0], [0], [1], [0, 0, 1, 1], [], []>} : vector<8x128xbf16>, vector<128x384xbf16>, vector<8x384xf32> -> vector<8x384xf32>
    %277 = vector.extract_strided_slice %274 {offsets = [0, 0], sizes = [8, 128], strides = [1, 1]} : vector<8x384xf32> to vector<8x128xf32>
    %278 = vector.extract_strided_slice %276 {offsets = [0, 0], sizes = [8, 128], strides = [1, 1]} : vector<8x384xf32> to vector<8x128xf32>
    %279 = arith.addf %277, %278 : vector<8x128xf32>
    %280 = arith.negf %279 : vector<8x128xf32>
    %281 = math.exp %280 : vector<8x128xf32>
    %cst_79 = arith.constant 1.000000e+00 : f32
    %282 = vector.broadcast %cst_79 : f32 to vector<8x128xf32>
    %283 = arith.addf %282, %281 : vector<8x128xf32>
    %284 = arith.divf %282, %283 : vector<8x128xf32>
    %285 = vector.extract_strided_slice %274 {offsets = [0, 128], sizes = [8, 128], strides = [1, 1]} : vector<8x384xf32> to vector<8x128xf32>
    %286 = vector.extract_strided_slice %276 {offsets = [0, 128], sizes = [8, 128], strides = [1, 1]} : vector<8x384xf32> to vector<8x128xf32>
    %287 = arith.addf %285, %286 : vector<8x128xf32>
    %288 = arith.negf %287 : vector<8x128xf32>
    %289 = math.exp %288 : vector<8x128xf32>
    %cst_80 = arith.constant 1.000000e+00 : f32
    %290 = vector.broadcast %cst_80 : f32 to vector<8x128xf32>
    %291 = arith.addf %290, %289 : vector<8x128xf32>
    %292 = arith.divf %290, %291 : vector<8x128xf32>
    %293 = vector.extract_strided_slice %274 {offsets = [0, 256], sizes = [8, 128], strides = [1, 1]} : vector<8x384xf32> to vector<8x128xf32>
    %294 = vector.extract_strided_slice %276 {offsets = [0, 256], sizes = [8, 128], strides = [1, 1]} : vector<8x384xf32> to vector<8x128xf32>
    %295 = arith.addf %294, %10 : vector<8x128xf32>
    %296 = arith.mulf %284, %295 : vector<8x128xf32>
    %297 = arith.addf %293, %296 : vector<8x128xf32>
    %298 = math.tanh %297 : vector<8x128xf32>
    %cst_81 = arith.constant 1.000000e+00 : f32
    %299 = vector.broadcast %cst_81 : f32 to vector<8x128xf32>
    %300 = arith.subf %299, %292 : vector<8x128xf32>
    %301 = arith.mulf %300, %298 : vector<8x128xf32>
    %302 = arith.mulf %292, %269 : vector<8x128xf32>
    %303 = arith.addf %301, %302 : vector<8x128xf32>
    %304 = arith.truncf %303 : vector<8x128xf32> to vector<8x128xbf16>
    %305 = arith.index_cast %c6_i32 : i32 to index
    %c0_82 = arith.constant 0 : index
    %c0_83 = arith.constant 0 : index
    %306 = vector.load %arg7[%305, %c0_82, %c0_83] : memref<8x8x128xbf16, #tpu.memory_space<vmem>>, vector<1x8x128xbf16>
    %307 = vector.shape_cast %306 : vector<1x8x128xbf16> to vector<8x128xbf16>
    %308 = vector.shape_cast %304 : vector<8x128xbf16> to vector<1x8x128xbf16>
    tpu.vector_store %arg7[%305, %c0_82, %c0_83], %308 {strides = array<i32>} : memref<8x8x128xbf16, #tpu.memory_space<vmem>>, vector<1x8x128xbf16>,
    %c8_i32_84 = arith.constant 8 : i32
    %309 = arith.muli %arg0, %c8_i32_84 : i32
    %310 = arith.addi %309, %c6_i32 : i32
    %c8_i32_85 = arith.constant 8 : i32
    %311 = arith.cmpi slt, %310, %c8_i32_85 : i32
    %312 = arith.select %311, %303, %269 : vector<8x128xf32>
    %c7_i32 = arith.constant 7 : i32
    %313 = arith.index_cast %c7_i32 : i32 to index
    %c0_86 = arith.constant 0 : index
    %c0_87 = arith.constant 0 : index
    %314 = vector.load %arg1[%313, %c0_86, %c0_87] : memref<8x8x128xbf16, #tpu.memory_space<vmem>>, vector<1x8x128xbf16>
    %315 = vector.shape_cast %314 : vector<1x8x128xbf16> to vector<8x128xbf16>
    %cst_88 = arith.constant dense<0.000000e+00> : vector<8x384xf32>
    %316 = tpu.matmul %315, %3, %cst_88 {dimension_numbers = #tpu.dot_dimension_numbers<[1], [0], [0], [1], [0, 0, 1, 1], [], []>} : vector<8x128xbf16>, vector<128x384xbf16>, vector<8x384xf32> -> vector<8x384xf32>
    %317 = arith.addf %316, %7 : vector<8x384xf32>
    %318 = arith.truncf %312 : vector<8x128xf32> to vector<8x128xbf16>
    %cst_89 = arith.constant dense<0.000000e+00> : vector<8x384xf32>
    %319 = tpu.matmul %318, %4, %cst_89 {dimension_numbers = #tpu.dot_dimension_numbers<[1], [0], [0], [1], [0, 0, 1, 1], [], []>} : vector<8x128xbf16>, vector<128x384xbf16>, vector<8x384xf32> -> vector<8x384xf32>
    %320 = vector.extract_strided_slice %317 {offsets = [0, 0], sizes = [8, 128], strides = [1, 1]} : vector<8x384xf32> to vector<8x128xf32>
    %321 = vector.extract_strided_slice %319 {offsets = [0, 0], sizes = [8, 128], strides = [1, 1]} : vector<8x384xf32> to vector<8x128xf32>
    %322 = arith.addf %320, %321 : vector<8x128xf32>
    %323 = arith.negf %322 : vector<8x128xf32>
    %324 = math.exp %323 : vector<8x128xf32>
    %cst_90 = arith.constant 1.000000e+00 : f32
    %325 = vector.broadcast %cst_90 : f32 to vector<8x128xf32>
    %326 = arith.addf %325, %324 : vector<8x128xf32>
    %327 = arith.divf %325, %326 : vector<8x128xf32>
    %328 = vector.extract_strided_slice %317 {offsets = [0, 128], sizes = [8, 128], strides = [1, 1]} : vector<8x384xf32> to vector<8x128xf32>
    %329 = vector.extract_strided_slice %319 {offsets = [0, 128], sizes = [8, 128], strides = [1, 1]} : vector<8x384xf32> to vector<8x128xf32>
    %330 = arith.addf %328, %329 : vector<8x128xf32>
    %331 = arith.negf %330 : vector<8x128xf32>
    %332 = math.exp %331 : vector<8x128xf32>
    %cst_91 = arith.constant 1.000000e+00 : f32
    %333 = vector.broadcast %cst_91 : f32 to vector<8x128xf32>
    %334 = arith.addf %333, %332 : vector<8x128xf32>
    %335 = arith.divf %333, %334 : vector<8x128xf32>
    %336 = vector.extract_strided_slice %317 {offsets = [0, 256], sizes = [8, 128], strides = [1, 1]} : vector<8x384xf32> to vector<8x128xf32>
    %337 = vector.extract_strided_slice %319 {offsets = [0, 256], sizes = [8, 128], strides = [1, 1]} : vector<8x384xf32> to vector<8x128xf32>
    %338 = arith.addf %337, %10 : vector<8x128xf32>
    %339 = arith.mulf %327, %338 : vector<8x128xf32>
    %340 = arith.addf %336, %339 : vector<8x128xf32>
    %341 = math.tanh %340 : vector<8x128xf32>
    %cst_92 = arith.constant 1.000000e+00 : f32
    %342 = vector.broadcast %cst_92 : f32 to vector<8x128xf32>
    %343 = arith.subf %342, %335 : vector<8x128xf32>
    %344 = arith.mulf %343, %341 : vector<8x128xf32>
    %345 = arith.mulf %335, %312 : vector<8x128xf32>
    %346 = arith.addf %344, %345 : vector<8x128xf32>
    %347 = arith.truncf %346 : vector<8x128xf32> to vector<8x128xbf16>
    %348 = arith.index_cast %c7_i32 : i32 to index
    %c0_93 = arith.constant 0 : index
    %c0_94 = arith.constant 0 : index
    %349 = vector.load %arg7[%348, %c0_93, %c0_94] : memref<8x8x128xbf16, #tpu.memory_space<vmem>>, vector<1x8x128xbf16>
    %350 = vector.shape_cast %349 : vector<1x8x128xbf16> to vector<8x128xbf16>
    %351 = vector.shape_cast %347 : vector<8x128xbf16> to vector<1x8x128xbf16>
    tpu.vector_store %arg7[%348, %c0_93, %c0_94], %351 {strides = array<i32>} : memref<8x8x128xbf16, #tpu.memory_space<vmem>>, vector<1x8x128xbf16>,
    %c8_i32_95 = arith.constant 8 : i32
    %352 = arith.muli %arg0, %c8_i32_95 : i32
    %353 = arith.addi %352, %c7_i32 : i32
    %c8_i32_96 = arith.constant 8 : i32
    %354 = arith.cmpi slt, %353, %c8_i32_96 : i32
    %355 = arith.select %354, %346, %312 : vector<8x128xf32>
    %c8_i32_97 = arith.constant 8 : i32
    %c0_98 = arith.constant 0 : index
    %c0_99 = arith.constant 0 : index
    %356 = vector.load %arg8[%c0_98, %c0_99] : memref<8x128xf32, #tpu.memory_space<vmem>>, vector<8x128xf32>
    tpu.vector_store %arg8[%c0_98, %c0_99], %355 {strides = array<i32>} : memref<8x128xf32, #tpu.memory_space<vmem>>, vector<8x128xf32>,
    return
  }
  func.func @transform_0(%arg0: i32) -> (i32, i32, i32) {
    %c0_i32 = arith.constant 0 : i32
    %c0_i32_0 = arith.constant 0 : i32
    %c0_i32_1 = arith.constant 0 : i32
    return %arg0, %c0_i32, %c0_i32_0 : i32, i32, i32
  }
  func.func @transform_1(%arg0: i32) -> (i32, i32) {
    %c0_i32 = arith.constant 0 : i32
    %c0_i32_0 = arith.constant 0 : i32
    %c0_i32_1 = arith.constant 0 : i32
    return %c0_i32, %c0_i32_0 : i32, i32
  }
  func.func @transform_2(%arg0: i32) -> (i32, i32) {
    %c0_i32 = arith.constant 0 : i32
    %c0_i32_0 = arith.constant 0 : i32
    %c0_i32_1 = arith.constant 0 : i32
    return %c0_i32, %c0_i32_0 : i32, i32
  }
  func.func @transform_3(%arg0: i32) -> (i32, i32) {
    %c0_i32 = arith.constant 0 : i32
    %c0_i32_0 = arith.constant 0 : i32
    %c0_i32_1 = arith.constant 0 : i32
    return %c0_i32, %c0_i32_0 : i32, i32
  }
  func.func @transform_4(%arg0: i32) -> (i32, i32) {
    %c0_i32 = arith.constant 0 : i32
    %c0_i32_0 = arith.constant 0 : i32
    %c0_i32_1 = arith.constant 0 : i32
    return %c0_i32, %c0_i32_0 : i32, i32
  }
  func.func @transform_5(%arg0: i32) -> (i32, i32) {
    %c0_i32 = arith.constant 0 : i32
    %c0_i32_0 = arith.constant 0 : i32
    %c0_i32_1 = arith.constant 0 : i32
    return %c0_i32, %c0_i32_0 : i32, i32
  }
  func.func @transform_6(%arg0: i32) -> (i32, i32, i32) {
    %c0_i32 = arith.constant 0 : i32
    %c0_i32_0 = arith.constant 0 : i32
    %c0_i32_1 = arith.constant 0 : i32
    return %arg0, %c0_i32, %c0_i32_0 : i32, i32, i32
  }
  func.func @transform_7(%arg0: i32) -> (i32, i32) {
    %c0_i32 = arith.constant 0 : i32
    %c0_i32_0 = arith.constant 0 : i32
    %c0_i32_1 = arith.constant 0 : i32
    return %c0_i32, %c0_i32_0 : i32, i32
  }
}

module attributes {stable_mosaic.version = 11 : i64} {
  func.func @_gru_chunk_kernel(%arg0: i32, %arg1: memref<8x8x128xbf16, #tpu.memory_space<vmem>>, %arg2: memref<8x128xf32, #tpu.memory_space<vmem>>, %arg3: memref<128x384xbf16, #tpu.memory_space<vmem>>, %arg4: memref<128x384xbf16, #tpu.memory_space<vmem>>, %arg5: memref<1x384xf32, #tpu.memory_space<vmem>>, %arg6: memref<1x128xf32, #tpu.memory_space<vmem>>, %arg7: memref<8x128xf32, #tpu.memory_space<vmem>>) attributes {dimension_semantics = [#tpu.dimension_semantics<arbitrary>], iteration_bounds = array<i64: 1>, scalar_prefetch = 0 : i64, scratch_operands = 0 : i64, tpu.core_type = #tpu.core_type<tc>, window_params = [{transform_indices = @transform_0, window_bounds = array<i64: 8, 8, 128>}, {pipeline_mode = #tpu.pipeline_mode<synchronous>, transform_indices = @transform_1, window_bounds = array<i64: 8, 128>}, {pipeline_mode = #tpu.pipeline_mode<synchronous>, transform_indices = @transform_2, window_bounds = array<i64: 128, 384>}, {pipeline_mode = #tpu.pipeline_mode<synchronous>, transform_indices = @transform_3, window_bounds = array<i64: 128, 384>}, {pipeline_mode = #tpu.pipeline_mode<synchronous>, transform_indices = @transform_4, window_bounds = array<i64: 1, 384>}, {pipeline_mode = #tpu.pipeline_mode<synchronous>, transform_indices = @transform_5, window_bounds = array<i64: 1, 128>}, {pipeline_mode = #tpu.pipeline_mode<synchronous>, transform_indices = @transform_6, window_bounds = array<i64: 8, 128>}]} {
    %c0_i32 = arith.constant 0 : i32
    %0 = arith.cmpi eq, %arg0, %c0_i32 : i32
    %1 = arith.extui %0 : i1 to i32
    %c0_i32_0 = arith.constant 0 : i32
    %2 = arith.cmpi ne, %1, %c0_i32_0 : i32
    scf.if %2 {
      %c0_84 = arith.constant 0 : index
      %c0_85 = arith.constant 0 : index
      %317 = vector.load %arg2[%c0_84, %c0_85] : memref<8x128xf32, #tpu.memory_space<vmem>>, vector<8x128xf32>
      %c0_86 = arith.constant 0 : index
      %c0_87 = arith.constant 0 : index
      %318 = vector.load %arg7[%c0_86, %c0_87] : memref<8x128xf32, #tpu.memory_space<vmem>>, vector<8x128xf32>
      tpu.vector_store %arg7[%c0_86, %c0_87], %317 {strides = array<i32>} : memref<8x128xf32, #tpu.memory_space<vmem>>, vector<8x128xf32>,
    } else {
    }
    %c0 = arith.constant 0 : index
    %c0_1 = arith.constant 0 : index
    %3 = vector.load %arg3[%c0, %c0_1] : memref<128x384xbf16, #tpu.memory_space<vmem>>, vector<128x384xbf16>
    %c0_2 = arith.constant 0 : index
    %c0_3 = arith.constant 0 : index
    %4 = vector.load %arg4[%c0_2, %c0_3] : memref<128x384xbf16, #tpu.memory_space<vmem>>, vector<128x384xbf16>
    %c0_4 = arith.constant 0 : index
    %c0_5 = arith.constant 0 : index
    %5 = vector.load %arg5[%c0_4, %c0_5] : memref<1x384xf32, #tpu.memory_space<vmem>>, vector<1x384xf32>
    %6 = vector.shape_cast %5 : vector<1x384xf32> to vector<1x384xf32>
    %7 = vector.broadcast %6 : vector<1x384xf32> to vector<8x384xf32>
    %c0_6 = arith.constant 0 : index
    %c0_7 = arith.constant 0 : index
    %8 = vector.load %arg6[%c0_6, %c0_7] : memref<1x128xf32, #tpu.memory_space<vmem>>, vector<1x128xf32>
    %9 = vector.shape_cast %8 : vector<1x128xf32> to vector<1x128xf32>
    %10 = vector.broadcast %9 : vector<1x128xf32> to vector<8x128xf32>
    %c0_8 = arith.constant 0 : index
    %c0_9 = arith.constant 0 : index
    %11 = vector.load %arg7[%c0_8, %c0_9] : memref<8x128xf32, #tpu.memory_space<vmem>>, vector<8x128xf32>
    %c0_i32_10 = arith.constant 0 : i32
    %12 = arith.index_cast %c0_i32_10 : i32 to index
    %c0_11 = arith.constant 0 : index
    %c0_12 = arith.constant 0 : index
    %13 = vector.load %arg1[%12, %c0_11, %c0_12] : memref<8x8x128xbf16, #tpu.memory_space<vmem>>, vector<1x8x128xbf16>
    %14 = vector.shape_cast %13 : vector<1x8x128xbf16> to vector<8x128xbf16>
    %cst = arith.constant dense<0.000000e+00> : vector<8x384xf32>
    %15 = tpu.matmul %14, %3, %cst {dimension_numbers = #tpu.dot_dimension_numbers<[1], [0], [0], [1], [0, 0, 1, 1], [], []>} : vector<8x128xbf16>, vector<128x384xbf16>, vector<8x384xf32> -> vector<8x384xf32>
    %16 = arith.addf %15, %7 : vector<8x384xf32>
    %17 = arith.truncf %11 : vector<8x128xf32> to vector<8x128xbf16>
    %cst_13 = arith.constant dense<0.000000e+00> : vector<8x384xf32>
    %18 = tpu.matmul %17, %4, %cst_13 {dimension_numbers = #tpu.dot_dimension_numbers<[1], [0], [0], [1], [0, 0, 1, 1], [], []>} : vector<8x128xbf16>, vector<128x384xbf16>, vector<8x384xf32> -> vector<8x384xf32>
    %19 = vector.extract_strided_slice %16 {offsets = [0, 0], sizes = [8, 128], strides = [1, 1]} : vector<8x384xf32> to vector<8x128xf32>
    %20 = vector.extract_strided_slice %18 {offsets = [0, 0], sizes = [8, 128], strides = [1, 1]} : vector<8x384xf32> to vector<8x128xf32>
    %21 = arith.addf %19, %20 : vector<8x128xf32>
    %22 = arith.negf %21 : vector<8x128xf32>
    %23 = math.exp %22 : vector<8x128xf32>
    %cst_14 = arith.constant 1.000000e+00 : f32
    %24 = vector.broadcast %cst_14 : f32 to vector<8x128xf32>
    %25 = arith.addf %24, %23 : vector<8x128xf32>
    %26 = arith.divf %24, %25 : vector<8x128xf32>
    %27 = vector.extract_strided_slice %16 {offsets = [0, 128], sizes = [8, 128], strides = [1, 1]} : vector<8x384xf32> to vector<8x128xf32>
    %28 = vector.extract_strided_slice %18 {offsets = [0, 128], sizes = [8, 128], strides = [1, 1]} : vector<8x384xf32> to vector<8x128xf32>
    %29 = arith.addf %27, %28 : vector<8x128xf32>
    %30 = arith.negf %29 : vector<8x128xf32>
    %31 = math.exp %30 : vector<8x128xf32>
    %cst_15 = arith.constant 1.000000e+00 : f32
    %32 = vector.broadcast %cst_15 : f32 to vector<8x128xf32>
    %33 = arith.addf %32, %31 : vector<8x128xf32>
    %34 = arith.divf %32, %33 : vector<8x128xf32>
    %35 = vector.extract_strided_slice %16 {offsets = [0, 256], sizes = [8, 128], strides = [1, 1]} : vector<8x384xf32> to vector<8x128xf32>
    %36 = vector.extract_strided_slice %18 {offsets = [0, 256], sizes = [8, 128], strides = [1, 1]} : vector<8x384xf32> to vector<8x128xf32>
    %37 = arith.addf %36, %10 : vector<8x128xf32>
    %38 = arith.mulf %26, %37 : vector<8x128xf32>
    %39 = arith.addf %35, %38 : vector<8x128xf32>
    %40 = math.tanh %39 : vector<8x128xf32>
    %cst_16 = arith.constant 1.000000e+00 : f32
    %41 = vector.broadcast %cst_16 : f32 to vector<8x128xf32>
    %42 = arith.subf %41, %34 : vector<8x128xf32>
    %43 = arith.mulf %42, %40 : vector<8x128xf32>
    %44 = arith.mulf %34, %11 : vector<8x128xf32>
    %45 = arith.addf %43, %44 : vector<8x128xf32>
    %c8_i32 = arith.constant 8 : i32
    %46 = arith.muli %arg0, %c8_i32 : i32
    %47 = arith.addi %46, %c0_i32_10 : i32
    %c8_i32_17 = arith.constant 8 : i32
    %48 = arith.cmpi slt, %47, %c8_i32_17 : i32
    %49 = arith.select %48, %45, %11 : vector<8x128xf32>
    %c1_i32 = arith.constant 1 : i32
    %50 = arith.index_cast %c1_i32 : i32 to index
    %c0_18 = arith.constant 0 : index
    %c0_19 = arith.constant 0 : index
    %51 = vector.load %arg1[%50, %c0_18, %c0_19] : memref<8x8x128xbf16, #tpu.memory_space<vmem>>, vector<1x8x128xbf16>
    %52 = vector.shape_cast %51 : vector<1x8x128xbf16> to vector<8x128xbf16>
    %cst_20 = arith.constant dense<0.000000e+00> : vector<8x384xf32>
    %53 = tpu.matmul %52, %3, %cst_20 {dimension_numbers = #tpu.dot_dimension_numbers<[1], [0], [0], [1], [0, 0, 1, 1], [], []>} : vector<8x128xbf16>, vector<128x384xbf16>, vector<8x384xf32> -> vector<8x384xf32>
    %54 = arith.addf %53, %7 : vector<8x384xf32>
    %55 = arith.truncf %49 : vector<8x128xf32> to vector<8x128xbf16>
    %cst_21 = arith.constant dense<0.000000e+00> : vector<8x384xf32>
    %56 = tpu.matmul %55, %4, %cst_21 {dimension_numbers = #tpu.dot_dimension_numbers<[1], [0], [0], [1], [0, 0, 1, 1], [], []>} : vector<8x128xbf16>, vector<128x384xbf16>, vector<8x384xf32> -> vector<8x384xf32>
    %57 = vector.extract_strided_slice %54 {offsets = [0, 0], sizes = [8, 128], strides = [1, 1]} : vector<8x384xf32> to vector<8x128xf32>
    %58 = vector.extract_strided_slice %56 {offsets = [0, 0], sizes = [8, 128], strides = [1, 1]} : vector<8x384xf32> to vector<8x128xf32>
    %59 = arith.addf %57, %58 : vector<8x128xf32>
    %60 = arith.negf %59 : vector<8x128xf32>
    %61 = math.exp %60 : vector<8x128xf32>
    %cst_22 = arith.constant 1.000000e+00 : f32
    %62 = vector.broadcast %cst_22 : f32 to vector<8x128xf32>
    %63 = arith.addf %62, %61 : vector<8x128xf32>
    %64 = arith.divf %62, %63 : vector<8x128xf32>
    %65 = vector.extract_strided_slice %54 {offsets = [0, 128], sizes = [8, 128], strides = [1, 1]} : vector<8x384xf32> to vector<8x128xf32>
    %66 = vector.extract_strided_slice %56 {offsets = [0, 128], sizes = [8, 128], strides = [1, 1]} : vector<8x384xf32> to vector<8x128xf32>
    %67 = arith.addf %65, %66 : vector<8x128xf32>
    %68 = arith.negf %67 : vector<8x128xf32>
    %69 = math.exp %68 : vector<8x128xf32>
    %cst_23 = arith.constant 1.000000e+00 : f32
    %70 = vector.broadcast %cst_23 : f32 to vector<8x128xf32>
    %71 = arith.addf %70, %69 : vector<8x128xf32>
    %72 = arith.divf %70, %71 : vector<8x128xf32>
    %73 = vector.extract_strided_slice %54 {offsets = [0, 256], sizes = [8, 128], strides = [1, 1]} : vector<8x384xf32> to vector<8x128xf32>
    %74 = vector.extract_strided_slice %56 {offsets = [0, 256], sizes = [8, 128], strides = [1, 1]} : vector<8x384xf32> to vector<8x128xf32>
    %75 = arith.addf %74, %10 : vector<8x128xf32>
    %76 = arith.mulf %64, %75 : vector<8x128xf32>
    %77 = arith.addf %73, %76 : vector<8x128xf32>
    %78 = math.tanh %77 : vector<8x128xf32>
    %cst_24 = arith.constant 1.000000e+00 : f32
    %79 = vector.broadcast %cst_24 : f32 to vector<8x128xf32>
    %80 = arith.subf %79, %72 : vector<8x128xf32>
    %81 = arith.mulf %80, %78 : vector<8x128xf32>
    %82 = arith.mulf %72, %49 : vector<8x128xf32>
    %83 = arith.addf %81, %82 : vector<8x128xf32>
    %c8_i32_25 = arith.constant 8 : i32
    %84 = arith.muli %arg0, %c8_i32_25 : i32
    %85 = arith.addi %84, %c1_i32 : i32
    %c8_i32_26 = arith.constant 8 : i32
    %86 = arith.cmpi slt, %85, %c8_i32_26 : i32
    %87 = arith.select %86, %83, %49 : vector<8x128xf32>
    %c2_i32 = arith.constant 2 : i32
    %88 = arith.index_cast %c2_i32 : i32 to index
    %c0_27 = arith.constant 0 : index
    %c0_28 = arith.constant 0 : index
    %89 = vector.load %arg1[%88, %c0_27, %c0_28] : memref<8x8x128xbf16, #tpu.memory_space<vmem>>, vector<1x8x128xbf16>
    %90 = vector.shape_cast %89 : vector<1x8x128xbf16> to vector<8x128xbf16>
    %cst_29 = arith.constant dense<0.000000e+00> : vector<8x384xf32>
    %91 = tpu.matmul %90, %3, %cst_29 {dimension_numbers = #tpu.dot_dimension_numbers<[1], [0], [0], [1], [0, 0, 1, 1], [], []>} : vector<8x128xbf16>, vector<128x384xbf16>, vector<8x384xf32> -> vector<8x384xf32>
    %92 = arith.addf %91, %7 : vector<8x384xf32>
    %93 = arith.truncf %87 : vector<8x128xf32> to vector<8x128xbf16>
    %cst_30 = arith.constant dense<0.000000e+00> : vector<8x384xf32>
    %94 = tpu.matmul %93, %4, %cst_30 {dimension_numbers = #tpu.dot_dimension_numbers<[1], [0], [0], [1], [0, 0, 1, 1], [], []>} : vector<8x128xbf16>, vector<128x384xbf16>, vector<8x384xf32> -> vector<8x384xf32>
    %95 = vector.extract_strided_slice %92 {offsets = [0, 0], sizes = [8, 128], strides = [1, 1]} : vector<8x384xf32> to vector<8x128xf32>
    %96 = vector.extract_strided_slice %94 {offsets = [0, 0], sizes = [8, 128], strides = [1, 1]} : vector<8x384xf32> to vector<8x128xf32>
    %97 = arith.addf %95, %96 : vector<8x128xf32>
    %98 = arith.negf %97 : vector<8x128xf32>
    %99 = math.exp %98 : vector<8x128xf32>
    %cst_31 = arith.constant 1.000000e+00 : f32
    %100 = vector.broadcast %cst_31 : f32 to vector<8x128xf32>
    %101 = arith.addf %100, %99 : vector<8x128xf32>
    %102 = arith.divf %100, %101 : vector<8x128xf32>
    %103 = vector.extract_strided_slice %92 {offsets = [0, 128], sizes = [8, 128], strides = [1, 1]} : vector<8x384xf32> to vector<8x128xf32>
    %104 = vector.extract_strided_slice %94 {offsets = [0, 128], sizes = [8, 128], strides = [1, 1]} : vector<8x384xf32> to vector<8x128xf32>
    %105 = arith.addf %103, %104 : vector<8x128xf32>
    %106 = arith.negf %105 : vector<8x128xf32>
    %107 = math.exp %106 : vector<8x128xf32>
    %cst_32 = arith.constant 1.000000e+00 : f32
    %108 = vector.broadcast %cst_32 : f32 to vector<8x128xf32>
    %109 = arith.addf %108, %107 : vector<8x128xf32>
    %110 = arith.divf %108, %109 : vector<8x128xf32>
    %111 = vector.extract_strided_slice %92 {offsets = [0, 256], sizes = [8, 128], strides = [1, 1]} : vector<8x384xf32> to vector<8x128xf32>
    %112 = vector.extract_strided_slice %94 {offsets = [0, 256], sizes = [8, 128], strides = [1, 1]} : vector<8x384xf32> to vector<8x128xf32>
    %113 = arith.addf %112, %10 : vector<8x128xf32>
    %114 = arith.mulf %102, %113 : vector<8x128xf32>
    %115 = arith.addf %111, %114 : vector<8x128xf32>
    %116 = math.tanh %115 : vector<8x128xf32>
    %cst_33 = arith.constant 1.000000e+00 : f32
    %117 = vector.broadcast %cst_33 : f32 to vector<8x128xf32>
    %118 = arith.subf %117, %110 : vector<8x128xf32>
    %119 = arith.mulf %118, %116 : vector<8x128xf32>
    %120 = arith.mulf %110, %87 : vector<8x128xf32>
    %121 = arith.addf %119, %120 : vector<8x128xf32>
    %c8_i32_34 = arith.constant 8 : i32
    %122 = arith.muli %arg0, %c8_i32_34 : i32
    %123 = arith.addi %122, %c2_i32 : i32
    %c8_i32_35 = arith.constant 8 : i32
    %124 = arith.cmpi slt, %123, %c8_i32_35 : i32
    %125 = arith.select %124, %121, %87 : vector<8x128xf32>
    %c3_i32 = arith.constant 3 : i32
    %126 = arith.index_cast %c3_i32 : i32 to index
    %c0_36 = arith.constant 0 : index
    %c0_37 = arith.constant 0 : index
    %127 = vector.load %arg1[%126, %c0_36, %c0_37] : memref<8x8x128xbf16, #tpu.memory_space<vmem>>, vector<1x8x128xbf16>
    %128 = vector.shape_cast %127 : vector<1x8x128xbf16> to vector<8x128xbf16>
    %cst_38 = arith.constant dense<0.000000e+00> : vector<8x384xf32>
    %129 = tpu.matmul %128, %3, %cst_38 {dimension_numbers = #tpu.dot_dimension_numbers<[1], [0], [0], [1], [0, 0, 1, 1], [], []>} : vector<8x128xbf16>, vector<128x384xbf16>, vector<8x384xf32> -> vector<8x384xf32>
    %130 = arith.addf %129, %7 : vector<8x384xf32>
    %131 = arith.truncf %125 : vector<8x128xf32> to vector<8x128xbf16>
    %cst_39 = arith.constant dense<0.000000e+00> : vector<8x384xf32>
    %132 = tpu.matmul %131, %4, %cst_39 {dimension_numbers = #tpu.dot_dimension_numbers<[1], [0], [0], [1], [0, 0, 1, 1], [], []>} : vector<8x128xbf16>, vector<128x384xbf16>, vector<8x384xf32> -> vector<8x384xf32>
    %133 = vector.extract_strided_slice %130 {offsets = [0, 0], sizes = [8, 128], strides = [1, 1]} : vector<8x384xf32> to vector<8x128xf32>
    %134 = vector.extract_strided_slice %132 {offsets = [0, 0], sizes = [8, 128], strides = [1, 1]} : vector<8x384xf32> to vector<8x128xf32>
    %135 = arith.addf %133, %134 : vector<8x128xf32>
    %136 = arith.negf %135 : vector<8x128xf32>
    %137 = math.exp %136 : vector<8x128xf32>
    %cst_40 = arith.constant 1.000000e+00 : f32
    %138 = vector.broadcast %cst_40 : f32 to vector<8x128xf32>
    %139 = arith.addf %138, %137 : vector<8x128xf32>
    %140 = arith.divf %138, %139 : vector<8x128xf32>
    %141 = vector.extract_strided_slice %130 {offsets = [0, 128], sizes = [8, 128], strides = [1, 1]} : vector<8x384xf32> to vector<8x128xf32>
    %142 = vector.extract_strided_slice %132 {offsets = [0, 128], sizes = [8, 128], strides = [1, 1]} : vector<8x384xf32> to vector<8x128xf32>
    %143 = arith.addf %141, %142 : vector<8x128xf32>
    %144 = arith.negf %143 : vector<8x128xf32>
    %145 = math.exp %144 : vector<8x128xf32>
    %cst_41 = arith.constant 1.000000e+00 : f32
    %146 = vector.broadcast %cst_41 : f32 to vector<8x128xf32>
    %147 = arith.addf %146, %145 : vector<8x128xf32>
    %148 = arith.divf %146, %147 : vector<8x128xf32>
    %149 = vector.extract_strided_slice %130 {offsets = [0, 256], sizes = [8, 128], strides = [1, 1]} : vector<8x384xf32> to vector<8x128xf32>
    %150 = vector.extract_strided_slice %132 {offsets = [0, 256], sizes = [8, 128], strides = [1, 1]} : vector<8x384xf32> to vector<8x128xf32>
    %151 = arith.addf %150, %10 : vector<8x128xf32>
    %152 = arith.mulf %140, %151 : vector<8x128xf32>
    %153 = arith.addf %149, %152 : vector<8x128xf32>
    %154 = math.tanh %153 : vector<8x128xf32>
    %cst_42 = arith.constant 1.000000e+00 : f32
    %155 = vector.broadcast %cst_42 : f32 to vector<8x128xf32>
    %156 = arith.subf %155, %148 : vector<8x128xf32>
    %157 = arith.mulf %156, %154 : vector<8x128xf32>
    %158 = arith.mulf %148, %125 : vector<8x128xf32>
    %159 = arith.addf %157, %158 : vector<8x128xf32>
    %c8_i32_43 = arith.constant 8 : i32
    %160 = arith.muli %arg0, %c8_i32_43 : i32
    %161 = arith.addi %160, %c3_i32 : i32
    %c8_i32_44 = arith.constant 8 : i32
    %162 = arith.cmpi slt, %161, %c8_i32_44 : i32
    %163 = arith.select %162, %159, %125 : vector<8x128xf32>
    %c4_i32 = arith.constant 4 : i32
    %164 = arith.index_cast %c4_i32 : i32 to index
    %c0_45 = arith.constant 0 : index
    %c0_46 = arith.constant 0 : index
    %165 = vector.load %arg1[%164, %c0_45, %c0_46] : memref<8x8x128xbf16, #tpu.memory_space<vmem>>, vector<1x8x128xbf16>
    %166 = vector.shape_cast %165 : vector<1x8x128xbf16> to vector<8x128xbf16>
    %cst_47 = arith.constant dense<0.000000e+00> : vector<8x384xf32>
    %167 = tpu.matmul %166, %3, %cst_47 {dimension_numbers = #tpu.dot_dimension_numbers<[1], [0], [0], [1], [0, 0, 1, 1], [], []>} : vector<8x128xbf16>, vector<128x384xbf16>, vector<8x384xf32> -> vector<8x384xf32>
    %168 = arith.addf %167, %7 : vector<8x384xf32>
    %169 = arith.truncf %163 : vector<8x128xf32> to vector<8x128xbf16>
    %cst_48 = arith.constant dense<0.000000e+00> : vector<8x384xf32>
    %170 = tpu.matmul %169, %4, %cst_48 {dimension_numbers = #tpu.dot_dimension_numbers<[1], [0], [0], [1], [0, 0, 1, 1], [], []>} : vector<8x128xbf16>, vector<128x384xbf16>, vector<8x384xf32> -> vector<8x384xf32>
    %171 = vector.extract_strided_slice %168 {offsets = [0, 0], sizes = [8, 128], strides = [1, 1]} : vector<8x384xf32> to vector<8x128xf32>
    %172 = vector.extract_strided_slice %170 {offsets = [0, 0], sizes = [8, 128], strides = [1, 1]} : vector<8x384xf32> to vector<8x128xf32>
    %173 = arith.addf %171, %172 : vector<8x128xf32>
    %174 = arith.negf %173 : vector<8x128xf32>
    %175 = math.exp %174 : vector<8x128xf32>
    %cst_49 = arith.constant 1.000000e+00 : f32
    %176 = vector.broadcast %cst_49 : f32 to vector<8x128xf32>
    %177 = arith.addf %176, %175 : vector<8x128xf32>
    %178 = arith.divf %176, %177 : vector<8x128xf32>
    %179 = vector.extract_strided_slice %168 {offsets = [0, 128], sizes = [8, 128], strides = [1, 1]} : vector<8x384xf32> to vector<8x128xf32>
    %180 = vector.extract_strided_slice %170 {offsets = [0, 128], sizes = [8, 128], strides = [1, 1]} : vector<8x384xf32> to vector<8x128xf32>
    %181 = arith.addf %179, %180 : vector<8x128xf32>
    %182 = arith.negf %181 : vector<8x128xf32>
    %183 = math.exp %182 : vector<8x128xf32>
    %cst_50 = arith.constant 1.000000e+00 : f32
    %184 = vector.broadcast %cst_50 : f32 to vector<8x128xf32>
    %185 = arith.addf %184, %183 : vector<8x128xf32>
    %186 = arith.divf %184, %185 : vector<8x128xf32>
    %187 = vector.extract_strided_slice %168 {offsets = [0, 256], sizes = [8, 128], strides = [1, 1]} : vector<8x384xf32> to vector<8x128xf32>
    %188 = vector.extract_strided_slice %170 {offsets = [0, 256], sizes = [8, 128], strides = [1, 1]} : vector<8x384xf32> to vector<8x128xf32>
    %189 = arith.addf %188, %10 : vector<8x128xf32>
    %190 = arith.mulf %178, %189 : vector<8x128xf32>
    %191 = arith.addf %187, %190 : vector<8x128xf32>
    %192 = math.tanh %191 : vector<8x128xf32>
    %cst_51 = arith.constant 1.000000e+00 : f32
    %193 = vector.broadcast %cst_51 : f32 to vector<8x128xf32>
    %194 = arith.subf %193, %186 : vector<8x128xf32>
    %195 = arith.mulf %194, %192 : vector<8x128xf32>
    %196 = arith.mulf %186, %163 : vector<8x128xf32>
    %197 = arith.addf %195, %196 : vector<8x128xf32>
    %c8_i32_52 = arith.constant 8 : i32
    %198 = arith.muli %arg0, %c8_i32_52 : i32
    %199 = arith.addi %198, %c4_i32 : i32
    %c8_i32_53 = arith.constant 8 : i32
    %200 = arith.cmpi slt, %199, %c8_i32_53 : i32
    %201 = arith.select %200, %197, %163 : vector<8x128xf32>
    %c5_i32 = arith.constant 5 : i32
    %202 = arith.index_cast %c5_i32 : i32 to index
    %c0_54 = arith.constant 0 : index
    %c0_55 = arith.constant 0 : index
    %203 = vector.load %arg1[%202, %c0_54, %c0_55] : memref<8x8x128xbf16, #tpu.memory_space<vmem>>, vector<1x8x128xbf16>
    %204 = vector.shape_cast %203 : vector<1x8x128xbf16> to vector<8x128xbf16>
    %cst_56 = arith.constant dense<0.000000e+00> : vector<8x384xf32>
    %205 = tpu.matmul %204, %3, %cst_56 {dimension_numbers = #tpu.dot_dimension_numbers<[1], [0], [0], [1], [0, 0, 1, 1], [], []>} : vector<8x128xbf16>, vector<128x384xbf16>, vector<8x384xf32> -> vector<8x384xf32>
    %206 = arith.addf %205, %7 : vector<8x384xf32>
    %207 = arith.truncf %201 : vector<8x128xf32> to vector<8x128xbf16>
    %cst_57 = arith.constant dense<0.000000e+00> : vector<8x384xf32>
    %208 = tpu.matmul %207, %4, %cst_57 {dimension_numbers = #tpu.dot_dimension_numbers<[1], [0], [0], [1], [0, 0, 1, 1], [], []>} : vector<8x128xbf16>, vector<128x384xbf16>, vector<8x384xf32> -> vector<8x384xf32>
    %209 = vector.extract_strided_slice %206 {offsets = [0, 0], sizes = [8, 128], strides = [1, 1]} : vector<8x384xf32> to vector<8x128xf32>
    %210 = vector.extract_strided_slice %208 {offsets = [0, 0], sizes = [8, 128], strides = [1, 1]} : vector<8x384xf32> to vector<8x128xf32>
    %211 = arith.addf %209, %210 : vector<8x128xf32>
    %212 = arith.negf %211 : vector<8x128xf32>
    %213 = math.exp %212 : vector<8x128xf32>
    %cst_58 = arith.constant 1.000000e+00 : f32
    %214 = vector.broadcast %cst_58 : f32 to vector<8x128xf32>
    %215 = arith.addf %214, %213 : vector<8x128xf32>
    %216 = arith.divf %214, %215 : vector<8x128xf32>
    %217 = vector.extract_strided_slice %206 {offsets = [0, 128], sizes = [8, 128], strides = [1, 1]} : vector<8x384xf32> to vector<8x128xf32>
    %218 = vector.extract_strided_slice %208 {offsets = [0, 128], sizes = [8, 128], strides = [1, 1]} : vector<8x384xf32> to vector<8x128xf32>
    %219 = arith.addf %217, %218 : vector<8x128xf32>
    %220 = arith.negf %219 : vector<8x128xf32>
    %221 = math.exp %220 : vector<8x128xf32>
    %cst_59 = arith.constant 1.000000e+00 : f32
    %222 = vector.broadcast %cst_59 : f32 to vector<8x128xf32>
    %223 = arith.addf %222, %221 : vector<8x128xf32>
    %224 = arith.divf %222, %223 : vector<8x128xf32>
    %225 = vector.extract_strided_slice %206 {offsets = [0, 256], sizes = [8, 128], strides = [1, 1]} : vector<8x384xf32> to vector<8x128xf32>
    %226 = vector.extract_strided_slice %208 {offsets = [0, 256], sizes = [8, 128], strides = [1, 1]} : vector<8x384xf32> to vector<8x128xf32>
    %227 = arith.addf %226, %10 : vector<8x128xf32>
    %228 = arith.mulf %216, %227 : vector<8x128xf32>
    %229 = arith.addf %225, %228 : vector<8x128xf32>
    %230 = math.tanh %229 : vector<8x128xf32>
    %cst_60 = arith.constant 1.000000e+00 : f32
    %231 = vector.broadcast %cst_60 : f32 to vector<8x128xf32>
    %232 = arith.subf %231, %224 : vector<8x128xf32>
    %233 = arith.mulf %232, %230 : vector<8x128xf32>
    %234 = arith.mulf %224, %201 : vector<8x128xf32>
    %235 = arith.addf %233, %234 : vector<8x128xf32>
    %c8_i32_61 = arith.constant 8 : i32
    %236 = arith.muli %arg0, %c8_i32_61 : i32
    %237 = arith.addi %236, %c5_i32 : i32
    %c8_i32_62 = arith.constant 8 : i32
    %238 = arith.cmpi slt, %237, %c8_i32_62 : i32
    %239 = arith.select %238, %235, %201 : vector<8x128xf32>
    %c6_i32 = arith.constant 6 : i32
    %240 = arith.index_cast %c6_i32 : i32 to index
    %c0_63 = arith.constant 0 : index
    %c0_64 = arith.constant 0 : index
    %241 = vector.load %arg1[%240, %c0_63, %c0_64] : memref<8x8x128xbf16, #tpu.memory_space<vmem>>, vector<1x8x128xbf16>
    %242 = vector.shape_cast %241 : vector<1x8x128xbf16> to vector<8x128xbf16>
    %cst_65 = arith.constant dense<0.000000e+00> : vector<8x384xf32>
    %243 = tpu.matmul %242, %3, %cst_65 {dimension_numbers = #tpu.dot_dimension_numbers<[1], [0], [0], [1], [0, 0, 1, 1], [], []>} : vector<8x128xbf16>, vector<128x384xbf16>, vector<8x384xf32> -> vector<8x384xf32>
    %244 = arith.addf %243, %7 : vector<8x384xf32>
    %245 = arith.truncf %239 : vector<8x128xf32> to vector<8x128xbf16>
    %cst_66 = arith.constant dense<0.000000e+00> : vector<8x384xf32>
    %246 = tpu.matmul %245, %4, %cst_66 {dimension_numbers = #tpu.dot_dimension_numbers<[1], [0], [0], [1], [0, 0, 1, 1], [], []>} : vector<8x128xbf16>, vector<128x384xbf16>, vector<8x384xf32> -> vector<8x384xf32>
    %247 = vector.extract_strided_slice %244 {offsets = [0, 0], sizes = [8, 128], strides = [1, 1]} : vector<8x384xf32> to vector<8x128xf32>
    %248 = vector.extract_strided_slice %246 {offsets = [0, 0], sizes = [8, 128], strides = [1, 1]} : vector<8x384xf32> to vector<8x128xf32>
    %249 = arith.addf %247, %248 : vector<8x128xf32>
    %250 = arith.negf %249 : vector<8x128xf32>
    %251 = math.exp %250 : vector<8x128xf32>
    %cst_67 = arith.constant 1.000000e+00 : f32
    %252 = vector.broadcast %cst_67 : f32 to vector<8x128xf32>
    %253 = arith.addf %252, %251 : vector<8x128xf32>
    %254 = arith.divf %252, %253 : vector<8x128xf32>
    %255 = vector.extract_strided_slice %244 {offsets = [0, 128], sizes = [8, 128], strides = [1, 1]} : vector<8x384xf32> to vector<8x128xf32>
    %256 = vector.extract_strided_slice %246 {offsets = [0, 128], sizes = [8, 128], strides = [1, 1]} : vector<8x384xf32> to vector<8x128xf32>
    %257 = arith.addf %255, %256 : vector<8x128xf32>
    %258 = arith.negf %257 : vector<8x128xf32>
    %259 = math.exp %258 : vector<8x128xf32>
    %cst_68 = arith.constant 1.000000e+00 : f32
    %260 = vector.broadcast %cst_68 : f32 to vector<8x128xf32>
    %261 = arith.addf %260, %259 : vector<8x128xf32>
    %262 = arith.divf %260, %261 : vector<8x128xf32>
    %263 = vector.extract_strided_slice %244 {offsets = [0, 256], sizes = [8, 128], strides = [1, 1]} : vector<8x384xf32> to vector<8x128xf32>
    %264 = vector.extract_strided_slice %246 {offsets = [0, 256], sizes = [8, 128], strides = [1, 1]} : vector<8x384xf32> to vector<8x128xf32>
    %265 = arith.addf %264, %10 : vector<8x128xf32>
    %266 = arith.mulf %254, %265 : vector<8x128xf32>
    %267 = arith.addf %263, %266 : vector<8x128xf32>
    %268 = math.tanh %267 : vector<8x128xf32>
    %cst_69 = arith.constant 1.000000e+00 : f32
    %269 = vector.broadcast %cst_69 : f32 to vector<8x128xf32>
    %270 = arith.subf %269, %262 : vector<8x128xf32>
    %271 = arith.mulf %270, %268 : vector<8x128xf32>
    %272 = arith.mulf %262, %239 : vector<8x128xf32>
    %273 = arith.addf %271, %272 : vector<8x128xf32>
    %c8_i32_70 = arith.constant 8 : i32
    %274 = arith.muli %arg0, %c8_i32_70 : i32
    %275 = arith.addi %274, %c6_i32 : i32
    %c8_i32_71 = arith.constant 8 : i32
    %276 = arith.cmpi slt, %275, %c8_i32_71 : i32
    %277 = arith.select %276, %273, %239 : vector<8x128xf32>
    %c7_i32 = arith.constant 7 : i32
    %278 = arith.index_cast %c7_i32 : i32 to index
    %c0_72 = arith.constant 0 : index
    %c0_73 = arith.constant 0 : index
    %279 = vector.load %arg1[%278, %c0_72, %c0_73] : memref<8x8x128xbf16, #tpu.memory_space<vmem>>, vector<1x8x128xbf16>
    %280 = vector.shape_cast %279 : vector<1x8x128xbf16> to vector<8x128xbf16>
    %cst_74 = arith.constant dense<0.000000e+00> : vector<8x384xf32>
    %281 = tpu.matmul %280, %3, %cst_74 {dimension_numbers = #tpu.dot_dimension_numbers<[1], [0], [0], [1], [0, 0, 1, 1], [], []>} : vector<8x128xbf16>, vector<128x384xbf16>, vector<8x384xf32> -> vector<8x384xf32>
    %282 = arith.addf %281, %7 : vector<8x384xf32>
    %283 = arith.truncf %277 : vector<8x128xf32> to vector<8x128xbf16>
    %cst_75 = arith.constant dense<0.000000e+00> : vector<8x384xf32>
    %284 = tpu.matmul %283, %4, %cst_75 {dimension_numbers = #tpu.dot_dimension_numbers<[1], [0], [0], [1], [0, 0, 1, 1], [], []>} : vector<8x128xbf16>, vector<128x384xbf16>, vector<8x384xf32> -> vector<8x384xf32>
    %285 = vector.extract_strided_slice %282 {offsets = [0, 0], sizes = [8, 128], strides = [1, 1]} : vector<8x384xf32> to vector<8x128xf32>
    %286 = vector.extract_strided_slice %284 {offsets = [0, 0], sizes = [8, 128], strides = [1, 1]} : vector<8x384xf32> to vector<8x128xf32>
    %287 = arith.addf %285, %286 : vector<8x128xf32>
    %288 = arith.negf %287 : vector<8x128xf32>
    %289 = math.exp %288 : vector<8x128xf32>
    %cst_76 = arith.constant 1.000000e+00 : f32
    %290 = vector.broadcast %cst_76 : f32 to vector<8x128xf32>
    %291 = arith.addf %290, %289 : vector<8x128xf32>
    %292 = arith.divf %290, %291 : vector<8x128xf32>
    %293 = vector.extract_strided_slice %282 {offsets = [0, 128], sizes = [8, 128], strides = [1, 1]} : vector<8x384xf32> to vector<8x128xf32>
    %294 = vector.extract_strided_slice %284 {offsets = [0, 128], sizes = [8, 128], strides = [1, 1]} : vector<8x384xf32> to vector<8x128xf32>
    %295 = arith.addf %293, %294 : vector<8x128xf32>
    %296 = arith.negf %295 : vector<8x128xf32>
    %297 = math.exp %296 : vector<8x128xf32>
    %cst_77 = arith.constant 1.000000e+00 : f32
    %298 = vector.broadcast %cst_77 : f32 to vector<8x128xf32>
    %299 = arith.addf %298, %297 : vector<8x128xf32>
    %300 = arith.divf %298, %299 : vector<8x128xf32>
    %301 = vector.extract_strided_slice %282 {offsets = [0, 256], sizes = [8, 128], strides = [1, 1]} : vector<8x384xf32> to vector<8x128xf32>
    %302 = vector.extract_strided_slice %284 {offsets = [0, 256], sizes = [8, 128], strides = [1, 1]} : vector<8x384xf32> to vector<8x128xf32>
    %303 = arith.addf %302, %10 : vector<8x128xf32>
    %304 = arith.mulf %292, %303 : vector<8x128xf32>
    %305 = arith.addf %301, %304 : vector<8x128xf32>
    %306 = math.tanh %305 : vector<8x128xf32>
    %cst_78 = arith.constant 1.000000e+00 : f32
    %307 = vector.broadcast %cst_78 : f32 to vector<8x128xf32>
    %308 = arith.subf %307, %300 : vector<8x128xf32>
    %309 = arith.mulf %308, %306 : vector<8x128xf32>
    %310 = arith.mulf %300, %277 : vector<8x128xf32>
    %311 = arith.addf %309, %310 : vector<8x128xf32>
    %c8_i32_79 = arith.constant 8 : i32
    %312 = arith.muli %arg0, %c8_i32_79 : i32
    %313 = arith.addi %312, %c7_i32 : i32
    %c8_i32_80 = arith.constant 8 : i32
    %314 = arith.cmpi slt, %313, %c8_i32_80 : i32
    %315 = arith.select %314, %311, %277 : vector<8x128xf32>
    %c8_i32_81 = arith.constant 8 : i32
    %c0_82 = arith.constant 0 : index
    %c0_83 = arith.constant 0 : index
    %316 = vector.load %arg7[%c0_82, %c0_83] : memref<8x128xf32, #tpu.memory_space<vmem>>, vector<8x128xf32>
    tpu.vector_store %arg7[%c0_82, %c0_83], %315 {strides = array<i32>} : memref<8x128xf32, #tpu.memory_space<vmem>>, vector<8x128xf32>,
    return
  }
  func.func @transform_0(%arg0: i32) -> (i32, i32, i32) {
    %c0_i32 = arith.constant 0 : i32
    %c0_i32_0 = arith.constant 0 : i32
    %c0_i32_1 = arith.constant 0 : i32
    return %arg0, %c0_i32, %c0_i32_0 : i32, i32, i32
  }
  func.func @transform_1(%arg0: i32) -> (i32, i32) {
    %c0_i32 = arith.constant 0 : i32
    %c0_i32_0 = arith.constant 0 : i32
    %c0_i32_1 = arith.constant 0 : i32
    return %c0_i32, %c0_i32_0 : i32, i32
  }
  func.func @transform_2(%arg0: i32) -> (i32, i32) {
    %c0_i32 = arith.constant 0 : i32
    %c0_i32_0 = arith.constant 0 : i32
    %c0_i32_1 = arith.constant 0 : i32
    return %c0_i32, %c0_i32_0 : i32, i32
  }
  func.func @transform_3(%arg0: i32) -> (i32, i32) {
    %c0_i32 = arith.constant 0 : i32
    %c0_i32_0 = arith.constant 0 : i32
    %c0_i32_1 = arith.constant 0 : i32
    return %c0_i32, %c0_i32_0 : i32, i32
  }
  func.func @transform_4(%arg0: i32) -> (i32, i32) {
    %c0_i32 = arith.constant 0 : i32
    %c0_i32_0 = arith.constant 0 : i32
    %c0_i32_1 = arith.constant 0 : i32
    return %c0_i32, %c0_i32_0 : i32, i32
  }
  func.func @transform_5(%arg0: i32) -> (i32, i32) {
    %c0_i32 = arith.constant 0 : i32
    %c0_i32_0 = arith.constant 0 : i32
    %c0_i32_1 = arith.constant 0 : i32
    return %c0_i32, %c0_i32_0 : i32, i32
  }
  func.func @transform_6(%arg0: i32) -> (i32, i32) {
    %c0_i32 = arith.constant 0 : i32
    %c0_i32_0 = arith.constant 0 : i32
    %c0_i32_1 = arith.constant 0 : i32
    return %c0_i32, %c0_i32_0 : i32, i32
  }
}

</mosaic_0001>

<llo_original>
// kernel: seq2seq_forward.5
$region0: #{seq2seq_forward.5}
  #allocation0 [shape = 'u32[]', space=smem, size = 0x4, offset = 0x4, fixed_abs, tag = 'smem constant byte address 0x4 - core index']
  #allocation1 [shape = 'u32[72,128]{1,0:T(1,128)}', space=vmem, size = 0x9000, scoped, tag = 'internal scratch']
  %s0 = inlined_call_operand.vmem [shape: bf16[64,128], index: 0, kind: input, shape index: {}]
  %s1 = inlined_call_operand.vmem [shape: bf16[128,128], index: 1, kind: input, shape index: {}]
  %s2 = inlined_call_operand.vmem [shape: f32[1,128], index: 2, kind: input, shape index: {}]
  %s3 = inlined_call_operand.vmem [shape: f32[64,128], index: 3, kind: output, shape index: {}]
  %s4 = sld [smem:[#allocation0]]
  $region22: #{seq2seq_forward.5} parent=0
    _
  %s6 = ssub.s32 1, %s4
  %s7 = scalar_select 0, %s6, %s4
  // Predicated region
  $region2: #{seq2seq_forward.5} parent=0 // pred_check
    _
  $region3: #{seq2seq_forward.5} parent=0 // pred_check_branch
    %9 = sbr.rel (0) target = $region5
  $region4: #{seq2seq_forward.5} parent=0 // pred_region
    _
  $region5: #{seq2seq_forward.5} parent=0 // pred_fallthru
    _
  // Predicated region
  $region6: #{seq2seq_forward.5} parent=0 // pred_check
    _
  $region7: #{seq2seq_forward.5} parent=0 // pred_check_branch
    %11 = sbr.rel (0) target = $region9
  $region8: #{seq2seq_forward.5} parent=0 // pred_region
    _
  $region9: #{seq2seq_forward.5} parent=0 // pred_fallthru
    _
  // Predicated region
  $region10: #{seq2seq_forward.5} parent=0 // pred_check
    _
  $region11: #{seq2seq_forward.5} parent=0 // pred_check_branch
    %13 = sbr.rel (0) target = $region13
  $region12: #{seq2seq_forward.5} parent=0 // pred_region
    _
  $region13: #{seq2seq_forward.5} parent=0 // pred_fallthru
    _
  %v14 = vld [vmem:[%s0] sm:$0xf]
  %v15 = vld [vmem:[%s0 + $0x4] sm:$0xf]
  %v16 = vld [vmem:[%s0 + $0x8] sm:$0xf]
  %v17 = vld [vmem:[%s0 + $0xc] sm:$0xf]
  %v18 = vld [vmem:[%s0 + $0x10] sm:$0xf]
  %v19 = vld [vmem:[%s0 + $0x14] sm:$0xf]
  %v20 = vld [vmem:[%s0 + $0x18] sm:$0xf]
  %v21 = vld [vmem:[%s0 + $0x1c] sm:$0xf]
  %v22 = vld [vmem:[%s1] sm:$0xf]
  %v23 = vld [vmem:[%s1 + $0x4] sm:$0xf]
  %v24 = vld [vmem:[%s1 + $0x8] sm:$0xf]
  %v25 = vld [vmem:[%s1 + $0xc] sm:$0xf]
  %v26 = vld [vmem:[%s1 + $0x10] sm:$0xf]
  %v27 = vld [vmem:[%s1 + $0x14] sm:$0xf]
  %v28 = vld [vmem:[%s1 + $0x18] sm:$0xf]
  %v29 = vld [vmem:[%s1 + $0x1c] sm:$0xf]
  %v30 = vld [vmem:[%s1 + $0x20] sm:$0xf]
  %v31 = vld [vmem:[%s1 + $0x24] sm:$0xf]
  %v32 = vld [vmem:[%s1 + $0x28] sm:$0xf]
  %v33 = vld [vmem:[%s1 + $0x2c] sm:$0xf]
  %v34 = vld [vmem:[%s1 + $0x30] sm:$0xf]
  %v35 = vld [vmem:[%s1 + $0x34] sm:$0xf]
  %v36 = vld [vmem:[%s1 + $0x38] sm:$0xf]
  %v37 = vld [vmem:[%s1 + $0x3c] sm:$0xf]
  %v38 = vld [vmem:[%s2] sm:$0x1]
  %v40 = vperm.slane %v38, 0
  %v50 = vunpack.c.l.b16 %v14
  %v51 = vunpack.c.l.b16 %v15
  %v52 = vunpack.c.l.b16 %v16
  %v53 = vunpack.c.l.b16 %v17
  %v54 = vunpack.c.l.b16 %v18
  %v55 = vunpack.c.l.b16 %v19
  %v56 = vunpack.c.l.b16 %v20
  %v57 = vunpack.c.l.b16 %v21
  %v58 = vpack.c.b16 %v51, %v50
  %v59 = vpack.c.b16 %v53, %v52
  %v60 = vpack.c.b16 %v55, %v54
  %v61 = vpack.c.b16 %v57, %v56
  %v82 = vunpack.c.l.b16 %v22
  %v83 = vunpack.c.l.b16 %v23
  %v84 = vunpack.c.l.b16 %v24
  %v85 = vunpack.c.l.b16 %v25
  %v86 = vunpack.c.l.b16 %v26
  %v87 = vunpack.c.l.b16 %v27
  %v88 = vunpack.c.l.b16 %v28
  %v89 = vunpack.c.l.b16 %v29
  %v90 = vunpack.c.l.b16 %v30
  %v91 = vunpack.c.l.b16 %v31
  %v92 = vunpack.c.l.b16 %v32
  %v93 = vunpack.c.l.b16 %v33
  %v94 = vunpack.c.l.b16 %v34
  %v95 = vunpack.c.l.b16 %v35
  %v96 = vunpack.c.l.b16 %v36
  %v97 = vunpack.c.l.b16 %v37
  %v98 = vpack.c.b16 %v83, %v82
  %v99 = vpack.c.b16 %v85, %v84
  %v100 = vpack.c.b16 %v87, %v86
  %v101 = vpack.c.b16 %v89, %v88
  %v102 = vpack.c.b16 %v91, %v90
  %v103 = vpack.c.b16 %v93, %v92
  %v104 = vpack.c.b16 %v95, %v94
  %v105 = vpack.c.b16 %v97, %v96
  %114 = vmatpush.bf16.msra.mxu0 %v105
  %115 = vmatpush.bf16.msra.mxu0 %v104
  %116 = vmatpush.bf16.msra.mxu0 %v103
  %117 = vmatpush.bf16.msra.mxu0 %v102
  %118 = vmatpush.bf16.msra.mxu0 %v101
  %119 = vmatpush.bf16.msra.mxu0 %v100
  %120 = vmatpush.bf16.msra.mxu0 %v99
  %121 = vmatpush.bf16.msra.mxu0 %v98
  %122 = vmatmul.bf16.gmra.mxu0 %v58
  %v123 = vpop.f32.mrf.mxu0
  %v124 = vadd.f32 %v40, %v123
  %v125 = vpop.f32.mrf.mxu0
  %v126 = vadd.f32 %v40, %v125
  %127 = vmatmul.bf16.gmra.mxu0 %v59
  %v128 = vpop.f32.mrf.mxu0
  %v129 = vadd.f32 %v40, %v128
  %v130 = vpop.f32.mrf.mxu0
  %v131 = vadd.f32 %v40, %v130
  %132 = vmatmul.bf16.gmra.mxu0 %v60
  %v133 = vpop.f32.mrf.mxu0
  %v134 = vadd.f32 %v40, %v133
  %v135 = vpop.f32.mrf.mxu0
  %v136 = vadd.f32 %v40, %v135
  %137 = vmatmul.bf16.gmra.mxu0 %v61
  %v138 = vpop.f32.mrf.mxu0
  %v139 = vadd.f32 %v40, %v138
  %v140 = vpop.f32.mrf.mxu0
  %v141 = vadd.f32 %v40, %v140
  %142 = vdwg.mxu0
  %143 = vst [vmem:[%s3] sm:$0xff] %v124
  %144 = vst [vmem:[%s3 + $0x8] sm:$0xff] %v126
  %145 = vst [vmem:[%s3 + $0x10] sm:$0xff] %v129
  %146 = vst [vmem:[%s3 + $0x18] sm:$0xff] %v131
  %147 = vst [vmem:[%s3 + $0x20] sm:$0xff] %v134
  %148 = vst [vmem:[%s3 + $0x28] sm:$0xff] %v136
  %149 = vst [vmem:[%s3 + $0x30] sm:$0xff] %v139
  %150 = vst [vmem:[%s3 + $0x38] sm:$0xff] %v141
  // Predicated region
  $region14: #{seq2seq_forward.5} parent=0 // pred_check
    _
  $region15: #{seq2seq_forward.5} parent=0 // pred_check_branch
    %152 = sbr.rel (0) target = $region17
  $region16: #{seq2seq_forward.5} parent=0 // pred_region
    _
  $region17: #{seq2seq_forward.5} parent=0 // pred_fallthru
    _
  // Predicated region
  $region18: #{seq2seq_forward.5} parent=0 // pred_check
    _
  $region19: #{seq2seq_forward.5} parent=0 // pred_check_branch
    %154 = sbr.rel (0) target = $region21
  $region20: #{seq2seq_forward.5} parent=0 // pred_region
    _
  $region21: #{seq2seq_forward.5} parent=0 // pred_fallthru
    _

// kernel: seq2seq_forward.3
$region0: #{seq2seq_forward.3}
  #allocation0 [shape = 'u32[]', space=smem, size = 0x4, offset = 0x4, fixed_abs, tag = 'smem constant byte address 0x4 - core index']
  #allocation1 [shape = 'u32[72,128]{1,0:T(1,128)}', space=vmem, size = 0x9000, scoped, tag = 'internal scratch']
  %s0 = inlined_call_operand.vmem [shape: bf16[8,8,128], index: 0, kind: input, shape index: {}]
  %s1 = inlined_call_operand.vmem [shape: f32[8,128], index: 1, kind: input, shape index: {}]
  %s2 = inlined_call_operand.vmem [shape: bf16[128,384], index: 2, kind: input, shape index: {}]
  %s3 = inlined_call_operand.vmem [shape: bf16[128,384], index: 3, kind: input, shape index: {}]
  %s4 = inlined_call_operand.vmem [shape: f32[1,384], index: 4, kind: input, shape index: {}]
  %s5 = inlined_call_operand.vmem [shape: f32[1,128], index: 5, kind: input, shape index: {}]
  %s6 = inlined_call_operand.vmem [shape: f32[8,128], index: 6, kind: output, shape index: {}]
  %s7 = sld [smem:[#allocation0]]
  $region38: #{seq2seq_forward.3} parent=0
    _
  %s9 = ssub.s32 1, %s7
  %s10 = scalar_select 0, %s9, %s7
  // Predicated region
  $region2: #{seq2seq_forward.3} parent=0 // pred_check
    _
  $region3: #{seq2seq_forward.3} parent=0 // pred_check_branch
    %12 = sbr.rel (0) target = $region5
  $region4: #{seq2seq_forward.3} parent=0 // pred_region
    _
  $region5: #{seq2seq_forward.3} parent=0 // pred_fallthru
    _
  // Predicated region
  $region6: #{seq2seq_forward.3} parent=0 // pred_check
    _
  $region7: #{seq2seq_forward.3} parent=0 // pred_check_branch
    %14 = sbr.rel (0) target = $region9
  $region8: #{seq2seq_forward.3} parent=0 // pred_region
    _
  $region9: #{seq2seq_forward.3} parent=0 // pred_fallthru
    _
  // Predicated region
  $region10: #{seq2seq_forward.3} parent=0 // pred_check
    _
  $region11: #{seq2seq_forward.3} parent=0 // pred_check_branch
    %16 = sbr.rel (0) target = $region13
  $region12: #{seq2seq_forward.3} parent=0 // pred_region
    _
  $region13: #{seq2seq_forward.3} parent=0 // pred_fallthru
    _
  // Predicated region
  $region14: #{seq2seq_forward.3} parent=0 // pred_check
    _
  $region15: #{seq2seq_forward.3} parent=0 // pred_check_branch
    %18 = sbr.rel (0) target = $region17
  $region16: #{seq2seq_forward.3} parent=0 // pred_region
    _
  $region17: #{seq2seq_forward.3} parent=0 // pred_fallthru
    _
  // Predicated region
  $region18: #{seq2seq_forward.3} parent=0 // pred_check
    _
  $region19: #{seq2seq_forward.3} parent=0 // pred_check_branch
    %20 = sbr.rel (0) target = $region21
  $region20: #{seq2seq_forward.3} parent=0 // pred_region
    _
  $region21: #{seq2seq_forward.3} parent=0 // pred_fallthru
    _
  // Predicated region
  $region22: #{seq2seq_forward.3} parent=0 // pred_check
    _
  $region23: #{seq2seq_forward.3} parent=0 // pred_check_branch
    %22 = sbr.rel (0) target = $region25
  $region24: #{seq2seq_forward.3} parent=0 // pred_region
    _
  $region25: #{seq2seq_forward.3} parent=0 // pred_fallthru
    _
  %p23 = scmp.eq.s32.totalorder 0, 0
  // Predicated region
  $region26: #{seq2seq_forward.3} parent=0 // pred_check
    %p24 = pneg %p23
  $region27: #{seq2seq_forward.3} parent=0 // pred_check_branch
    %26 = sbr.rel (%p24) target = $region29
  $region28: #{seq2seq_forward.3} parent=0 // pred_region
    %v27 = vld [vmem:[%s1] sm:$0xff]
    %28 = vst [vmem:[%s6] sm:$0xff] %v27
  $region29: #{seq2seq_forward.3} parent=0 // pred_fallthru
    _
  %v29 = vld [vmem:[%s2] sm:$0xff]
  %v30 = vld [vmem:[%s2 + $0x8] sm:$0xf]
  %v31 = vld [vmem:[%s2 + $0xc] sm:$0xff]
  %v32 = vld [vmem:[%s2 + $0x14] sm:$0xf]
  %v33 = vld [vmem:[%s2 + $0x18] sm:$0xff]
  %v34 = vld [vmem:[%s2 + $0x20] sm:$0xf]
  %v35 = vld [vmem:[%s2 + $0x24] sm:$0xff]
  %v36 = vld [vmem:[%s2 + $0x2c] sm:$0xf]
  %v37 = vld [vmem:[%s2 + $0x30] sm:$0xff]
  %v38 = vld [vmem:[%s2 + $0x38] sm:$0xf]
  %v39 = vld [vmem:[%s2 + $0x3c] sm:$0xff]
  %v40 = vld [vmem:[%s2 + $0x44] sm:$0xf]
  %v41 = vld [vmem:[%s2 + $0x48] sm:$0xff]
  %v42 = vld [vmem:[%s2 + $0x50] sm:$0xf]
  %v43 = vld [vmem:[%s2 + $0x54] sm:$0xff]
  %v44 = vld [vmem:[%s2 + $0x5c] sm:$0xf]
  %v45 = vld [vmem:[%s2 + $0x60] sm:$0xff]
  %v46 = vld [vmem:[%s2 + $0x68] sm:$0xf]
  %v47 = vld [vmem:[%s2 + $0x6c] sm:$0xff]
  %v48 = vld [vmem:[%s2 + $0x74] sm:$0xf]
  %v49 = vld [vmem:[%s2 + $0x78] sm:$0xff]
  %v50 = vld [vmem:[%s2 + $0x80] sm:$0xf]
  %v51 = vld [vmem:[%s2 + $0x84] sm:$0xff]
  %v52 = vld [vmem:[%s2 + $0x8c] sm:$0xf]
  %v53 = vld [vmem:[%s2 + $0x90] sm:$0xff]
  %v54 = vld [vmem:[%s2 + $0x98] sm:$0xf]
  %v55 = vld [vmem:[%s2 + $0x9c] sm:$0xff]
  %v56 = vld [vmem:[%s2 + $0xa4] sm:$0xf]
  %v57 = vld [vmem:[%s2 + $0xa8] sm:$0xff]
  %v58 = vld [vmem:[%s2 + $0xb0] sm:$0xf]
  %v59 = vld [vmem:[%s2 + $0xb4] sm:$0xff]
  %v60 = vld [vmem:[%s2 + $0xbc] sm:$0xf]
  %v61 = vld [vmem:[%s3] sm:$0xff]
  %v62 = vld [vmem:[%s3 + $0x8] sm:$0xf]
  %v63 = vld [vmem:[%s3 + $0xc] sm:$0xff]
  %v64 = vld [vmem:[%s3 + $0x14] sm:$0xf]
  %v65 = vld [vmem:[%s3 + $0x18] sm:$0xff]
  %v66 = vld [vmem:[%s3 + $0x20] sm:$0xf]
  %v67 = vld [vmem:[%s3 + $0x24] sm:$0xff]
  %v68 = vld [vmem:[%s3 + $0x2c] sm:$0xf]
  %v69 = vld [vmem:[%s3 + $0x30] sm:$0xff]
  %v70 = vld [vmem:[%s3 + $0x38] sm:$0xf]
  %v71 = vld [vmem:[%s3 + $0x3c] sm:$0xff]
  %v72 = vld [vmem:[%s3 + $0x44] sm:$0xf]
  %v73 = vld [vmem:[%s3 + $0x48] sm:$0xff]
  %v74 = vld [vmem:[%s3 + $0x50] sm:$0xf]
  %v75 = vld [vmem:[%s3 + $0x54] sm:$0xff]
  %v76 = vld [vmem:[%s3 + $0x5c] sm:$0xf]
  %v77 = vld [vmem:[%s3 + $0x60] sm:$0xff]
  %v78 = vld [vmem:[%s3 + $0x68] sm:$0xf]
  %v79 = vld [vmem:[%s3 + $0x6c] sm:$0xff]
  %v80 = vld [vmem:[%s3 + $0x74] sm:$0xf]
  %v81 = vld [vmem:[%s3 + $0x78] sm:$0xff]
  %v82 = vld [vmem:[%s3 + $0x80] sm:$0xf]
  %v83 = vld [vmem:[%s3 + $0x84] sm:$0xff]
  %v84 = vld [vmem:[%s3 + $0x8c] sm:$0xf]
  %v85 = vld [vmem:[%s3 + $0x90] sm:$0xff]
  %v86 = vld [vmem:[%s3 + $0x98] sm:$0xf]
  %v87 = vld [vmem:[%s3 + $0x9c] sm:$0xff]
  %v88 = vld [vmem:[%s3 + $0xa4] sm:$0xf]
  %v89 = vld [vmem:[%s3 + $0xa8] sm:$0xff]
  %v90 = vld [vmem:[%s3 + $0xb0] sm:$0xf]
  %v91 = vld [vmem:[%s3 + $0xb4] sm:$0xff]
  %v92 = vld [vmem:[%s3 + $0xbc] sm:$0xf]
  %v93 = vld [vmem:[%s4] sm:$0x7]
  %v95 = vperm.slane %v93, 0
  %v96 = vperm.slane %v93, 1
  %v97 = vperm.slane %v93, 2
  %v101 = vld [vmem:[%s5] sm:$0x1]
  %v103 = vperm.slane %v101, 0
  %v105 = vld [vmem:[%s6] sm:$0xff]
  %v106 = vld [vmem:[%s0] sm:$0xf]
  %v139 = vunpack.c.l.b16 %v29
  %v140 = vunpack.c.h.b16 %v29
  %v141 = vunpack.c.l.b16 %v30
  %v142 = vunpack.c.l.b16 %v31
  %v143 = vunpack.c.h.b16 %v31
  %v144 = vunpack.c.l.b16 %v32
  %v145 = vunpack.c.l.b16 %v33
  %v146 = vunpack.c.h.b16 %v33
  %v147 = vunpack.c.l.b16 %v34
  %v148 = vunpack.c.l.b16 %v35
  %v149 = vunpack.c.h.b16 %v35
  %v150 = vunpack.c.l.b16 %v36
  %v151 = vunpack.c.l.b16 %v37
  %v152 = vunpack.c.h.b16 %v37
  %v153 = vunpack.c.l.b16 %v38
  %v154 = vunpack.c.l.b16 %v39
  %v155 = vunpack.c.h.b16 %v39
  %v156 = vunpack.c.l.b16 %v40
  %v157 = vunpack.c.l.b16 %v41
  %v158 = vunpack.c.h.b16 %v41
  %v159 = vunpack.c.l.b16 %v42
  %v160 = vunpack.c.l.b16 %v43
  %v161 = vunpack.c.h.b16 %v43
  %v162 = vunpack.c.l.b16 %v44
  %v163 = vunpack.c.l.b16 %v45
  %v164 = vunpack.c.h.b16 %v45
  %v165 = vunpack.c.l.b16 %v46
  %v166 = vunpack.c.l.b16 %v47
  %v167 = vunpack.c.h.b16 %v47
  %v168 = vunpack.c.l.b16 %v48
  %v169 = vunpack.c.l.b16 %v49
  %v170 = vunpack.c.h.b16 %v49
  %v171 = vunpack.c.l.b16 %v50
  %v172 = vunpack.c.l.b16 %v51
  %v173 = vunpack.c.h.b16 %v51
  %v174 = vunpack.c.l.b16 %v52
  %v175 = vunpack.c.l.b16 %v53
  %v176 = vunpack.c.h.b16 %v53
  %v177 = vunpack.c.l.b16 %v54
  %v178 = vunpack.c.l.b16 %v55
  %v179 = vunpack.c.h.b16 %v55
  %v180 = vunpack.c.l.b16 %v56
  %v181 = vunpack.c.l.b16 %v57
  %v182 = vunpack.c.h.b16 %v57
  %v183 = vunpack.c.l.b16 %v58
  %v184 = vunpack.c.l.b16 %v59
  %v185 = vunpack.c.h.b16 %v59
  %v186 = vunpack.c.l.b16 %v60
  %v187 = vpack.c.b16 %v142, %v139
  %v188 = vpack.c.b16 %v143, %v140
  %v189 = vpack.c.b16 %v144, %v141
  %v190 = vpack.c.b16 %v148, %v145
  %v191 = vpack.c.b16 %v149, %v146
  %v192 = vpack.c.b16 %v150, %v147
  %v193 = vpack.c.b16 %v154, %v151
  %v194 = vpack.c.b16 %v155, %v152
  %v195 = vpack.c.b16 %v156, %v153
  %v196 = vpack.c.b16 %v160, %v157
  %v197 = vpack.c.b16 %v161, %v158
  %v198 = vpack.c.b16 %v162, %v159
  %v199 = vpack.c.b16 %v166, %v163
  %v200 = vpack.c.b16 %v167, %v164
  %v201 = vpack.c.b16 %v168, %v165
  %v202 = vpack.c.b16 %v172, %v169
  %v203 = vpack.c.b16 %v173, %v170
  %v204 = vpack.c.b16 %v174, %v171
  %v205 = vpack.c.b16 %v178, %v175
  %v206 = vpack.c.b16 %v179, %v176
  %v207 = vpack.c.b16 %v180, %v177
  %v208 = vpack.c.b16 %v184, %v181
  %v209 = vpack.c.b16 %v185, %v182
  %v210 = vpack.c.b16 %v186, %v183
  %235 = vmatpush.bf16.msra.mxu0 %v208
  %236 = vmatpush.bf16.msra.mxu0 %v205
  %237 = vmatpush.bf16.msra.mxu0 %v202
  %238 = vmatpush.bf16.msra.mxu0 %v199
  %239 = vmatpush.bf16.msra.mxu0 %v196
  %240 = vmatpush.bf16.msra.mxu0 %v193
  %241 = vmatpush.bf16.msra.mxu0 %v190
  %242 = vmatpush.bf16.msra.mxu0 %v187
  %243 = vmatmul.bf16.gmra.mxu0 %v106
  %v244 = vpop.f32.mrf.mxu0
  %v245 = vadd.f32 %v95, %v244
  %v246 = vpop.f32.mrf.mxu0
  %247 = vdwg.mxu0
  %248 = vmatpush.bf16.msra.mxu0 %v209
  %249 = vmatpush.bf16.msra.mxu0 %v206
  %250 = vmatpush.bf16.msra.mxu0 %v203
  %251 = vmatpush.bf16.msra.mxu0 %v200
  %252 = vmatpush.bf16.msra.mxu0 %v197
  %253 = vmatpush.bf16.msra.mxu0 %v194
  %254 = vmatpush.bf16.msra.mxu0 %v191
  %255 = vmatpush.bf16.msra.mxu0 %v188
  %256 = vmatmul.bf16.gmra.mxu0 %v106
  %v257 = vpop.f32.mrf.mxu0
  %v258 = vadd.f32 %v96, %v257
  %v259 = vpop.f32.mrf.mxu0
  %260 = vdwg.mxu0
  %261 = vmatpush.bf16.msra.mxu0 %v210
  %262 = vmatpush.bf16.msra.mxu0 %v207
  %263 = vmatpush.bf16.msra.mxu0 %v204
  %264 = vmatpush.bf16.msra.mxu0 %v201
  %265 = vmatpush.bf16.msra.mxu0 %v198
  %266 = vmatpush.bf16.msra.mxu0 %v195
  %267 = vmatpush.bf16.msra.mxu0 %v192
  %268 = vmatpush.bf16.msra.mxu0 %v189
  %269 = vmatmul.bf16.gmra.mxu0 %v106
  %v270 = vpop.f32.mrf.mxu0
  %v271 = vadd.f32 %v97, %v270
  %v272 = vpop.f32.mrf.mxu0
  %273 = vdwg.mxu0
  %v274 = vpack.c.bf16 %v105, %v105
  %v307 = vunpack.c.l.b16 %v61
  %v308 = vunpack.c.h.b16 %v61
  %v309 = vunpack.c.l.b16 %v62
  %v310 = vunpack.c.l.b16 %v63
  %v311 = vunpack.c.h.b16 %v63
  %v312 = vunpack.c.l.b16 %v64
  %v313 = vunpack.c.l.b16 %v65
  %v314 = vunpack.c.h.b16 %v65
  %v315 = vunpack.c.l.b16 %v66
  %v316 = vunpack.c.l.b16 %v67
  %v317 = vunpack.c.h.b16 %v67
  %v318 = vunpack.c.l.b16 %v68
  %v319 = vunpack.c.l.b16 %v69
  %v320 = vunpack.c.h.b16 %v69
  %v321 = vunpack.c.l.b16 %v70
  %v322 = vunpack.c.l.b16 %v71
  %v323 = vunpack.c.h.b16 %v71
  %v324 = vunpack.c.l.b16 %v72
  %v325 = vunpack.c.l.b16 %v73
  %v326 = vunpack.c.h.b16 %v73
  %v327 = vunpack.c.l.b16 %v74
  %v328 = vunpack.c.l.b16 %v75
  %v329 = vunpack.c.h.b16 %v75
  %v330 = vunpack.c.l.b16 %v76
  %v331 = vunpack.c.l.b16 %v77
  %v332 = vunpack.c.h.b16 %v77
  %v333 = vunpack.c.l.b16 %v78
  %v334 = vunpack.c.l.b16 %v79
  %v335 = vunpack.c.h.b16 %v79
  %v336 = vunpack.c.l.b16 %v80
  %v337 = vunpack.c.l.b16 %v81
  %v338 = vunpack.c.h.b16 %v81
  %v339 = vunpack.c.l.b16 %v82
  %v340 = vunpack.c.l.b16 %v83
  %v341 = vunpack.c.h.b16 %v83
  %v342 = vunpack.c.l.b16 %v84
  %v343 = vunpack.c.l.b16 %v85
  %v344 = vunpack.c.h.b16 %v85
  %v345 = vunpack.c.l.b16 %v86
  %v346 = vunpack.c.l.b16 %v87
  %v347 = vunpack.c.h.b16 %v87
  %v348 = vunpack.c.l.b16 %v88
  %v349 = vunpack.c.l.b16 %v89
  %v350 = vunpack.c.h.b16 %v89
  %v351 = vunpack.c.l.b16 %v90
  %v352 = vunpack.c.l.b16 %v91
  %v353 = vunpack.c.h.b16 %v91
  %v354 = vunpack.c.l.b16 %v92
  %v355 = vpack.c.b16 %v310, %v307
  %v356 = vpack.c.b16 %v311, %v308
  %v357 = vpack.c.b16 %v312, %v309
  %v358 = vpack.c.b16 %v316, %v313
  %v359 = vpack.c.b16 %v317, %v314
  %v360 = vpack.c.b16 %v318, %v315
  %v361 = vpack.c.b16 %v322, %v319
  %v362 = vpack.c.b16 %v323, %v320
  %v363 = vpack.c.b16 %v324, %v321
  %v364 = vpack.c.b16 %v328, %v325
  %v365 = vpack.c.b16 %v329, %v326
  %v366 = vpack.c.b16 %v330, %v327
  %v367 = vpack.c.b16 %v334, %v331
  %v368 = vpack.c.b16 %v335, %v332
  %v369 = vpack.c.b16 %v336, %v333
  %v370 = vpack.c.b16 %v340, %v337
  %v371 = vpack.c.b16 %v341, %v338
  %v372 = vpack.c.b16 %v342, %v339
  %v373 = vpack.c.b16 %v346, %v343
  %v374 = vpack.c.b16 %v347, %v344
  %v375 = vpack.c.b16 %v348, %v345
  %v376 = vpack.c.b16 %v352, %v349
  %v377 = vpack.c.b16 %v353, %v350
  %v378 = vpack.c.b16 %v354, %v351
  %403 = vmatpush.bf16.msra.mxu0 %v376
  %404 = vmatpush.bf16.msra.mxu0 %v373
  %405 = vmatpush.bf16.msra.mxu0 %v370
  %406 = vmatpush.bf16.msra.mxu0 %v367
  %407 = vmatpush.bf16.msra.mxu0 %v364
  %408 = vmatpush.bf16.msra.mxu0 %v361
  %409 = vmatpush.bf16.msra.mxu0 %v358
  %410 = vmatpush.bf16.msra.mxu0 %v355
  %411 = vmatmul.bf16.gmra.mxu0 %v274
  %v412 = vpop.f32.mrf.mxu0
  %v413 = vadd.f32 0.0, %v412
  %v414 = vpop.f32.mrf.mxu0
  %415 = vdwg.mxu0
  %416 = vmatpush.bf16.msra.mxu0 %v377
  %417 = vmatpush.bf16.msra.mxu0 %v374
  %418 = vmatpush.bf16.msra.mxu0 %v371
  %419 = vmatpush.bf16.msra.mxu0 %v368
  %420 = vmatpush.bf16.msra.mxu0 %v365
  %421 = vmatpush.bf16.msra.mxu0 %v362
  %422 = vmatpush.bf16.msra.mxu0 %v359
  %423 = vmatpush.bf16.msra.mxu0 %v356
  %424 = vmatmul.bf16.gmra.mxu0 %v274
  %v425 = vpop.f32.mrf.mxu0
  %v426 = vadd.f32 0.0, %v425
  %v427 = vpop.f32.mrf.mxu0
  %428 = vdwg.mxu0
  %429 = vmatpush.bf16.msra.mxu0 %v378
  %430 = vmatpush.bf16.msra.mxu0 %v375
  %431 = vmatpush.bf16.msra.mxu0 %v372
  %432 = vmatpush.bf16.msra.mxu0 %v369
  %433 = vmatpush.bf16.msra.mxu0 %v366
  %434 = vmatpush.bf16.msra.mxu0 %v363
  %435 = vmatpush.bf16.msra.mxu0 %v360
  %436 = vmatpush.bf16.msra.mxu0 %v357
  %437 = vmatmul.bf16.gmra.mxu0 %v274
  %v438 = vpop.f32.mrf.mxu0
  %v439 = vadd.f32 0.0, %v438
  %v440 = vpop.f32.mrf.mxu0
  %441 = vdwg.mxu0
  %v442 = vadd.f32 %v245, %v413
  %v443 = vxor.u32 %v442, 2147483648
  %v444 = vmul.f32 %v443, 1.442695
  %v445 = vpow.pop %v444
  %v446 = vadd.f32 %v445, 1.0
  %v447 = vrcp.pop %v446
  %v448 = vmul.f32 %v446, %v447
  %v449 = vsub.f32 1.0, %v448
  %v450 = vmul.f32 %v447, %v449
  %v451 = vadd.f32 %v447, %v450
  %vm452 = vweird.f32 %v446
  %vm453 = vweird.f32 %v447
  %vm454 = vmor %vm452, %vm453
  %v455 = vsel %vm454, %v447, %v451
  %v456 = vand.u32 2147483647, %v446
  %vm457 = vcmp.eq.f32.partialorder %v456, 8.507059e+37
  %v458 = vand.u32 %v446, 2147483648
  %v459 = vor.u32 1.1754944e-38, %v458
  %v460 = vsel %vm457, %v459, %v455
  %v461 = vmul.f32 1.0, %v460
  %v462 = vadd.f32 %v258, %v426
  %v463 = vxor.u32 %v462, 2147483648
  %v464 = vmul.f32 %v463, 1.442695
  %v465 = vpow.pop %v464
  %v466 = vadd.f32 %v465, 1.0
  %v467 = vrcp.pop %v466
  %v468 = vmul.f32 %v466, %v467
  %v469 = vsub.f32 1.0, %v468
  %v470 = vmul.f32 %v467, %v469
  %v471 = vadd.f32 %v467, %v470
  %vm472 = vweird.f32 %v466
  %vm473 = vweird.f32 %v467
  %vm474 = vmor %vm472, %vm473
  %v475 = vsel %vm474, %v467, %v471
  %v476 = vand.u32 2147483647, %v466
  %vm477 = vcmp.eq.f32.partialorder %v476, 8.507059e+37
  %v478 = vand.u32 %v466, 2147483648
  %v479 = vor.u32 1.1754944e-38, %v478
  %v480 = vsel %vm477, %v479, %v475
  %v481 = vmul.f32 1.0, %v480
  %v482 = vadd.f32 %v439, %v103
  %v483 = vmul.f32 %v461, %v482
  %v484 = vadd.f32 %v271, %v483
  %v485 = vtanh.pop %v484
  %v486 = vsub.f32 1.0, %v481
  %v487 = vmul.f32 %v486, %v485
  %v488 = vmul.f32 %v481, %v105
  %v489 = vadd.f32 %v487, %v488
  %s490 = smul.u32 0, 8
  %p491 = scmp.lt.s32.totalorder %s490, 8
  %s492 = scalar_select %p491, 1, 0
  %v493 = vstv %s492
  %vm494 = vcmp.eq.s32.totalorder %v493, 1
  %v495 = vsel %vm494, %v489, %v105
  %s496 = scalar_lea.vmem %s0, 4
  %v497 = vld [vmem:[%s496] sm:$0xf]
  %498 = vmatpush.bf16.msra.mxu0 %v208
  %499 = vmatpush.bf16.msra.mxu0 %v205
  %500 = vmatpush.bf16.msra.mxu0 %v202
  %501 = vmatpush.bf16.msra.mxu0 %v199
  %502 = vmatpush.bf16.msra.mxu0 %v196
  %503 = vmatpush.bf16.msra.mxu0 %v193
  %504 = vmatpush.bf16.msra.mxu0 %v190
  %505 = vmatpush.bf16.msra.mxu0 %v187
  %506 = vmatmul.bf16.gmra.mxu0 %v497
  %v507 = vpop.f32.mrf.mxu0
  %v508 = vadd.f32 %v95, %v507
  %v509 = vpop.f32.mrf.mxu0
  %510 = vdwg.mxu0
  %511 = vmatpush.bf16.msra.mxu0 %v209
  %512 = vmatpush.bf16.msra.mxu0 %v206
  %513 = vmatpush.bf16.msra.mxu0 %v203
  %514 = vmatpush.bf16.msra.mxu0 %v200
  %515 = vmatpush.bf16.msra.mxu0 %v197
  %516 = vmatpush.bf16.msra.mxu0 %v194
  %517 = vmatpush.bf16.msra.mxu0 %v191
  %518 = vmatpush.bf16.msra.mxu0 %v188
  %519 = vmatmul.bf16.gmra.mxu0 %v497
  %v520 = vpop.f32.mrf.mxu0
  %v521 = vadd.f32 %v96, %v520
  %v522 = vpop.f32.mrf.mxu0
  %523 = vdwg.mxu0
  %524 = vmatpush.bf16.msra.mxu0 %v210
  %525 = vmatpush.bf16.msra.mxu0 %v207
  %526 = vmatpush.bf16.msra.mxu0 %v204
  %527 = vmatpush.bf16.msra.mxu0 %v201
  %528 = vmatpush.bf16.msra.mxu0 %v198
  %529 = vmatpush.bf16.msra.mxu0 %v195
  %530 = vmatpush.bf16.msra.mxu0 %v192
  %531 = vmatpush.bf16.msra.mxu0 %v189
  %532 = vmatmul.bf16.gmra.mxu0 %v497
  %v533 = vpop.f32.mrf.mxu0
  %v534 = vadd.f32 %v97, %v533
  %v535 = vpop.f32.mrf.mxu0
  %536 = vdwg.mxu0
  %v537 = vpack.c.bf16 %v495, %v495
  %538 = vmatpush.bf16.msra.mxu0 %v376
  %539 = vmatpush.bf16.msra.mxu0 %v373
  %540 = vmatpush.bf16.msra.mxu0 %v370
  %541 = vmatpush.bf16.msra.mxu0 %v367
  %542 = vmatpush.bf16.msra.mxu0 %v364
  %543 = vmatpush.bf16.msra.mxu0 %v361
  %544 = vmatpush.bf16.msra.mxu0 %v358
  %545 = vmatpush.bf16.msra.mxu0 %v355
  %546 = vmatmul.bf16.gmra.mxu0 %v537
  %v547 = vpop.f32.mrf.mxu0
  %v548 = vadd.f32 0.0, %v547
  %v549 = vpop.f32.mrf.mxu0
  %550 = vdwg.mxu0
  %551 = vmatpush.bf16.msra.mxu0 %v377
  %552 = vmatpush.bf16.msra.mxu0 %v374
  %553 = vmatpush.bf16.msra.mxu0 %v371
  %554 = vmatpush.bf16.msra.mxu0 %v368
  %555 = vmatpush.bf16.msra.mxu0 %v365
  %556 = vmatpush.bf16.msra.mxu0 %v362
  %557 = vmatpush.bf16.msra.mxu0 %v359
  %558 = vmatpush.bf16.msra.mxu0 %v356
  %559 = vmatmul.bf16.gmra.mxu0 %v537
  %v560 = vpop.f32.mrf.mxu0
  %v561 = vadd.f32 0.0, %v560
  %v562 = vpop.f32.mrf.mxu0
  %563 = vdwg.mxu0
  %564 = vmatpush.bf16.msra.mxu0 %v378
  %565 = vmatpush.bf16.msra.mxu0 %v375
  %566 = vmatpush.bf16.msra.mxu0 %v372
  %567 = vmatpush.bf16.msra.mxu0 %v369
  %568 = vmatpush.bf16.msra.mxu0 %v366
  %569 = vmatpush.bf16.msra.mxu0 %v363
  %570 = vmatpush.bf16.msra.mxu0 %v360
  %571 = vmatpush.bf16.msra.mxu0 %v357
  %572 = vmatmul.bf16.gmra.mxu0 %v537
  %v573 = vpop.f32.mrf.mxu0
  %v574 = vadd.f32 0.0, %v573
  %v575 = vpop.f32.mrf.mxu0
  %576 = vdwg.mxu0
  %v577 = vadd.f32 %v508, %v548
  %v578 = vxor.u32 %v577, 2147483648
  %v579 = vmul.f32 %v578, 1.442695
  %v580 = vpow.pop %v579
  %v581 = vadd.f32 %v580, 1.0
  %v582 = vrcp.pop %v581
  %v583 = vmul.f32 %v581, %v582
  %v584 = vsub.f32 1.0, %v583
  %v585 = vmul.f32 %v582, %v584
  %v586 = vadd.f32 %v582, %v585
  %vm587 = vweird.f32 %v581
  %vm588 = vweird.f32 %v582
  %vm589 = vmor %vm587, %vm588
  %v590 = vsel %vm589, %v582, %v586
  %v591 = vand.u32 2147483647, %v581
  %vm592 = vcmp.eq.f32.partialorder %v591, 8.507059e+37
  %v593 = vand.u32 %v581, 2147483648
  %v594 = vor.u32 1.1754944e-38, %v593
  %v595 = vsel %vm592, %v594, %v590
  %v596 = vmul.f32 1.0, %v595
  %v597 = vadd.f32 %v521, %v561
  %v598 = vxor.u32 %v597, 2147483648
  %v599 = vmul.f32 %v598, 1.442695
  %v600 = vpow.pop %v599
  %v601 = vadd.f32 %v600, 1.0
  %v602 = vrcp.pop %v601
  %v603 = vmul.f32 %v601, %v602
  %v604 = vsub.f32 1.0, %v603
  %v605 = vmul.f32 %v602, %v604
  %v606 = vadd.f32 %v602, %v605
  %vm607 = vweird.f32 %v601
  %vm608 = vweird.f32 %v602
  %vm609 = vmor %vm607, %vm608
  %v610 = vsel %vm609, %v602, %v606
  %v611 = vand.u32 2147483647, %v601
  %vm612 = vcmp.eq.f32.partialorder %v611, 8.507059e+37
  %v613 = vand.u32 %v601, 2147483648
  %v614 = vor.u32 1.1754944e-38, %v613
  %v615 = vsel %vm612, %v614, %v610
  %v616 = vmul.f32 1.0, %v615
  %v617 = vadd.f32 %v574, %v103
  %v618 = vmul.f32 %v596, %v617
  %v619 = vadd.f32 %v534, %v618
  %v620 = vtanh.pop %v619
  %v621 = vsub.f32 1.0, %v616
  %v622 = vmul.f32 %v621, %v620
  %v623 = vmul.f32 %v616, %v495
  %v624 = vadd.f32 %v622, %v623
  %s625 = sadd.s32 %s490, 1
  %p626 = scmp.lt.s32.totalorder %s625, 8
  %s627 = scalar_select %p626, 1, 0
  %v628 = vstv %s627
  %vm629 = vcmp.eq.s32.totalorder %v628, 1
  %v630 = vsel %vm629, %v624, %v495
  %s631 = scalar_lea.vmem %s0, 8
  %v632 = vld [vmem:[%s631] sm:$0xf]
  %633 = vmatpush.bf16.msra.mxu0 %v208
  %634 = vmatpush.bf16.msra.mxu0 %v205
  %635 = vmatpush.bf16.msra.mxu0 %v202
  %636 = vmatpush.bf16.msra.mxu0 %v199
  %637 = vmatpush.bf16.msra.mxu0 %v196
  %638 = vmatpush.bf16.msra.mxu0 %v193
  %639 = vmatpush.bf16.msra.mxu0 %v190
  %640 = vmatpush.bf16.msra.mxu0 %v187
  %641 = vmatmul.bf16.gmra.mxu0 %v632
  %v642 = vpop.f32.mrf.mxu0
  %v643 = vadd.f32 %v95, %v642
  %v644 = vpop.f32.mrf.mxu0
  %645 = vdwg.mxu0
  %646 = vmatpush.bf16.msra.mxu0 %v209
  %647 = vmatpush.bf16.msra.mxu0 %v206
  %648 = vmatpush.bf16.msra.mxu0 %v203
  %649 = vmatpush.bf16.msra.mxu0 %v200
  %650 = vmatpush.bf16.msra.mxu0 %v197
  %651 = vmatpush.bf16.msra.mxu0 %v194
  %652 = vmatpush.bf16.msra.mxu0 %v191
  %653 = vmatpush.bf16.msra.mxu0 %v188
  %654 = vmatmul.bf16.gmra.mxu0 %v632
  %v655 = vpop.f32.mrf.mxu0
  %v656 = vadd.f32 %v96, %v655
  %v657 = vpop.f32.mrf.mxu0
  %658 = vdwg.mxu0
  %659 = vmatpush.bf16.msra.mxu0 %v210
  %660 = vmatpush.bf16.msra.mxu0 %v207
  %661 = vmatpush.bf16.msra.mxu0 %v204
  %662 = vmatpush.bf16.msra.mxu0 %v201
  %663 = vmatpush.bf16.msra.mxu0 %v198
  %664 = vmatpush.bf16.msra.mxu0 %v195
  %665 = vmatpush.bf16.msra.mxu0 %v192
  %666 = vmatpush.bf16.msra.mxu0 %v189
  %667 = vmatmul.bf16.gmra.mxu0 %v632
  %v668 = vpop.f32.mrf.mxu0
  %v669 = vadd.f32 %v97, %v668
  %v670 = vpop.f32.mrf.mxu0
  %671 = vdwg.mxu0
  %v672 = vpack.c.bf16 %v630, %v630
  %673 = vmatpush.bf16.msra.mxu0 %v376
  %674 = vmatpush.bf16.msra.mxu0 %v373
  %675 = vmatpush.bf16.msra.mxu0 %v370
  %676 = vmatpush.bf16.msra.mxu0 %v367
  %677 = vmatpush.bf16.msra.mxu0 %v364
  %678 = vmatpush.bf16.msra.mxu0 %v361
  %679 = vmatpush.bf16.msra.mxu0 %v358
  %680 = vmatpush.bf16.msra.mxu0 %v355
  %681 = vmatmul.bf16.gmra.mxu0 %v672
  %v682 = vpop.f32.mrf.mxu0
  %v683 = vadd.f32 0.0, %v682
  %v684 = vpop.f32.mrf.mxu0
  %685 = vdwg.mxu0
  %686 = vmatpush.bf16.msra.mxu0 %v377
  %687 = vmatpush.bf16.msra.mxu0 %v374
  %688 = vmatpush.bf16.msra.mxu0 %v371
  %689 = vmatpush.bf16.msra.mxu0 %v368
  %690 = vmatpush.bf16.msra.mxu0 %v365
  %691 = vmatpush.bf16.msra.mxu0 %v362
  %692 = vmatpush.bf16.msra.mxu0 %v359
  %693 = vmatpush.bf16.msra.mxu0 %v356
  %694 = vmatmul.bf16.gmra.mxu0 %v672
  %v695 = vpop.f32.mrf.mxu0
  %v696 = vadd.f32 0.0, %v695
  %v697 = vpop.f32.mrf.mxu0
  %698 = vdwg.mxu0
  %699 = vmatpush.bf16.msra.mxu0 %v378
  %700 = vmatpush.bf16.msra.mxu0 %v375
  %701 = vmatpush.bf16.msra.mxu0 %v372
  %702 = vmatpush.bf16.msra.mxu0 %v369
  %703 = vmatpush.bf16.msra.mxu0 %v366
  %704 = vmatpush.bf16.msra.mxu0 %v363
  %705 = vmatpush.bf16.msra.mxu0 %v360
  %706 = vmatpush.bf16.msra.mxu0 %v357
  %707 = vmatmul.bf16.gmra.mxu0 %v672
  %v708 = vpop.f32.mrf.mxu0
  %v709 = vadd.f32 0.0, %v708
  %v710 = vpop.f32.mrf.mxu0
  %711 = vdwg.mxu0
  %v712 = vadd.f32 %v643, %v683
  %v713 = vxor.u32 %v712, 2147483648
  %v714 = vmul.f32 %v713, 1.442695
  %v715 = vpow.pop %v714
  %v716 = vadd.f32 %v715, 1.0
  %v717 = vrcp.pop %v716
  %v718 = vmul.f32 %v716, %v717
  %v719 = vsub.f32 1.0, %v718
  %v720 = vmul.f32 %v717, %v719
  %v721 = vadd.f32 %v717, %v720
  %vm722 = vweird.f32 %v716
  %vm723 = vweird.f32 %v717
  %vm724 = vmor %vm722, %vm723
  %v725 = vsel %vm724, %v717, %v721
  %v726 = vand.u32 2147483647, %v716
  %vm727 = vcmp.eq.f32.partialorder %v726, 8.507059e+37
  %v728 = vand.u32 %v716, 2147483648
  %v729 = vor.u32 1.1754944e-38, %v728
  %v730 = vsel %vm727, %v729, %v725
  %v731 = vmul.f32 1.0, %v730
  %v732 = vadd.f32 %v656, %v696
  %v733 = vxor.u32 %v732, 2147483648
  %v734 = vmul.f32 %v733, 1.442695
  %v735 = vpow.pop %v734
  %v736 = vadd.f32 %v735, 1.0
  %v737 = vrcp.pop %v736
  %v738 = vmul.f32 %v736, %v737
  %v739 = vsub.f32 1.0, %v738
  %v740 = vmul.f32 %v737, %v739
  %v741 = vadd.f32 %v737, %v740
  %vm742 = vweird.f32 %v736
  %vm743 = vweird.f32 %v737
  %vm744 = vmor %vm742, %vm743
  %v745 = vsel %vm744, %v737, %v741
  %v746 = vand.u32 2147483647, %v736
  %vm747 = vcmp.eq.f32.partialorder %v746, 8.507059e+37
  %v748 = vand.u32 %v736, 2147483648
  %v749 = vor.u32 1.1754944e-38, %v748
  %v750 = vsel %vm747, %v749, %v745
  %v751 = vmul.f32 1.0, %v750
  %v752 = vadd.f32 %v709, %v103
  %v753 = vmul.f32 %v731, %v752
  %v754 = vadd.f32 %v669, %v753
  %v755 = vtanh.pop %v754
  %v756 = vsub.f32 1.0, %v751
  %v757 = vmul.f32 %v756, %v755
  %v758 = vmul.f32 %v751, %v630
  %v759 = vadd.f32 %v757, %v758
  %s760 = sadd.s32 %s490, 2
  %p761 = scmp.lt.s32.totalorder %s760, 8
  %s762 = scalar_select %p761, 1, 0
  %v763 = vstv %s762
  %vm764 = vcmp.eq.s32.totalorder %v763, 1
  %v765 = vsel %vm764, %v759, %v630
  %s766 = scalar_lea.vmem %s0, 12
  %v767 = vld [vmem:[%s766] sm:$0xf]
  %768 = vmatpush.bf16.msra.mxu0 %v208
  %769 = vmatpush.bf16.msra.mxu0 %v205
  %770 = vmatpush.bf16.msra.mxu0 %v202
  %771 = vmatpush.bf16.msra.mxu0 %v199
  %772 = vmatpush.bf16.msra.mxu0 %v196
  %773 = vmatpush.bf16.msra.mxu0 %v193
  %774 = vmatpush.bf16.msra.mxu0 %v190
  %775 = vmatpush.bf16.msra.mxu0 %v187
  %776 = vmatmul.bf16.gmra.mxu0 %v767
  %v777 = vpop.f32.mrf.mxu0
  %v778 = vadd.f32 %v95, %v777
  %v779 = vpop.f32.mrf.mxu0
  %780 = vdwg.mxu0
  %781 = vmatpush.bf16.msra.mxu0 %v209
  %782 = vmatpush.bf16.msra.mxu0 %v206
  %783 = vmatpush.bf16.msra.mxu0 %v203
  %784 = vmatpush.bf16.msra.mxu0 %v200
  %785 = vmatpush.bf16.msra.mxu0 %v197
  %786 = vmatpush.bf16.msra.mxu0 %v194
  %787 = vmatpush.bf16.msra.mxu0 %v191
  %788 = vmatpush.bf16.msra.mxu0 %v188
  %789 = vmatmul.bf16.gmra.mxu0 %v767
  %v790 = vpop.f32.mrf.mxu0
  %v791 = vadd.f32 %v96, %v790
  %v792 = vpop.f32.mrf.mxu0
  %793 = vdwg.mxu0
  %794 = vmatpush.bf16.msra.mxu0 %v210
  %795 = vmatpush.bf16.msra.mxu0 %v207
  %796 = vmatpush.bf16.msra.mxu0 %v204
  %797 = vmatpush.bf16.msra.mxu0 %v201
  %798 = vmatpush.bf16.msra.mxu0 %v198
  %799 = vmatpush.bf16.msra.mxu0 %v195
  %800 = vmatpush.bf16.msra.mxu0 %v192
  %801 = vmatpush.bf16.msra.mxu0 %v189
  %802 = vmatmul.bf16.gmra.mxu0 %v767
  %v803 = vpop.f32.mrf.mxu0
  %v804 = vadd.f32 %v97, %v803
  %v805 = vpop.f32.mrf.mxu0
  %806 = vdwg.mxu0
  %v807 = vpack.c.bf16 %v765, %v765
  %808 = vmatpush.bf16.msra.mxu0 %v376
  %809 = vmatpush.bf16.msra.mxu0 %v373
  %810 = vmatpush.bf16.msra.mxu0 %v370
  %811 = vmatpush.bf16.msra.mxu0 %v367
  %812 = vmatpush.bf16.msra.mxu0 %v364
  %813 = vmatpush.bf16.msra.mxu0 %v361
  %814 = vmatpush.bf16.msra.mxu0 %v358
  %815 = vmatpush.bf16.msra.mxu0 %v355
  %816 = vmatmul.bf16.gmra.mxu0 %v807
  %v817 = vpop.f32.mrf.mxu0
  %v818 = vadd.f32 0.0, %v817
  %v819 = vpop.f32.mrf.mxu0
  %820 = vdwg.mxu0
  %821 = vmatpush.bf16.msra.mxu0 %v377
  %822 = vmatpush.bf16.msra.mxu0 %v374
  %823 = vmatpush.bf16.msra.mxu0 %v371
  %824 = vmatpush.bf16.msra.mxu0 %v368
  %825 = vmatpush.bf16.msra.mxu0 %v365
  %826 = vmatpush.bf16.msra.mxu0 %v362
  %827 = vmatpush.bf16.msra.mxu0 %v359
  %828 = vmatpush.bf16.msra.mxu0 %v356
  %829 = vmatmul.bf16.gmra.mxu0 %v807
  %v830 = vpop.f32.mrf.mxu0
  %v831 = vadd.f32 0.0, %v830
  %v832 = vpop.f32.mrf.mxu0
  %833 = vdwg.mxu0
  %834 = vmatpush.bf16.msra.mxu0 %v378
  %835 = vmatpush.bf16.msra.mxu0 %v375
  %836 = vmatpush.bf16.msra.mxu0 %v372
  %837 = vmatpush.bf16.msra.mxu0 %v369
  %838 = vmatpush.bf16.msra.mxu0 %v366
  %839 = vmatpush.bf16.msra.mxu0 %v363
  %840 = vmatpush.bf16.msra.mxu0 %v360
  %841 = vmatpush.bf16.msra.mxu0 %v357
  %842 = vmatmul.bf16.gmra.mxu0 %v807
  %v843 = vpop.f32.mrf.mxu0
  %v844 = vadd.f32 0.0, %v843
  %v845 = vpop.f32.mrf.mxu0
  %846 = vdwg.mxu0
  %v847 = vadd.f32 %v778, %v818
  %v848 = vxor.u32 %v847, 2147483648
  %v849 = vmul.f32 %v848, 1.442695
  %v850 = vpow.pop %v849
  %v851 = vadd.f32 %v850, 1.0
  %v852 = vrcp.pop %v851
  %v853 = vmul.f32 %v851, %v852
  %v854 = vsub.f32 1.0, %v853
  %v855 = vmul.f32 %v852, %v854
  %v856 = vadd.f32 %v852, %v855
  %vm857 = vweird.f32 %v851
  %vm858 = vweird.f32 %v852
  %vm859 = vmor %vm857, %vm858
  %v860 = vsel %vm859, %v852, %v856
  %v861 = vand.u32 2147483647, %v851
  %vm862 = vcmp.eq.f32.partialorder %v861, 8.507059e+37
  %v863 = vand.u32 %v851, 2147483648
  %v864 = vor.u32 1.1754944e-38, %v863
  %v865 = vsel %vm862, %v864, %v860
  %v866 = vmul.f32 1.0, %v865
  %v867 = vadd.f32 %v791, %v831
  %v868 = vxor.u32 %v867, 2147483648
  %v869 = vmul.f32 %v868, 1.442695
  %v870 = vpow.pop %v869
  %v871 = vadd.f32 %v870, 1.0
  %v872 = vrcp.pop %v871
  %v873 = vmul.f32 %v871, %v872
  %v874 = vsub.f32 1.0, %v873
  %v875 = vmul.f32 %v872, %v874
  %v876 = vadd.f32 %v872, %v875
  %vm877 = vweird.f32 %v871
  %vm878 = vweird.f32 %v872
  %vm879 = vmor %vm877, %vm878
  %v880 = vsel %vm879, %v872, %v876
  %v881 = vand.u32 2147483647, %v871
  %vm882 = vcmp.eq.f32.partialorder %v881, 8.507059e+37
  %v883 = vand.u32 %v871, 2147483648
  %v884 = vor.u32 1.1754944e-38, %v883
  %v885 = vsel %vm882, %v884, %v880
  %v886 = vmul.f32 1.0, %v885
  %v887 = vadd.f32 %v844, %v103
  %v888 = vmul.f32 %v866, %v887
  %v889 = vadd.f32 %v804, %v888
  %v890 = vtanh.pop %v889
  %v891 = vsub.f32 1.0, %v886
  %v892 = vmul.f32 %v891, %v890
  %v893 = vmul.f32 %v886, %v765
  %v894 = vadd.f32 %v892, %v893
  %s895 = sadd.s32 %s490, 3
  %p896 = scmp.lt.s32.totalorder %s895, 8
  %s897 = scalar_select %p896, 1, 0
  %v898 = vstv %s897
  %vm899 = vcmp.eq.s32.totalorder %v898, 1
  %v900 = vsel %vm899, %v894, %v765
  %s901 = scalar_lea.vmem %s0, 16
  %v902 = vld [vmem:[%s901] sm:$0xf]
  %903 = vmatpush.bf16.msra.mxu0 %v208
  %904 = vmatpush.bf16.msra.mxu0 %v205
  %905 = vmatpush.bf16.msra.mxu0 %v202
  %906 = vmatpush.bf16.msra.mxu0 %v199
  %907 = vmatpush.bf16.msra.mxu0 %v196
  %908 = vmatpush.bf16.msra.mxu0 %v193
  %909 = vmatpush.bf16.msra.mxu0 %v190
  %910 = vmatpush.bf16.msra.mxu0 %v187
  %911 = vmatmul.bf16.gmra.mxu0 %v902
  %v912 = vpop.f32.mrf.mxu0
  %v913 = vadd.f32 %v95, %v912
  %v914 = vpop.f32.mrf.mxu0
  %915 = vdwg.mxu0
  %916 = vmatpush.bf16.msra.mxu0 %v209
  %917 = vmatpush.bf16.msra.mxu0 %v206
  %918 = vmatpush.bf16.msra.mxu0 %v203
  %919 = vmatpush.bf16.msra.mxu0 %v200
  %920 = vmatpush.bf16.msra.mxu0 %v197
  %921 = vmatpush.bf16.msra.mxu0 %v194
  %922 = vmatpush.bf16.msra.mxu0 %v191
  %923 = vmatpush.bf16.msra.mxu0 %v188
  %924 = vmatmul.bf16.gmra.mxu0 %v902
  %v925 = vpop.f32.mrf.mxu0
  %v926 = vadd.f32 %v96, %v925
  %v927 = vpop.f32.mrf.mxu0
  %928 = vdwg.mxu0
  %929 = vmatpush.bf16.msra.mxu0 %v210
  %930 = vmatpush.bf16.msra.mxu0 %v207
  %931 = vmatpush.bf16.msra.mxu0 %v204
  %932 = vmatpush.bf16.msra.mxu0 %v201
  %933 = vmatpush.bf16.msra.mxu0 %v198
  %934 = vmatpush.bf16.msra.mxu0 %v195
  %935 = vmatpush.bf16.msra.mxu0 %v192
  %936 = vmatpush.bf16.msra.mxu0 %v189
  %937 = vmatmul.bf16.gmra.mxu0 %v902
  %v938 = vpop.f32.mrf.mxu0
  %v939 = vadd.f32 %v97, %v938
  %v940 = vpop.f32.mrf.mxu0
  %941 = vdwg.mxu0
  %v942 = vpack.c.bf16 %v900, %v900
  %943 = vmatpush.bf16.msra.mxu0 %v376
  %944 = vmatpush.bf16.msra.mxu0 %v373
  %945 = vmatpush.bf16.msra.mxu0 %v370
  %946 = vmatpush.bf16.msra.mxu0 %v367
  %947 = vmatpush.bf16.msra.mxu0 %v364
  %948 = vmatpush.bf16.msra.mxu0 %v361
  %949 = vmatpush.bf16.msra.mxu0 %v358
  %950 = vmatpush.bf16.msra.mxu0 %v355
  %951 = vmatmul.bf16.gmra.mxu0 %v942
  %v952 = vpop.f32.mrf.mxu0
  %v953 = vadd.f32 0.0, %v952
  %v954 = vpop.f32.mrf.mxu0
  %955 = vdwg.mxu0
  %956 = vmatpush.bf16.msra.mxu0 %v377
  %957 = vmatpush.bf16.msra.mxu0 %v374
  %958 = vmatpush.bf16.msra.mxu0 %v371
  %959 = vmatpush.bf16.msra.mxu0 %v368
  %960 = vmatpush.bf16.msra.mxu0 %v365
  %961 = vmatpush.bf16.msra.mxu0 %v362
  %962 = vmatpush.bf16.msra.mxu0 %v359
  %963 = vmatpush.bf16.msra.mxu0 %v356
  %964 = vmatmul.bf16.gmra.mxu0 %v942
  %v965 = vpop.f32.mrf.mxu0
  %v966 = vadd.f32 0.0, %v965
  %v967 = vpop.f32.mrf.mxu0
  %968 = vdwg.mxu0
  %969 = vmatpush.bf16.msra.mxu0 %v378
  %970 = vmatpush.bf16.msra.mxu0 %v375
  %971 = vmatpush.bf16.msra.mxu0 %v372
  %972 = vmatpush.bf16.msra.mxu0 %v369
  %973 = vmatpush.bf16.msra.mxu0 %v366
  %974 = vmatpush.bf16.msra.mxu0 %v363
  %975 = vmatpush.bf16.msra.mxu0 %v360
  %976 = vmatpush.bf16.msra.mxu0 %v357
  %977 = vmatmul.bf16.gmra.mxu0 %v942
  %v978 = vpop.f32.mrf.mxu0
  %v979 = vadd.f32 0.0, %v978
  %v980 = vpop.f32.mrf.mxu0
  %981 = vdwg.mxu0
  %v982 = vadd.f32 %v913, %v953
  %v983 = vxor.u32 %v982, 2147483648
  %v984 = vmul.f32 %v983, 1.442695
  %v985 = vpow.pop %v984
  %v986 = vadd.f32 %v985, 1.0
  %v987 = vrcp.pop %v986
  %v988 = vmul.f32 %v986, %v987
  %v989 = vsub.f32 1.0, %v988
  %v990 = vmul.f32 %v987, %v989
  %v991 = vadd.f32 %v987, %v990
  %vm992 = vweird.f32 %v986
  %vm993 = vweird.f32 %v987
  %vm994 = vmor %vm992, %vm993
  %v995 = vsel %vm994, %v987, %v991
  %v996 = vand.u32 2147483647, %v986
  %vm997 = vcmp.eq.f32.partialorder %v996, 8.507059e+37
  %v998 = vand.u32 %v986, 2147483648
  %v999 = vor.u32 1.1754944e-38, %v998
  %v1000 = vsel %vm997, %v999, %v995
  %v1001 = vmul.f32 1.0, %v1000
  %v1002 = vadd.f32 %v926, %v966
  %v1003 = vxor.u32 %v1002, 2147483648
  %v1004 = vmul.f32 %v1003, 1.442695
  %v1005 = vpow.pop %v1004
  %v1006 = vadd.f32 %v1005, 1.0
  %v1007 = vrcp.pop %v1006
  %v1008 = vmul.f32 %v1006, %v1007
  %v1009 = vsub.f32 1.0, %v1008
  %v1010 = vmul.f32 %v1007, %v1009
  %v1011 = vadd.f32 %v1007, %v1010
  %vm1012 = vweird.f32 %v1006
  %vm1013 = vweird.f32 %v1007
  %vm1014 = vmor %vm1012, %vm1013
  %v1015 = vsel %vm1014, %v1007, %v1011
  %v1016 = vand.u32 2147483647, %v1006
  %vm1017 = vcmp.eq.f32.partialorder %v1016, 8.507059e+37
  %v1018 = vand.u32 %v1006, 2147483648
  %v1019 = vor.u32 1.1754944e-38, %v1018
  %v1020 = vsel %vm1017, %v1019, %v1015
  %v1021 = vmul.f32 1.0, %v1020
  %v1022 = vadd.f32 %v979, %v103
  %v1023 = vmul.f32 %v1001, %v1022
  %v1024 = vadd.f32 %v939, %v1023
  %v1025 = vtanh.pop %v1024
  %v1026 = vsub.f32 1.0, %v1021
  %v1027 = vmul.f32 %v1026, %v1025
  %v1028 = vmul.f32 %v1021, %v900
  %v1029 = vadd.f32 %v1027, %v1028
  %s1030 = sadd.s32 %s490, 4
  %p1031 = scmp.lt.s32.totalorder %s1030, 8
  %s1032 = scalar_select %p1031, 1, 0
  %v1033 = vstv %s1032
  %vm1034 = vcmp.eq.s32.totalorder %v1033, 1
  %v1035 = vsel %vm1034, %v1029, %v900
  %s1036 = scalar_lea.vmem %s0, 20
  %v1037 = vld [vmem:[%s1036] sm:$0xf]
  %1038 = vmatpush.bf16.msra.mxu0 %v208
  %1039 = vmatpush.bf16.msra.mxu0 %v205
  %1040 = vmatpush.bf16.msra.mxu0 %v202
  %1041 = vmatpush.bf16.msra.mxu0 %v199
  %1042 = vmatpush.bf16.msra.mxu0 %v196
  %1043 = vmatpush.bf16.msra.mxu0 %v193
  %1044 = vmatpush.bf16.msra.mxu0 %v190
  %1045 = vmatpush.bf16.msra.mxu0 %v187
  %1046 = vmatmul.bf16.gmra.mxu0 %v1037
  %v1047 = vpop.f32.mrf.mxu0
  %v1048 = vadd.f32 %v95, %v1047
  %v1049 = vpop.f32.mrf.mxu0
  %1050 = vdwg.mxu0
  %1051 = vmatpush.bf16.msra.mxu0 %v209
  %1052 = vmatpush.bf16.msra.mxu0 %v206
  %1053 = vmatpush.bf16.msra.mxu0 %v203
  %1054 = vmatpush.bf16.msra.mxu0 %v200
  %1055 = vmatpush.bf16.msra.mxu0 %v197
  %1056 = vmatpush.bf16.msra.mxu0 %v194
  %1057 = vmatpush.bf16.msra.mxu0 %v191
  %1058 = vmatpush.bf16.msra.mxu0 %v188
  %1059 = vmatmul.bf16.gmra.mxu0 %v1037
  %v1060 = vpop.f32.mrf.mxu0
  %v1061 = vadd.f32 %v96, %v1060
  %v1062 = vpop.f32.mrf.mxu0
  %1063 = vdwg.mxu0
  %1064 = vmatpush.bf16.msra.mxu0 %v210
  %1065 = vmatpush.bf16.msra.mxu0 %v207
  %1066 = vmatpush.bf16.msra.mxu0 %v204
  %1067 = vmatpush.bf16.msra.mxu0 %v201
  %1068 = vmatpush.bf16.msra.mxu0 %v198
  %1069 = vmatpush.bf16.msra.mxu0 %v195
  %1070 = vmatpush.bf16.msra.mxu0 %v192
  %1071 = vmatpush.bf16.msra.mxu0 %v189
  %1072 = vmatmul.bf16.gmra.mxu0 %v1037
  %v1073 = vpop.f32.mrf.mxu0
  %v1074 = vadd.f32 %v97, %v1073
  %v1075 = vpop.f32.mrf.mxu0
  %1076 = vdwg.mxu0
  %v1077 = vpack.c.bf16 %v1035, %v1035
  %1078 = vmatpush.bf16.msra.mxu0 %v376
  %1079 = vmatpush.bf16.msra.mxu0 %v373
  %1080 = vmatpush.bf16.msra.mxu0 %v370
  %1081 = vmatpush.bf16.msra.mxu0 %v367
  %1082 = vmatpush.bf16.msra.mxu0 %v364
  %1083 = vmatpush.bf16.msra.mxu0 %v361
  %1084 = vmatpush.bf16.msra.mxu0 %v358
  %1085 = vmatpush.bf16.msra.mxu0 %v355
  %1086 = vmatmul.bf16.gmra.mxu0 %v1077
  %v1087 = vpop.f32.mrf.mxu0
  %v1088 = vadd.f32 0.0, %v1087
  %v1089 = vpop.f32.mrf.mxu0
  %1090 = vdwg.mxu0
  %1091 = vmatpush.bf16.msra.mxu0 %v377
  %1092 = vmatpush.bf16.msra.mxu0 %v374
  %1093 = vmatpush.bf16.msra.mxu0 %v371
  %1094 = vmatpush.bf16.msra.mxu0 %v368
  %1095 = vmatpush.bf16.msra.mxu0 %v365
  %1096 = vmatpush.bf16.msra.mxu0 %v362
  %1097 = vmatpush.bf16.msra.mxu0 %v359
  %1098 = vmatpush.bf16.msra.mxu0 %v356
  %1099 = vmatmul.bf16.gmra.mxu0 %v1077
  %v1100 = vpop.f32.mrf.mxu0
  %v1101 = vadd.f32 0.0, %v1100
  %v1102 = vpop.f32.mrf.mxu0
  %1103 = vdwg.mxu0
  %1104 = vmatpush.bf16.msra.mxu0 %v378
  %1105 = vmatpush.bf16.msra.mxu0 %v375
  %1106 = vmatpush.bf16.msra.mxu0 %v372
  %1107 = vmatpush.bf16.msra.mxu0 %v369
  %1108 = vmatpush.bf16.msra.mxu0 %v366
  %1109 = vmatpush.bf16.msra.mxu0 %v363
  %1110 = vmatpush.bf16.msra.mxu0 %v360
  %1111 = vmatpush.bf16.msra.mxu0 %v357
  %1112 = vmatmul.bf16.gmra.mxu0 %v1077
  %v1113 = vpop.f32.mrf.mxu0
  %v1114 = vadd.f32 0.0, %v1113
  %v1115 = vpop.f32.mrf.mxu0
  %1116 = vdwg.mxu0
  %v1117 = vadd.f32 %v1048, %v1088
  %v1118 = vxor.u32 %v1117, 2147483648
  %v1119 = vmul.f32 %v1118, 1.442695
  %v1120 = vpow.pop %v1119
  %v1121 = vadd.f32 %v1120, 1.0
  %v1122 = vrcp.pop %v1121
  %v1123 = vmul.f32 %v1121, %v1122
  %v1124 = vsub.f32 1.0, %v1123
  %v1125 = vmul.f32 %v1122, %v1124
  %v1126 = vadd.f32 %v1122, %v1125
  %vm1127 = vweird.f32 %v1121
  %vm1128 = vweird.f32 %v1122
  %vm1129 = vmor %vm1127, %vm1128
  %v1130 = vsel %vm1129, %v1122, %v1126
  %v1131 = vand.u32 2147483647, %v1121
  %vm1132 = vcmp.eq.f32.partialorder %v1131, 8.507059e+37
  %v1133 = vand.u32 %v1121, 2147483648
  %v1134 = vor.u32 1.1754944e-38, %v1133
  %v1135 = vsel %vm1132, %v1134, %v1130
  %v1136 = vmul.f32 1.0, %v1135
  %v1137 = vadd.f32 %v1061, %v1101
  %v1138 = vxor.u32 %v1137, 2147483648
  %v1139 = vmul.f32 %v1138, 1.442695
  %v1140 = vpow.pop %v1139
  %v1141 = vadd.f32 %v1140, 1.0
  %v1142 = vrcp.pop %v1141
  %v1143 = vmul.f32 %v1141, %v1142
  %v1144 = vsub.f32 1.0, %v1143
  %v1145 = vmul.f32 %v1142, %v1144
  %v1146 = vadd.f32 %v1142, %v1145
  %vm1147 = vweird.f32 %v1141
  %vm1148 = vweird.f32 %v1142
  %vm1149 = vmor %vm1147, %vm1148
  %v1150 = vsel %vm1149, %v1142, %v1146
  %v1151 = vand.u32 2147483647, %v1141
  %vm1152 = vcmp.eq.f32.partialorder %v1151, 8.507059e+37
  %v1153 = vand.u32 %v1141, 2147483648
  %v1154 = vor.u32 1.1754944e-38, %v1153
  %v1155 = vsel %vm1152, %v1154, %v1150
  %v1156 = vmul.f32 1.0, %v1155
  %v1157 = vadd.f32 %v1114, %v103
  %v1158 = vmul.f32 %v1136, %v1157
  %v1159 = vadd.f32 %v1074, %v1158
  %v1160 = vtanh.pop %v1159
  %v1161 = vsub.f32 1.0, %v1156
  %v1162 = vmul.f32 %v1161, %v1160
  %v1163 = vmul.f32 %v1156, %v1035
  %v1164 = vadd.f32 %v1162, %v1163
  %s1165 = sadd.s32 %s490, 5
  %p1166 = scmp.lt.s32.totalorder %s1165, 8
  %s1167 = scalar_select %p1166, 1, 0
  %v1168 = vstv %s1167
  %vm1169 = vcmp.eq.s32.totalorder %v1168, 1
  %v1170 = vsel %vm1169, %v1164, %v1035
  %s1171 = scalar_lea.vmem %s0, 24
  %v1172 = vld [vmem:[%s1171] sm:$0xf]
  %1173 = vmatpush.bf16.msra.mxu0 %v208
  %1174 = vmatpush.bf16.msra.mxu0 %v205
  %1175 = vmatpush.bf16.msra.mxu0 %v202
  %1176 = vmatpush.bf16.msra.mxu0 %v199
  %1177 = vmatpush.bf16.msra.mxu0 %v196
  %1178 = vmatpush.bf16.msra.mxu0 %v193
  %1179 = vmatpush.bf16.msra.mxu0 %v190
  %1180 = vmatpush.bf16.msra.mxu0 %v187
  %1181 = vmatmul.bf16.gmra.mxu0 %v1172
  %v1182 = vpop.f32.mrf.mxu0
  %v1183 = vadd.f32 %v95, %v1182
  %v1184 = vpop.f32.mrf.mxu0
  %1185 = vdwg.mxu0
  %1186 = vmatpush.bf16.msra.mxu0 %v209
  %1187 = vmatpush.bf16.msra.mxu0 %v206
  %1188 = vmatpush.bf16.msra.mxu0 %v203
  %1189 = vmatpush.bf16.msra.mxu0 %v200
  %1190 = vmatpush.bf16.msra.mxu0 %v197
  %1191 = vmatpush.bf16.msra.mxu0 %v194
  %1192 = vmatpush.bf16.msra.mxu0 %v191
  %1193 = vmatpush.bf16.msra.mxu0 %v188
  %1194 = vmatmul.bf16.gmra.mxu0 %v1172
  %v1195 = vpop.f32.mrf.mxu0
  %v1196 = vadd.f32 %v96, %v1195
  %v1197 = vpop.f32.mrf.mxu0
  %1198 = vdwg.mxu0
  %1199 = vmatpush.bf16.msra.mxu0 %v210
  %1200 = vmatpush.bf16.msra.mxu0 %v207
  %1201 = vmatpush.bf16.msra.mxu0 %v204
  %1202 = vmatpush.bf16.msra.mxu0 %v201
  %1203 = vmatpush.bf16.msra.mxu0 %v198
  %1204 = vmatpush.bf16.msra.mxu0 %v195
  %1205 = vmatpush.bf16.msra.mxu0 %v192
  %1206 = vmatpush.bf16.msra.mxu0 %v189
  %1207 = vmatmul.bf16.gmra.mxu0 %v1172
  %v1208 = vpop.f32.mrf.mxu0
  %v1209 = vadd.f32 %v97, %v1208
  %v1210 = vpop.f32.mrf.mxu0
  %1211 = vdwg.mxu0
  %v1212 = vpack.c.bf16 %v1170, %v1170
  %1213 = vmatpush.bf16.msra.mxu0 %v376
  %1214 = vmatpush.bf16.msra.mxu0 %v373
  %1215 = vmatpush.bf16.msra.mxu0 %v370
  %1216 = vmatpush.bf16.msra.mxu0 %v367
  %1217 = vmatpush.bf16.msra.mxu0 %v364
  %1218 = vmatpush.bf16.msra.mxu0 %v361
  %1219 = vmatpush.bf16.msra.mxu0 %v358
  %1220 = vmatpush.bf16.msra.mxu0 %v355
  %1221 = vmatmul.bf16.gmra.mxu0 %v1212
  %v1222 = vpop.f32.mrf.mxu0
  %v1223 = vadd.f32 0.0, %v1222
  %v1224 = vpop.f32.mrf.mxu0
  %1225 = vdwg.mxu0
  %1226 = vmatpush.bf16.msra.mxu0 %v377
  %1227 = vmatpush.bf16.msra.mxu0 %v374
  %1228 = vmatpush.bf16.msra.mxu0 %v371
  %1229 = vmatpush.bf16.msra.mxu0 %v368
  %1230 = vmatpush.bf16.msra.mxu0 %v365
  %1231 = vmatpush.bf16.msra.mxu0 %v362
  %1232 = vmatpush.bf16.msra.mxu0 %v359
  %1233 = vmatpush.bf16.msra.mxu0 %v356
  %1234 = vmatmul.bf16.gmra.mxu0 %v1212
  %v1235 = vpop.f32.mrf.mxu0
  %v1236 = vadd.f32 0.0, %v1235
  %v1237 = vpop.f32.mrf.mxu0
  %1238 = vdwg.mxu0
  %1239 = vmatpush.bf16.msra.mxu0 %v378
  %1240 = vmatpush.bf16.msra.mxu0 %v375
  %1241 = vmatpush.bf16.msra.mxu0 %v372
  %1242 = vmatpush.bf16.msra.mxu0 %v369
  %1243 = vmatpush.bf16.msra.mxu0 %v366
  %1244 = vmatpush.bf16.msra.mxu0 %v363
  %1245 = vmatpush.bf16.msra.mxu0 %v360
  %1246 = vmatpush.bf16.msra.mxu0 %v357
  %1247 = vmatmul.bf16.gmra.mxu0 %v1212
  %v1248 = vpop.f32.mrf.mxu0
  %v1249 = vadd.f32 0.0, %v1248
  %v1250 = vpop.f32.mrf.mxu0
  %1251 = vdwg.mxu0
  %v1252 = vadd.f32 %v1183, %v1223
  %v1253 = vxor.u32 %v1252, 2147483648
  %v1254 = vmul.f32 %v1253, 1.442695
  %v1255 = vpow.pop %v1254
  %v1256 = vadd.f32 %v1255, 1.0
  %v1257 = vrcp.pop %v1256
  %v1258 = vmul.f32 %v1256, %v1257
  %v1259 = vsub.f32 1.0, %v1258
  %v1260 = vmul.f32 %v1257, %v1259
  %v1261 = vadd.f32 %v1257, %v1260
  %vm1262 = vweird.f32 %v1256
  %vm1263 = vweird.f32 %v1257
  %vm1264 = vmor %vm1262, %vm1263
  %v1265 = vsel %vm1264, %v1257, %v1261
  %v1266 = vand.u32 2147483647, %v1256
  %vm1267 = vcmp.eq.f32.partialorder %v1266, 8.507059e+37
  %v1268 = vand.u32 %v1256, 2147483648
  %v1269 = vor.u32 1.1754944e-38, %v1268
  %v1270 = vsel %vm1267, %v1269, %v1265
  %v1271 = vmul.f32 1.0, %v1270
  %v1272 = vadd.f32 %v1196, %v1236
  %v1273 = vxor.u32 %v1272, 2147483648
  %v1274 = vmul.f32 %v1273, 1.442695
  %v1275 = vpow.pop %v1274
  %v1276 = vadd.f32 %v1275, 1.0
  %v1277 = vrcp.pop %v1276
  %v1278 = vmul.f32 %v1276, %v1277
  %v1279 = vsub.f32 1.0, %v1278
  %v1280 = vmul.f32 %v1277, %v1279
  %v1281 = vadd.f32 %v1277, %v1280
  %vm1282 = vweird.f32 %v1276
  %vm1283 = vweird.f32 %v1277
  %vm1284 = vmor %vm1282, %vm1283
  %v1285 = vsel %vm1284, %v1277, %v1281
  %v1286 = vand.u32 2147483647, %v1276
  %vm1287 = vcmp.eq.f32.partialorder %v1286, 8.507059e+37
  %v1288 = vand.u32 %v1276, 2147483648
  %v1289 = vor.u32 1.1754944e-38, %v1288
  %v1290 = vsel %vm1287, %v1289, %v1285
  %v1291 = vmul.f32 1.0, %v1290
  %v1292 = vadd.f32 %v1249, %v103
  %v1293 = vmul.f32 %v1271, %v1292
  %v1294 = vadd.f32 %v1209, %v1293
  %v1295 = vtanh.pop %v1294
  %v1296 = vsub.f32 1.0, %v1291
  %v1297 = vmul.f32 %v1296, %v1295
  %v1298 = vmul.f32 %v1291, %v1170
  %v1299 = vadd.f32 %v1297, %v1298
  %s1300 = sadd.s32 %s490, 6
  %p1301 = scmp.lt.s32.totalorder %s1300, 8
  %s1302 = scalar_select %p1301, 1, 0
  %v1303 = vstv %s1302
  %vm1304 = vcmp.eq.s32.totalorder %v1303, 1
  %v1305 = vsel %vm1304, %v1299, %v1170
  %s1306 = scalar_lea.vmem %s0, 28
  %v1307 = vld [vmem:[%s1306] sm:$0xf]
  %1308 = vmatpush.bf16.msra.mxu0 %v208
  %1309 = vmatpush.bf16.msra.mxu0 %v205
  %1310 = vmatpush.bf16.msra.mxu0 %v202
  %1311 = vmatpush.bf16.msra.mxu0 %v199
  %1312 = vmatpush.bf16.msra.mxu0 %v196
  %1313 = vmatpush.bf16.msra.mxu0 %v193
  %1314 = vmatpush.bf16.msra.mxu0 %v190
  %1315 = vmatpush.bf16.msra.mxu0 %v187
  %1316 = vmatmul.bf16.gmra.mxu0 %v1307
  %v1317 = vpop.f32.mrf.mxu0
  %v1318 = vadd.f32 %v95, %v1317
  %v1319 = vpop.f32.mrf.mxu0
  %1320 = vdwg.mxu0
  %1321 = vmatpush.bf16.msra.mxu0 %v209
  %1322 = vmatpush.bf16.msra.mxu0 %v206
  %1323 = vmatpush.bf16.msra.mxu0 %v203
  %1324 = vmatpush.bf16.msra.mxu0 %v200
  %1325 = vmatpush.bf16.msra.mxu0 %v197
  %1326 = vmatpush.bf16.msra.mxu0 %v194
  %1327 = vmatpush.bf16.msra.mxu0 %v191
  %1328 = vmatpush.bf16.msra.mxu0 %v188
  %1329 = vmatmul.bf16.gmra.mxu0 %v1307
  %v1330 = vpop.f32.mrf.mxu0
  %v1331 = vadd.f32 %v96, %v1330
  %v1332 = vpop.f32.mrf.mxu0
  %1333 = vdwg.mxu0
  %1334 = vmatpush.bf16.msra.mxu0 %v210
  %1335 = vmatpush.bf16.msra.mxu0 %v207
  %1336 = vmatpush.bf16.msra.mxu0 %v204
  %1337 = vmatpush.bf16.msra.mxu0 %v201
  %1338 = vmatpush.bf16.msra.mxu0 %v198
  %1339 = vmatpush.bf16.msra.mxu0 %v195
  %1340 = vmatpush.bf16.msra.mxu0 %v192
  %1341 = vmatpush.bf16.msra.mxu0 %v189
  %1342 = vmatmul.bf16.gmra.mxu0 %v1307
  %v1343 = vpop.f32.mrf.mxu0
  %v1344 = vadd.f32 %v97, %v1343
  %v1345 = vpop.f32.mrf.mxu0
  %1346 = vdwg.mxu0
  %v1347 = vpack.c.bf16 %v1305, %v1305
  %1348 = vmatpush.bf16.msra.mxu0 %v376
  %1349 = vmatpush.bf16.msra.mxu0 %v373
  %1350 = vmatpush.bf16.msra.mxu0 %v370
  %1351 = vmatpush.bf16.msra.mxu0 %v367
  %1352 = vmatpush.bf16.msra.mxu0 %v364
  %1353 = vmatpush.bf16.msra.mxu0 %v361
  %1354 = vmatpush.bf16.msra.mxu0 %v358
  %1355 = vmatpush.bf16.msra.mxu0 %v355
  %1356 = vmatmul.bf16.gmra.mxu0 %v1347
  %v1357 = vpop.f32.mrf.mxu0
  %v1358 = vadd.f32 0.0, %v1357
  %v1359 = vpop.f32.mrf.mxu0
  %1360 = vdwg.mxu0
  %1361 = vmatpush.bf16.msra.mxu0 %v377
  %1362 = vmatpush.bf16.msra.mxu0 %v374
  %1363 = vmatpush.bf16.msra.mxu0 %v371
  %1364 = vmatpush.bf16.msra.mxu0 %v368
  %1365 = vmatpush.bf16.msra.mxu0 %v365
  %1366 = vmatpush.bf16.msra.mxu0 %v362
  %1367 = vmatpush.bf16.msra.mxu0 %v359
  %1368 = vmatpush.bf16.msra.mxu0 %v356
  %1369 = vmatmul.bf16.gmra.mxu0 %v1347
  %v1370 = vpop.f32.mrf.mxu0
  %v1371 = vadd.f32 0.0, %v1370
  %v1372 = vpop.f32.mrf.mxu0
  %1373 = vdwg.mxu0
  %1374 = vmatpush.bf16.msra.mxu0 %v378
  %1375 = vmatpush.bf16.msra.mxu0 %v375
  %1376 = vmatpush.bf16.msra.mxu0 %v372
  %1377 = vmatpush.bf16.msra.mxu0 %v369
  %1378 = vmatpush.bf16.msra.mxu0 %v366
  %1379 = vmatpush.bf16.msra.mxu0 %v363
  %1380 = vmatpush.bf16.msra.mxu0 %v360
  %1381 = vmatpush.bf16.msra.mxu0 %v357
  %1382 = vmatmul.bf16.gmra.mxu0 %v1347
  %v1383 = vpop.f32.mrf.mxu0
  %v1384 = vadd.f32 0.0, %v1383
  %v1385 = vpop.f32.mrf.mxu0
  %1386 = vdwg.mxu0
  %v1387 = vadd.f32 %v1318, %v1358
  %v1388 = vxor.u32 %v1387, 2147483648
  %v1389 = vmul.f32 %v1388, 1.442695
  %v1390 = vpow.pop %v1389
  %v1391 = vadd.f32 %v1390, 1.0
  %v1392 = vrcp.pop %v1391
  %v1393 = vmul.f32 %v1391, %v1392
  %v1394 = vsub.f32 1.0, %v1393
  %v1395 = vmul.f32 %v1392, %v1394
  %v1396 = vadd.f32 %v1392, %v1395
  %vm1397 = vweird.f32 %v1391
  %vm1398 = vweird.f32 %v1392
  %vm1399 = vmor %vm1397, %vm1398
  %v1400 = vsel %vm1399, %v1392, %v1396
  %v1401 = vand.u32 2147483647, %v1391
  %vm1402 = vcmp.eq.f32.partialorder %v1401, 8.507059e+37
  %v1403 = vand.u32 %v1391, 2147483648
  %v1404 = vor.u32 1.1754944e-38, %v1403
  %v1405 = vsel %vm1402, %v1404, %v1400
  %v1406 = vmul.f32 1.0, %v1405
  %v1407 = vadd.f32 %v1331, %v1371
  %v1408 = vxor.u32 %v1407, 2147483648
  %v1409 = vmul.f32 %v1408, 1.442695
  %v1410 = vpow.pop %v1409
  %v1411 = vadd.f32 %v1410, 1.0
  %v1412 = vrcp.pop %v1411
  %v1413 = vmul.f32 %v1411, %v1412
  %v1414 = vsub.f32 1.0, %v1413
  %v1415 = vmul.f32 %v1412, %v1414
  %v1416 = vadd.f32 %v1412, %v1415
  %vm1417 = vweird.f32 %v1411
  %vm1418 = vweird.f32 %v1412
  %vm1419 = vmor %vm1417, %vm1418
  %v1420 = vsel %vm1419, %v1412, %v1416
  %v1421 = vand.u32 2147483647, %v1411
  %vm1422 = vcmp.eq.f32.partialorder %v1421, 8.507059e+37
  %v1423 = vand.u32 %v1411, 2147483648
  %v1424 = vor.u32 1.1754944e-38, %v1423
  %v1425 = vsel %vm1422, %v1424, %v1420
  %v1426 = vmul.f32 1.0, %v1425
  %v1427 = vadd.f32 %v1384, %v103
  %v1428 = vmul.f32 %v1406, %v1427
  %v1429 = vadd.f32 %v1344, %v1428
  %v1430 = vtanh.pop %v1429
  %v1431 = vsub.f32 1.0, %v1426
  %v1432 = vmul.f32 %v1431, %v1430
  %v1433 = vmul.f32 %v1426, %v1305
  %v1434 = vadd.f32 %v1432, %v1433
  %s1435 = sadd.s32 %s490, 7
  %p1436 = scmp.lt.s32.totalorder %s1435, 8
  %s1437 = scalar_select %p1436, 1, 0
  %v1438 = vstv %s1437
  %vm1439 = vcmp.eq.s32.totalorder %v1438, 1
  %v1440 = vsel %vm1439, %v1434, %v1305
  %1441 = vst [vmem:[%s6] sm:$0xff] %v1440
  // Predicated region
  $region30: #{seq2seq_forward.3} parent=0 // pred_check
    _
  $region31: #{seq2seq_forward.3} parent=0 // pred_check_branch
    %1443 = sbr.rel (0) target = $region33
  $region32: #{seq2seq_forward.3} parent=0 // pred_region
    _
  $region33: #{seq2seq_forward.3} parent=0 // pred_fallthru
    _
  // Predicated region
  $region34: #{seq2seq_forward.3} parent=0 // pred_check
    _
  $region35: #{seq2seq_forward.3} parent=0 // pred_check_branch
    %1445 = sbr.rel (0) target = $region37
  $region36: #{seq2seq_forward.3} parent=0 // pred_region
    _
  $region37: #{seq2seq_forward.3} parent=0 // pred_fallthru
    _

// kernel: seq2seq_forward.4
$region0: #{seq2seq_forward.4}
  #allocation0 [shape = 'u32[]', space=smem, size = 0x4, offset = 0x4, fixed_abs, tag = 'smem constant byte address 0x4 - core index']
  #allocation1 [shape = 'u32[72,128]{1,0:T(1,128)}', space=vmem, size = 0x9000, scoped, tag = 'internal scratch']
  %s0 = inlined_call_operand.vmem [shape: bf16[8,8,128], index: 0, kind: input, shape index: {}]
  %s1 = inlined_call_operand.vmem [shape: f32[8,128], index: 1, kind: input, shape index: {}]
  %s2 = inlined_call_operand.vmem [shape: bf16[128,384], index: 2, kind: input, shape index: {}]
  %s3 = inlined_call_operand.vmem [shape: bf16[128,384], index: 3, kind: input, shape index: {}]
  %s4 = inlined_call_operand.vmem [shape: f32[1,384], index: 4, kind: input, shape index: {}]
  %s5 = inlined_call_operand.vmem [shape: f32[1,128], index: 5, kind: input, shape index: {}]
  %s6 = inlined_call_operand.vmem [shape: bf16[8,8,128], index: 6, kind: output, shape index: {0}]
  %s7 = inlined_call_operand.vmem [shape: f32[8,128], index: 7, kind: output, shape index: {1}]
  %8 = xla_tuple %s6, %s7
  %s9 = sld [smem:[#allocation0]]
  $region46: #{seq2seq_forward.4} parent=0
    _
  %s11 = ssub.s32 1, %s9
  %s12 = scalar_select 0, %s11, %s9
  // Predicated region
  $region2: #{seq2seq_forward.4} parent=0 // pred_check
    _
  $region3: #{seq2seq_forward.4} parent=0 // pred_check_branch
    %14 = sbr.rel (0) target = $region5
  $region4: #{seq2seq_forward.4} parent=0 // pred_region
    _
  $region5: #{seq2seq_forward.4} parent=0 // pred_fallthru
    _
  // Predicated region
  $region6: #{seq2seq_forward.4} parent=0 // pred_check
    _
  $region7: #{seq2seq_forward.4} parent=0 // pred_check_branch
    %16 = sbr.rel (0) target = $region9
  $region8: #{seq2seq_forward.4} parent=0 // pred_region
    _
  $region9: #{seq2seq_forward.4} parent=0 // pred_fallthru
    _
  // Predicated region
  $region10: #{seq2seq_forward.4} parent=0 // pred_check
    _
  $region11: #{seq2seq_forward.4} parent=0 // pred_check_branch
    %18 = sbr.rel (0) target = $region13
  $region12: #{seq2seq_forward.4} parent=0 // pred_region
    _
  $region13: #{seq2seq_forward.4} parent=0 // pred_fallthru
    _
  // Predicated region
  $region14: #{seq2seq_forward.4} parent=0 // pred_check
    _
  $region15: #{seq2seq_forward.4} parent=0 // pred_check_branch
    %20 = sbr.rel (0) target = $region17
  $region16: #{seq2seq_forward.4} parent=0 // pred_region
    _
  $region17: #{seq2seq_forward.4} parent=0 // pred_fallthru
    _
  // Predicated region
  $region18: #{seq2seq_forward.4} parent=0 // pred_check
    _
  $region19: #{seq2seq_forward.4} parent=0 // pred_check_branch
    %22 = sbr.rel (0) target = $region21
  $region20: #{seq2seq_forward.4} parent=0 // pred_region
    _
  $region21: #{seq2seq_forward.4} parent=0 // pred_fallthru
    _
  // Predicated region
  $region22: #{seq2seq_forward.4} parent=0 // pred_check
    _
  $region23: #{seq2seq_forward.4} parent=0 // pred_check_branch
    %24 = sbr.rel (0) target = $region25
  $region24: #{seq2seq_forward.4} parent=0 // pred_region
    _
  $region25: #{seq2seq_forward.4} parent=0 // pred_fallthru
    _
  %p25 = scmp.eq.s32.totalorder 0, 0
  // Predicated region
  $region26: #{seq2seq_forward.4} parent=0 // pred_check
    %p26 = pneg %p25
  $region27: #{seq2seq_forward.4} parent=0 // pred_check_branch
    %28 = sbr.rel (%p26) target = $region29
  $region28: #{seq2seq_forward.4} parent=0 // pred_region
    %v29 = vld [vmem:[%s1] sm:$0xff]
    %30 = vst [vmem:[%s7] sm:$0xff] %v29
  $region29: #{seq2seq_forward.4} parent=0 // pred_fallthru
    _
  %v31 = vld [vmem:[%s2] sm:$0xff]
  %v32 = vld [vmem:[%s2 + $0x8] sm:$0xf]
  %v33 = vld [vmem:[%s2 + $0xc] sm:$0xff]
  %v34 = vld [vmem:[%s2 + $0x14] sm:$0xf]
  %v35 = vld [vmem:[%s2 + $0x18] sm:$0xff]
  %v36 = vld [vmem:[%s2 + $0x20] sm:$0xf]
  %v37 = vld [vmem:[%s2 + $0x24] sm:$0xff]
  %v38 = vld [vmem:[%s2 + $0x2c] sm:$0xf]
  %v39 = vld [vmem:[%s2 + $0x30] sm:$0xff]
  %v40 = vld [vmem:[%s2 + $0x38] sm:$0xf]
  %v41 = vld [vmem:[%s2 + $0x3c] sm:$0xff]
  %v42 = vld [vmem:[%s2 + $0x44] sm:$0xf]
  %v43 = vld [vmem:[%s2 + $0x48] sm:$0xff]
  %v44 = vld [vmem:[%s2 + $0x50] sm:$0xf]
  %v45 = vld [vmem:[%s2 + $0x54] sm:$0xff]
  %v46 = vld [vmem:[%s2 + $0x5c] sm:$0xf]
  %v47 = vld [vmem:[%s2 + $0x60] sm:$0xff]
  %v48 = vld [vmem:[%s2 + $0x68] sm:$0xf]
  %v49 = vld [vmem:[%s2 + $0x6c] sm:$0xff]
  %v50 = vld [vmem:[%s2 + $0x74] sm:$0xf]
  %v51 = vld [vmem:[%s2 + $0x78] sm:$0xff]
  %v52 = vld [vmem:[%s2 + $0x80] sm:$0xf]
  %v53 = vld [vmem:[%s2 + $0x84] sm:$0xff]
  %v54 = vld [vmem:[%s2 + $0x8c] sm:$0xf]
  %v55 = vld [vmem:[%s2 + $0x90] sm:$0xff]
  %v56 = vld [vmem:[%s2 + $0x98] sm:$0xf]
  %v57 = vld [vmem:[%s2 + $0x9c] sm:$0xff]
  %v58 = vld [vmem:[%s2 + $0xa4] sm:$0xf]
  %v59 = vld [vmem:[%s2 + $0xa8] sm:$0xff]
  %v60 = vld [vmem:[%s2 + $0xb0] sm:$0xf]
  %v61 = vld [vmem:[%s2 + $0xb4] sm:$0xff]
  %v62 = vld [vmem:[%s2 + $0xbc] sm:$0xf]
  %v63 = vld [vmem:[%s3] sm:$0xff]
  %v64 = vld [vmem:[%s3 + $0x8] sm:$0xf]
  %v65 = vld [vmem:[%s3 + $0xc] sm:$0xff]
  %v66 = vld [vmem:[%s3 + $0x14] sm:$0xf]
  %v67 = vld [vmem:[%s3 + $0x18] sm:$0xff]
  %v68 = vld [vmem:[%s3 + $0x20] sm:$0xf]
  %v69 = vld [vmem:[%s3 + $0x24] sm:$0xff]
  %v70 = vld [vmem:[%s3 + $0x2c] sm:$0xf]
  %v71 = vld [vmem:[%s3 + $0x30] sm:$0xff]
  %v72 = vld [vmem:[%s3 + $0x38] sm:$0xf]
  %v73 = vld [vmem:[%s3 + $0x3c] sm:$0xff]
  %v74 = vld [vmem:[%s3 + $0x44] sm:$0xf]
  %v75 = vld [vmem:[%s3 + $0x48] sm:$0xff]
  %v76 = vld [vmem:[%s3 + $0x50] sm:$0xf]
  %v77 = vld [vmem:[%s3 + $0x54] sm:$0xff]
  %v78 = vld [vmem:[%s3 + $0x5c] sm:$0xf]
  %v79 = vld [vmem:[%s3 + $0x60] sm:$0xff]
  %v80 = vld [vmem:[%s3 + $0x68] sm:$0xf]
  %v81 = vld [vmem:[%s3 + $0x6c] sm:$0xff]
  %v82 = vld [vmem:[%s3 + $0x74] sm:$0xf]
  %v83 = vld [vmem:[%s3 + $0x78] sm:$0xff]
  %v84 = vld [vmem:[%s3 + $0x80] sm:$0xf]
  %v85 = vld [vmem:[%s3 + $0x84] sm:$0xff]
  %v86 = vld [vmem:[%s3 + $0x8c] sm:$0xf]
  %v87 = vld [vmem:[%s3 + $0x90] sm:$0xff]
  %v88 = vld [vmem:[%s3 + $0x98] sm:$0xf]
  %v89 = vld [vmem:[%s3 + $0x9c] sm:$0xff]
  %v90 = vld [vmem:[%s3 + $0xa4] sm:$0xf]
  %v91 = vld [vmem:[%s3 + $0xa8] sm:$0xff]
  %v92 = vld [vmem:[%s3 + $0xb0] sm:$0xf]
  %v93 = vld [vmem:[%s3 + $0xb4] sm:$0xff]
  %v94 = vld [vmem:[%s3 + $0xbc] sm:$0xf]
  %v95 = vld [vmem:[%s4] sm:$0x7]
  %v97 = vperm.slane %v95, 0
  %v98 = vperm.slane %v95, 1
  %v99 = vperm.slane %v95, 2
  %v103 = vld [vmem:[%s5] sm:$0x1]
  %v105 = vperm.slane %v103, 0
  %v107 = vld [vmem:[%s7] sm:$0xff]
  %v108 = vld [vmem:[%s0] sm:$0xf]
  %v141 = vunpack.c.l.b16 %v31
  %v142 = vunpack.c.h.b16 %v31
  %v143 = vunpack.c.l.b16 %v32
  %v144 = vunpack.c.l.b16 %v33
  %v145 = vunpack.c.h.b16 %v33
  %v146 = vunpack.c.l.b16 %v34
  %v147 = vunpack.c.l.b16 %v35
  %v148 = vunpack.c.h.b16 %v35
  %v149 = vunpack.c.l.b16 %v36
  %v150 = vunpack.c.l.b16 %v37
  %v151 = vunpack.c.h.b16 %v37
  %v152 = vunpack.c.l.b16 %v38
  %v153 = vunpack.c.l.b16 %v39
  %v154 = vunpack.c.h.b16 %v39
  %v155 = vunpack.c.l.b16 %v40
  %v156 = vunpack.c.l.b16 %v41
  %v157 = vunpack.c.h.b16 %v41
  %v158 = vunpack.c.l.b16 %v42
  %v159 = vunpack.c.l.b16 %v43
  %v160 = vunpack.c.h.b16 %v43
  %v161 = vunpack.c.l.b16 %v44
  %v162 = vunpack.c.l.b16 %v45
  %v163 = vunpack.c.h.b16 %v45
  %v164 = vunpack.c.l.b16 %v46
  %v165 = vunpack.c.l.b16 %v47
  %v166 = vunpack.c.h.b16 %v47
  %v167 = vunpack.c.l.b16 %v48
  %v168 = vunpack.c.l.b16 %v49
  %v169 = vunpack.c.h.b16 %v49
  %v170 = vunpack.c.l.b16 %v50
  %v171 = vunpack.c.l.b16 %v51
  %v172 = vunpack.c.h.b16 %v51
  %v173 = vunpack.c.l.b16 %v52
  %v174 = vunpack.c.l.b16 %v53
  %v175 = vunpack.c.h.b16 %v53
  %v176 = vunpack.c.l.b16 %v54
  %v177 = vunpack.c.l.b16 %v55
  %v178 = vunpack.c.h.b16 %v55
  %v179 = vunpack.c.l.b16 %v56
  %v180 = vunpack.c.l.b16 %v57
  %v181 = vunpack.c.h.b16 %v57
  %v182 = vunpack.c.l.b16 %v58
  %v183 = vunpack.c.l.b16 %v59
  %v184 = vunpack.c.h.b16 %v59
  %v185 = vunpack.c.l.b16 %v60
  %v186 = vunpack.c.l.b16 %v61
  %v187 = vunpack.c.h.b16 %v61
  %v188 = vunpack.c.l.b16 %v62
  %v189 = vpack.c.b16 %v144, %v141
  %v190 = vpack.c.b16 %v145, %v142
  %v191 = vpack.c.b16 %v146, %v143
  %v192 = vpack.c.b16 %v150, %v147
  %v193 = vpack.c.b16 %v151, %v148
  %v194 = vpack.c.b16 %v152, %v149
  %v195 = vpack.c.b16 %v156, %v153
  %v196 = vpack.c.b16 %v157, %v154
  %v197 = vpack.c.b16 %v158, %v155
  %v198 = vpack.c.b16 %v162, %v159
  %v199 = vpack.c.b16 %v163, %v160
  %v200 = vpack.c.b16 %v164, %v161
  %v201 = vpack.c.b16 %v168, %v165
  %v202 = vpack.c.b16 %v169, %v166
  %v203 = vpack.c.b16 %v170, %v167
  %v204 = vpack.c.b16 %v174, %v171
  %v205 = vpack.c.b16 %v175, %v172
  %v206 = vpack.c.b16 %v176, %v173
  %v207 = vpack.c.b16 %v180, %v177
  %v208 = vpack.c.b16 %v181, %v178
  %v209 = vpack.c.b16 %v182, %v179
  %v210 = vpack.c.b16 %v186, %v183
  %v211 = vpack.c.b16 %v187, %v184
  %v212 = vpack.c.b16 %v188, %v185
  %237 = vmatpush.bf16.msra.mxu0 %v210
  %238 = vmatpush.bf16.msra.mxu0 %v207
  %239 = vmatpush.bf16.msra.mxu0 %v204
  %240 = vmatpush.bf16.msra.mxu0 %v201
  %241 = vmatpush.bf16.msra.mxu0 %v198
  %242 = vmatpush.bf16.msra.mxu0 %v195
  %243 = vmatpush.bf16.msra.mxu0 %v192
  %244 = vmatpush.bf16.msra.mxu0 %v189
  %245 = vmatmul.bf16.gmra.mxu0 %v108
  %v246 = vpop.f32.mrf.mxu0
  %v247 = vadd.f32 %v97, %v246
  %v248 = vpop.f32.mrf.mxu0
  %249 = vdwg.mxu0
  %250 = vmatpush.bf16.msra.mxu0 %v211
  %251 = vmatpush.bf16.msra.mxu0 %v208
  %252 = vmatpush.bf16.msra.mxu0 %v205
  %253 = vmatpush.bf16.msra.mxu0 %v202
  %254 = vmatpush.bf16.msra.mxu0 %v199
  %255 = vmatpush.bf16.msra.mxu0 %v196
  %256 = vmatpush.bf16.msra.mxu0 %v193
  %257 = vmatpush.bf16.msra.mxu0 %v190
  %258 = vmatmul.bf16.gmra.mxu0 %v108
  %v259 = vpop.f32.mrf.mxu0
  %v260 = vadd.f32 %v98, %v259
  %v261 = vpop.f32.mrf.mxu0
  %262 = vdwg.mxu0
  %263 = vmatpush.bf16.msra.mxu0 %v212
  %264 = vmatpush.bf16.msra.mxu0 %v209
  %265 = vmatpush.bf16.msra.mxu0 %v206
  %266 = vmatpush.bf16.msra.mxu0 %v203
  %267 = vmatpush.bf16.msra.mxu0 %v200
  %268 = vmatpush.bf16.msra.mxu0 %v197
  %269 = vmatpush.bf16.msra.mxu0 %v194
  %270 = vmatpush.bf16.msra.mxu0 %v191
  %271 = vmatmul.bf16.gmra.mxu0 %v108
  %v272 = vpop.f32.mrf.mxu0
  %v273 = vadd.f32 %v99, %v272
  %v274 = vpop.f32.mrf.mxu0
  %275 = vdwg.mxu0
  %v276 = vpack.c.bf16 %v107, %v107
  %v309 = vunpack.c.l.b16 %v63
  %v310 = vunpack.c.h.b16 %v63
  %v311 = vunpack.c.l.b16 %v64
  %v312 = vunpack.c.l.b16 %v65
  %v313 = vunpack.c.h.b16 %v65
  %v314 = vunpack.c.l.b16 %v66
  %v315 = vunpack.c.l.b16 %v67
  %v316 = vunpack.c.h.b16 %v67
  %v317 = vunpack.c.l.b16 %v68
  %v318 = vunpack.c.l.b16 %v69
  %v319 = vunpack.c.h.b16 %v69
  %v320 = vunpack.c.l.b16 %v70
  %v321 = vunpack.c.l.b16 %v71
  %v322 = vunpack.c.h.b16 %v71
  %v323 = vunpack.c.l.b16 %v72
  %v324 = vunpack.c.l.b16 %v73
  %v325 = vunpack.c.h.b16 %v73
  %v326 = vunpack.c.l.b16 %v74
  %v327 = vunpack.c.l.b16 %v75
  %v328 = vunpack.c.h.b16 %v75
  %v329 = vunpack.c.l.b16 %v76
  %v330 = vunpack.c.l.b16 %v77
  %v331 = vunpack.c.h.b16 %v77
  %v332 = vunpack.c.l.b16 %v78
  %v333 = vunpack.c.l.b16 %v79
  %v334 = vunpack.c.h.b16 %v79
  %v335 = vunpack.c.l.b16 %v80
  %v336 = vunpack.c.l.b16 %v81
  %v337 = vunpack.c.h.b16 %v81
  %v338 = vunpack.c.l.b16 %v82
  %v339 = vunpack.c.l.b16 %v83
  %v340 = vunpack.c.h.b16 %v83
  %v341 = vunpack.c.l.b16 %v84
  %v342 = vunpack.c.l.b16 %v85
  %v343 = vunpack.c.h.b16 %v85
  %v344 = vunpack.c.l.b16 %v86
  %v345 = vunpack.c.l.b16 %v87
  %v346 = vunpack.c.h.b16 %v87
  %v347 = vunpack.c.l.b16 %v88
  %v348 = vunpack.c.l.b16 %v89
  %v349 = vunpack.c.h.b16 %v89
  %v350 = vunpack.c.l.b16 %v90
  %v351 = vunpack.c.l.b16 %v91
  %v352 = vunpack.c.h.b16 %v91
  %v353 = vunpack.c.l.b16 %v92
  %v354 = vunpack.c.l.b16 %v93
  %v355 = vunpack.c.h.b16 %v93
  %v356 = vunpack.c.l.b16 %v94
  %v357 = vpack.c.b16 %v312, %v309
  %v358 = vpack.c.b16 %v313, %v310
  %v359 = vpack.c.b16 %v314, %v311
  %v360 = vpack.c.b16 %v318, %v315
  %v361 = vpack.c.b16 %v319, %v316
  %v362 = vpack.c.b16 %v320, %v317
  %v363 = vpack.c.b16 %v324, %v321
  %v364 = vpack.c.b16 %v325, %v322
  %v365 = vpack.c.b16 %v326, %v323
  %v366 = vpack.c.b16 %v330, %v327
  %v367 = vpack.c.b16 %v331, %v328
  %v368 = vpack.c.b16 %v332, %v329
  %v369 = vpack.c.b16 %v336, %v333
  %v370 = vpack.c.b16 %v337, %v334
  %v371 = vpack.c.b16 %v338, %v335
  %v372 = vpack.c.b16 %v342, %v339
  %v373 = vpack.c.b16 %v343, %v340
  %v374 = vpack.c.b16 %v344, %v341
  %v375 = vpack.c.b16 %v348, %v345
  %v376 = vpack.c.b16 %v349, %v346
  %v377 = vpack.c.b16 %v350, %v347
  %v378 = vpack.c.b16 %v354, %v351
  %v379 = vpack.c.b16 %v355, %v352
  %v380 = vpack.c.b16 %v356, %v353
  %405 = vmatpush.bf16.msra.mxu0 %v378
  %406 = vmatpush.bf16.msra.mxu0 %v375
  %407 = vmatpush.bf16.msra.mxu0 %v372
  %408 = vmatpush.bf16.msra.mxu0 %v369
  %409 = vmatpush.bf16.msra.mxu0 %v366
  %410 = vmatpush.bf16.msra.mxu0 %v363
  %411 = vmatpush.bf16.msra.mxu0 %v360
  %412 = vmatpush.bf16.msra.mxu0 %v357
  %413 = vmatmul.bf16.gmra.mxu0 %v276
  %v414 = vpop.f32.mrf.mxu0
  %v415 = vadd.f32 0.0, %v414
  %v416 = vpop.f32.mrf.mxu0
  %417 = vdwg.mxu0
  %418 = vmatpush.bf16.msra.mxu0 %v379
  %419 = vmatpush.bf16.msra.mxu0 %v376
  %420 = vmatpush.bf16.msra.mxu0 %v373
  %421 = vmatpush.bf16.msra.mxu0 %v370
  %422 = vmatpush.bf16.msra.mxu0 %v367
  %423 = vmatpush.bf16.msra.mxu0 %v364
  %424 = vmatpush.bf16.msra.mxu0 %v361
  %425 = vmatpush.bf16.msra.mxu0 %v358
  %426 = vmatmul.bf16.gmra.mxu0 %v276
  %v427 = vpop.f32.mrf.mxu0
  %v428 = vadd.f32 0.0, %v427
  %v429 = vpop.f32.mrf.mxu0
  %430 = vdwg.mxu0
  %431 = vmatpush.bf16.msra.mxu0 %v380
  %432 = vmatpush.bf16.msra.mxu0 %v377
  %433 = vmatpush.bf16.msra.mxu0 %v374
  %434 = vmatpush.bf16.msra.mxu0 %v371
  %435 = vmatpush.bf16.msra.mxu0 %v368
  %436 = vmatpush.bf16.msra.mxu0 %v365
  %437 = vmatpush.bf16.msra.mxu0 %v362
  %438 = vmatpush.bf16.msra.mxu0 %v359
  %439 = vmatmul.bf16.gmra.mxu0 %v276
  %v440 = vpop.f32.mrf.mxu0
  %v441 = vadd.f32 0.0, %v440
  %v442 = vpop.f32.mrf.mxu0
  %443 = vdwg.mxu0
  %v444 = vadd.f32 %v247, %v415
  %v445 = vxor.u32 %v444, 2147483648
  %v446 = vmul.f32 %v445, 1.442695
  %v447 = vpow.pop %v446
  %v448 = vadd.f32 %v447, 1.0
  %v449 = vrcp.pop %v448
  %v450 = vmul.f32 %v448, %v449
  %v451 = vsub.f32 1.0, %v450
  %v452 = vmul.f32 %v449, %v451
  %v453 = vadd.f32 %v449, %v452
  %vm454 = vweird.f32 %v448
  %vm455 = vweird.f32 %v449
  %vm456 = vmor %vm454, %vm455
  %v457 = vsel %vm456, %v449, %v453
  %v458 = vand.u32 2147483647, %v448
  %vm459 = vcmp.eq.f32.partialorder %v458, 8.507059e+37
  %v460 = vand.u32 %v448, 2147483648
  %v461 = vor.u32 1.1754944e-38, %v460
  %v462 = vsel %vm459, %v461, %v457
  %v463 = vmul.f32 1.0, %v462
  %v464 = vadd.f32 %v260, %v428
  %v465 = vxor.u32 %v464, 2147483648
  %v466 = vmul.f32 %v465, 1.442695
  %v467 = vpow.pop %v466
  %v468 = vadd.f32 %v467, 1.0
  %v469 = vrcp.pop %v468
  %v470 = vmul.f32 %v468, %v469
  %v471 = vsub.f32 1.0, %v470
  %v472 = vmul.f32 %v469, %v471
  %v473 = vadd.f32 %v469, %v472
  %vm474 = vweird.f32 %v468
  %vm475 = vweird.f32 %v469
  %vm476 = vmor %vm474, %vm475
  %v477 = vsel %vm476, %v469, %v473
  %v478 = vand.u32 2147483647, %v468
  %vm479 = vcmp.eq.f32.partialorder %v478, 8.507059e+37
  %v480 = vand.u32 %v468, 2147483648
  %v481 = vor.u32 1.1754944e-38, %v480
  %v482 = vsel %vm479, %v481, %v477
  %v483 = vmul.f32 1.0, %v482
  %v484 = vadd.f32 %v441, %v105
  %v485 = vmul.f32 %v463, %v484
  %v486 = vadd.f32 %v273, %v485
  %v487 = vtanh.pop %v486
  %v488 = vsub.f32 1.0, %v483
  %v489 = vmul.f32 %v488, %v487
  %v490 = vmul.f32 %v483, %v107
  %v491 = vadd.f32 %v489, %v490
  %v492 = vpack.c.bf16 %v491, %v491
  %493 = vst [vmem:[%s6] sm:$0xf] %v492
  %s494 = smul.u32 0, 8
  %p495 = scmp.lt.s32.totalorder %s494, 8
  %s496 = scalar_select %p495, 1, 0
  %v497 = vstv %s496
  %vm498 = vcmp.eq.s32.totalorder %v497, 1
  %v499 = vsel %vm498, %v491, %v107
  %s500 = scalar_lea.vmem %s0, 4
  %v501 = vld [vmem:[%s500] sm:$0xf]
  %502 = vmatpush.bf16.msra.mxu0 %v210
  %503 = vmatpush.bf16.msra.mxu0 %v207
  %504 = vmatpush.bf16.msra.mxu0 %v204
  %505 = vmatpush.bf16.msra.mxu0 %v201
  %506 = vmatpush.bf16.msra.mxu0 %v198
  %507 = vmatpush.bf16.msra.mxu0 %v195
  %508 = vmatpush.bf16.msra.mxu0 %v192
  %509 = vmatpush.bf16.msra.mxu0 %v189
  %510 = vmatmul.bf16.gmra.mxu0 %v501
  %v511 = vpop.f32.mrf.mxu0
  %v512 = vadd.f32 %v97, %v511
  %v513 = vpop.f32.mrf.mxu0
  %514 = vdwg.mxu0
  %515 = vmatpush.bf16.msra.mxu0 %v211
  %516 = vmatpush.bf16.msra.mxu0 %v208
  %517 = vmatpush.bf16.msra.mxu0 %v205
  %518 = vmatpush.bf16.msra.mxu0 %v202
  %519 = vmatpush.bf16.msra.mxu0 %v199
  %520 = vmatpush.bf16.msra.mxu0 %v196
  %521 = vmatpush.bf16.msra.mxu0 %v193
  %522 = vmatpush.bf16.msra.mxu0 %v190
  %523 = vmatmul.bf16.gmra.mxu0 %v501
  %v524 = vpop.f32.mrf.mxu0
  %v525 = vadd.f32 %v98, %v524
  %v526 = vpop.f32.mrf.mxu0
  %527 = vdwg.mxu0
  %528 = vmatpush.bf16.msra.mxu0 %v212
  %529 = vmatpush.bf16.msra.mxu0 %v209
  %530 = vmatpush.bf16.msra.mxu0 %v206
  %531 = vmatpush.bf16.msra.mxu0 %v203
  %532 = vmatpush.bf16.msra.mxu0 %v200
  %533 = vmatpush.bf16.msra.mxu0 %v197
  %534 = vmatpush.bf16.msra.mxu0 %v194
  %535 = vmatpush.bf16.msra.mxu0 %v191
  %536 = vmatmul.bf16.gmra.mxu0 %v501
  %v537 = vpop.f32.mrf.mxu0
  %v538 = vadd.f32 %v99, %v537
  %v539 = vpop.f32.mrf.mxu0
  %540 = vdwg.mxu0
  %v541 = vpack.c.bf16 %v499, %v499
  %542 = vmatpush.bf16.msra.mxu0 %v378
  %543 = vmatpush.bf16.msra.mxu0 %v375
  %544 = vmatpush.bf16.msra.mxu0 %v372
  %545 = vmatpush.bf16.msra.mxu0 %v369
  %546 = vmatpush.bf16.msra.mxu0 %v366
  %547 = vmatpush.bf16.msra.mxu0 %v363
  %548 = vmatpush.bf16.msra.mxu0 %v360
  %549 = vmatpush.bf16.msra.mxu0 %v357
  %550 = vmatmul.bf16.gmra.mxu0 %v541
  %v551 = vpop.f32.mrf.mxu0
  %v552 = vadd.f32 0.0, %v551
  %v553 = vpop.f32.mrf.mxu0
  %554 = vdwg.mxu0
  %555 = vmatpush.bf16.msra.mxu0 %v379
  %556 = vmatpush.bf16.msra.mxu0 %v376
  %557 = vmatpush.bf16.msra.mxu0 %v373
  %558 = vmatpush.bf16.msra.mxu0 %v370
  %559 = vmatpush.bf16.msra.mxu0 %v367
  %560 = vmatpush.bf16.msra.mxu0 %v364
  %561 = vmatpush.bf16.msra.mxu0 %v361
  %562 = vmatpush.bf16.msra.mxu0 %v358
  %563 = vmatmul.bf16.gmra.mxu0 %v541
  %v564 = vpop.f32.mrf.mxu0
  %v565 = vadd.f32 0.0, %v564
  %v566 = vpop.f32.mrf.mxu0
  %567 = vdwg.mxu0
  %568 = vmatpush.bf16.msra.mxu0 %v380
  %569 = vmatpush.bf16.msra.mxu0 %v377
  %570 = vmatpush.bf16.msra.mxu0 %v374
  %571 = vmatpush.bf16.msra.mxu0 %v371
  %572 = vmatpush.bf16.msra.mxu0 %v368
  %573 = vmatpush.bf16.msra.mxu0 %v365
  %574 = vmatpush.bf16.msra.mxu0 %v362
  %575 = vmatpush.bf16.msra.mxu0 %v359
  %576 = vmatmul.bf16.gmra.mxu0 %v541
  %v577 = vpop.f32.mrf.mxu0
  %v578 = vadd.f32 0.0, %v577
  %v579 = vpop.f32.mrf.mxu0
  %580 = vdwg.mxu0
  %v581 = vadd.f32 %v512, %v552
  %v582 = vxor.u32 %v581, 2147483648
  %v583 = vmul.f32 %v582, 1.442695
  %v584 = vpow.pop %v583
  %v585 = vadd.f32 %v584, 1.0
  %v586 = vrcp.pop %v585
  %v587 = vmul.f32 %v585, %v586
  %v588 = vsub.f32 1.0, %v587
  %v589 = vmul.f32 %v586, %v588
  %v590 = vadd.f32 %v586, %v589
  %vm591 = vweird.f32 %v585
  %vm592 = vweird.f32 %v586
  %vm593 = vmor %vm591, %vm592
  %v594 = vsel %vm593, %v586, %v590
  %v595 = vand.u32 2147483647, %v585
  %vm596 = vcmp.eq.f32.partialorder %v595, 8.507059e+37
  %v597 = vand.u32 %v585, 2147483648
  %v598 = vor.u32 1.1754944e-38, %v597
  %v599 = vsel %vm596, %v598, %v594
  %v600 = vmul.f32 1.0, %v599
  %v601 = vadd.f32 %v525, %v565
  %v602 = vxor.u32 %v601, 2147483648
  %v603 = vmul.f32 %v602, 1.442695
  %v604 = vpow.pop %v603
  %v605 = vadd.f32 %v604, 1.0
  %v606 = vrcp.pop %v605
  %v607 = vmul.f32 %v605, %v606
  %v608 = vsub.f32 1.0, %v607
  %v609 = vmul.f32 %v606, %v608
  %v610 = vadd.f32 %v606, %v609
  %vm611 = vweird.f32 %v605
  %vm612 = vweird.f32 %v606
  %vm613 = vmor %vm611, %vm612
  %v614 = vsel %vm613, %v606, %v610
  %v615 = vand.u32 2147483647, %v605
  %vm616 = vcmp.eq.f32.partialorder %v615, 8.507059e+37
  %v617 = vand.u32 %v605, 2147483648
  %v618 = vor.u32 1.1754944e-38, %v617
  %v619 = vsel %vm616, %v618, %v614
  %v620 = vmul.f32 1.0, %v619
  %v621 = vadd.f32 %v578, %v105
  %v622 = vmul.f32 %v600, %v621
  %v623 = vadd.f32 %v538, %v622
  %v624 = vtanh.pop %v623
  %v625 = vsub.f32 1.0, %v620
  %v626 = vmul.f32 %v625, %v624
  %v627 = vmul.f32 %v620, %v499
  %v628 = vadd.f32 %v626, %v627
  %v629 = vpack.c.bf16 %v628, %v628
  %s630 = scalar_lea.vmem %s6, 4
  %631 = vst [vmem:[%s630] sm:$0xf] %v629
  %s632 = sadd.s32 %s494, 1
  %p633 = scmp.lt.s32.totalorder %s632, 8
  %s634 = scalar_select %p633, 1, 0
  %v635 = vstv %s634
  %vm636 = vcmp.eq.s32.totalorder %v635, 1
  %v637 = vsel %vm636, %v628, %v499
  %s638 = scalar_lea.vmem %s0, 8
  %v639 = vld [vmem:[%s638] sm:$0xf]
  %640 = vmatpush.bf16.msra.mxu0 %v210
  %641 = vmatpush.bf16.msra.mxu0 %v207
  %642 = vmatpush.bf16.msra.mxu0 %v204
  %643 = vmatpush.bf16.msra.mxu0 %v201
  %644 = vmatpush.bf16.msra.mxu0 %v198
  %645 = vmatpush.bf16.msra.mxu0 %v195
  %646 = vmatpush.bf16.msra.mxu0 %v192
  %647 = vmatpush.bf16.msra.mxu0 %v189
  %648 = vmatmul.bf16.gmra.mxu0 %v639
  %v649 = vpop.f32.mrf.mxu0
  %v650 = vadd.f32 %v97, %v649
  %v651 = vpop.f32.mrf.mxu0
  %652 = vdwg.mxu0
  %653 = vmatpush.bf16.msra.mxu0 %v211
  %654 = vmatpush.bf16.msra.mxu0 %v208
  %655 = vmatpush.bf16.msra.mxu0 %v205
  %656 = vmatpush.bf16.msra.mxu0 %v202
  %657 = vmatpush.bf16.msra.mxu0 %v199
  %658 = vmatpush.bf16.msra.mxu0 %v196
  %659 = vmatpush.bf16.msra.mxu0 %v193
  %660 = vmatpush.bf16.msra.mxu0 %v190
  %661 = vmatmul.bf16.gmra.mxu0 %v639
  %v662 = vpop.f32.mrf.mxu0
  %v663 = vadd.f32 %v98, %v662
  %v664 = vpop.f32.mrf.mxu0
  %665 = vdwg.mxu0
  %666 = vmatpush.bf16.msra.mxu0 %v212
  %667 = vmatpush.bf16.msra.mxu0 %v209
  %668 = vmatpush.bf16.msra.mxu0 %v206
  %669 = vmatpush.bf16.msra.mxu0 %v203
  %670 = vmatpush.bf16.msra.mxu0 %v200
  %671 = vmatpush.bf16.msra.mxu0 %v197
  %672 = vmatpush.bf16.msra.mxu0 %v194
  %673 = vmatpush.bf16.msra.mxu0 %v191
  %674 = vmatmul.bf16.gmra.mxu0 %v639
  %v675 = vpop.f32.mrf.mxu0
  %v676 = vadd.f32 %v99, %v675
  %v677 = vpop.f32.mrf.mxu0
  %678 = vdwg.mxu0
  %v679 = vpack.c.bf16 %v637, %v637
  %680 = vmatpush.bf16.msra.mxu0 %v378
  %681 = vmatpush.bf16.msra.mxu0 %v375
  %682 = vmatpush.bf16.msra.mxu0 %v372
  %683 = vmatpush.bf16.msra.mxu0 %v369
  %684 = vmatpush.bf16.msra.mxu0 %v366
  %685 = vmatpush.bf16.msra.mxu0 %v363
  %686 = vmatpush.bf16.msra.mxu0 %v360
  %687 = vmatpush.bf16.msra.mxu0 %v357
  %688 = vmatmul.bf16.gmra.mxu0 %v679
  %v689 = vpop.f32.mrf.mxu0
  %v690 = vadd.f32 0.0, %v689
  %v691 = vpop.f32.mrf.mxu0
  %692 = vdwg.mxu0
  %693 = vmatpush.bf16.msra.mxu0 %v379
  %694 = vmatpush.bf16.msra.mxu0 %v376
  %695 = vmatpush.bf16.msra.mxu0 %v373
  %696 = vmatpush.bf16.msra.mxu0 %v370
  %697 = vmatpush.bf16.msra.mxu0 %v367
  %698 = vmatpush.bf16.msra.mxu0 %v364
  %699 = vmatpush.bf16.msra.mxu0 %v361
  %700 = vmatpush.bf16.msra.mxu0 %v358
  %701 = vmatmul.bf16.gmra.mxu0 %v679
  %v702 = vpop.f32.mrf.mxu0
  %v703 = vadd.f32 0.0, %v702
  %v704 = vpop.f32.mrf.mxu0
  %705 = vdwg.mxu0
  %706 = vmatpush.bf16.msra.mxu0 %v380
  %707 = vmatpush.bf16.msra.mxu0 %v377
  %708 = vmatpush.bf16.msra.mxu0 %v374
  %709 = vmatpush.bf16.msra.mxu0 %v371
  %710 = vmatpush.bf16.msra.mxu0 %v368
  %711 = vmatpush.bf16.msra.mxu0 %v365
  %712 = vmatpush.bf16.msra.mxu0 %v362
  %713 = vmatpush.bf16.msra.mxu0 %v359
  %714 = vmatmul.bf16.gmra.mxu0 %v679
  %v715 = vpop.f32.mrf.mxu0
  %v716 = vadd.f32 0.0, %v715
  %v717 = vpop.f32.mrf.mxu0
  %718 = vdwg.mxu0
  %v719 = vadd.f32 %v650, %v690
  %v720 = vxor.u32 %v719, 2147483648
  %v721 = vmul.f32 %v720, 1.442695
  %v722 = vpow.pop %v721
  %v723 = vadd.f32 %v722, 1.0
  %v724 = vrcp.pop %v723
  %v725 = vmul.f32 %v723, %v724
  %v726 = vsub.f32 1.0, %v725
  %v727 = vmul.f32 %v724, %v726
  %v728 = vadd.f32 %v724, %v727
  %vm729 = vweird.f32 %v723
  %vm730 = vweird.f32 %v724
  %vm731 = vmor %vm729, %vm730
  %v732 = vsel %vm731, %v724, %v728
  %v733 = vand.u32 2147483647, %v723
  %vm734 = vcmp.eq.f32.partialorder %v733, 8.507059e+37
  %v735 = vand.u32 %v723, 2147483648
  %v736 = vor.u32 1.1754944e-38, %v735
  %v737 = vsel %vm734, %v736, %v732
  %v738 = vmul.f32 1.0, %v737
  %v739 = vadd.f32 %v663, %v703
  %v740 = vxor.u32 %v739, 2147483648
  %v741 = vmul.f32 %v740, 1.442695
  %v742 = vpow.pop %v741
  %v743 = vadd.f32 %v742, 1.0
  %v744 = vrcp.pop %v743
  %v745 = vmul.f32 %v743, %v744
  %v746 = vsub.f32 1.0, %v745
  %v747 = vmul.f32 %v744, %v746
  %v748 = vadd.f32 %v744, %v747
  %vm749 = vweird.f32 %v743
  %vm750 = vweird.f32 %v744
  %vm751 = vmor %vm749, %vm750
  %v752 = vsel %vm751, %v744, %v748
  %v753 = vand.u32 2147483647, %v743
  %vm754 = vcmp.eq.f32.partialorder %v753, 8.507059e+37
  %v755 = vand.u32 %v743, 2147483648
  %v756 = vor.u32 1.1754944e-38, %v755
  %v757 = vsel %vm754, %v756, %v752
  %v758 = vmul.f32 1.0, %v757
  %v759 = vadd.f32 %v716, %v105
  %v760 = vmul.f32 %v738, %v759
  %v761 = vadd.f32 %v676, %v760
  %v762 = vtanh.pop %v761
  %v763 = vsub.f32 1.0, %v758
  %v764 = vmul.f32 %v763, %v762
  %v765 = vmul.f32 %v758, %v637
  %v766 = vadd.f32 %v764, %v765
  %v767 = vpack.c.bf16 %v766, %v766
  %s768 = scalar_lea.vmem %s6, 8
  %769 = vst [vmem:[%s768] sm:$0xf] %v767
  %s770 = sadd.s32 %s494, 2
  %p771 = scmp.lt.s32.totalorder %s770, 8
  %s772 = scalar_select %p771, 1, 0
  %v773 = vstv %s772
  %vm774 = vcmp.eq.s32.totalorder %v773, 1
  %v775 = vsel %vm774, %v766, %v637
  %s776 = scalar_lea.vmem %s0, 12
  %v777 = vld [vmem:[%s776] sm:$0xf]
  %778 = vmatpush.bf16.msra.mxu0 %v210
  %779 = vmatpush.bf16.msra.mxu0 %v207
  %780 = vmatpush.bf16.msra.mxu0 %v204
  %781 = vmatpush.bf16.msra.mxu0 %v201
  %782 = vmatpush.bf16.msra.mxu0 %v198
  %783 = vmatpush.bf16.msra.mxu0 %v195
  %784 = vmatpush.bf16.msra.mxu0 %v192
  %785 = vmatpush.bf16.msra.mxu0 %v189
  %786 = vmatmul.bf16.gmra.mxu0 %v777
  %v787 = vpop.f32.mrf.mxu0
  %v788 = vadd.f32 %v97, %v787
  %v789 = vpop.f32.mrf.mxu0
  %790 = vdwg.mxu0
  %791 = vmatpush.bf16.msra.mxu0 %v211
  %792 = vmatpush.bf16.msra.mxu0 %v208
  %793 = vmatpush.bf16.msra.mxu0 %v205
  %794 = vmatpush.bf16.msra.mxu0 %v202
  %795 = vmatpush.bf16.msra.mxu0 %v199
  %796 = vmatpush.bf16.msra.mxu0 %v196
  %797 = vmatpush.bf16.msra.mxu0 %v193
  %798 = vmatpush.bf16.msra.mxu0 %v190
  %799 = vmatmul.bf16.gmra.mxu0 %v777
  %v800 = vpop.f32.mrf.mxu0
  %v801 = vadd.f32 %v98, %v800
  %v802 = vpop.f32.mrf.mxu0
  %803 = vdwg.mxu0
  %804 = vmatpush.bf16.msra.mxu0 %v212
  %805 = vmatpush.bf16.msra.mxu0 %v209
  %806 = vmatpush.bf16.msra.mxu0 %v206
  %807 = vmatpush.bf16.msra.mxu0 %v203
  %808 = vmatpush.bf16.msra.mxu0 %v200
  %809 = vmatpush.bf16.msra.mxu0 %v197
  %810 = vmatpush.bf16.msra.mxu0 %v194
  %811 = vmatpush.bf16.msra.mxu0 %v191
  %812 = vmatmul.bf16.gmra.mxu0 %v777
  %v813 = vpop.f32.mrf.mxu0
  %v814 = vadd.f32 %v99, %v813
  %v815 = vpop.f32.mrf.mxu0
  %816 = vdwg.mxu0
  %v817 = vpack.c.bf16 %v775, %v775
  %818 = vmatpush.bf16.msra.mxu0 %v378
  %819 = vmatpush.bf16.msra.mxu0 %v375
  %820 = vmatpush.bf16.msra.mxu0 %v372
  %821 = vmatpush.bf16.msra.mxu0 %v369
  %822 = vmatpush.bf16.msra.mxu0 %v366
  %823 = vmatpush.bf16.msra.mxu0 %v363
  %824 = vmatpush.bf16.msra.mxu0 %v360
  %825 = vmatpush.bf16.msra.mxu0 %v357
  %826 = vmatmul.bf16.gmra.mxu0 %v817
  %v827 = vpop.f32.mrf.mxu0
  %v828 = vadd.f32 0.0, %v827
  %v829 = vpop.f32.mrf.mxu0
  %830 = vdwg.mxu0
  %831 = vmatpush.bf16.msra.mxu0 %v379
  %832 = vmatpush.bf16.msra.mxu0 %v376
  %833 = vmatpush.bf16.msra.mxu0 %v373
  %834 = vmatpush.bf16.msra.mxu0 %v370
  %835 = vmatpush.bf16.msra.mxu0 %v367
  %836 = vmatpush.bf16.msra.mxu0 %v364
  %837 = vmatpush.bf16.msra.mxu0 %v361
  %838 = vmatpush.bf16.msra.mxu0 %v358
  %839 = vmatmul.bf16.gmra.mxu0 %v817
  %v840 = vpop.f32.mrf.mxu0
  %v841 = vadd.f32 0.0, %v840
  %v842 = vpop.f32.mrf.mxu0
  %843 = vdwg.mxu0
  %844 = vmatpush.bf16.msra.mxu0 %v380
  %845 = vmatpush.bf16.msra.mxu0 %v377
  %846 = vmatpush.bf16.msra.mxu0 %v374
  %847 = vmatpush.bf16.msra.mxu0 %v371
  %848 = vmatpush.bf16.msra.mxu0 %v368
  %849 = vmatpush.bf16.msra.mxu0 %v365
  %850 = vmatpush.bf16.msra.mxu0 %v362
  %851 = vmatpush.bf16.msra.mxu0 %v359
  %852 = vmatmul.bf16.gmra.mxu0 %v817
  %v853 = vpop.f32.mrf.mxu0
  %v854 = vadd.f32 0.0, %v853
  %v855 = vpop.f32.mrf.mxu0
  %856 = vdwg.mxu0
  %v857 = vadd.f32 %v788, %v828
  %v858 = vxor.u32 %v857, 2147483648
  %v859 = vmul.f32 %v858, 1.442695
  %v860 = vpow.pop %v859
  %v861 = vadd.f32 %v860, 1.0
  %v862 = vrcp.pop %v861
  %v863 = vmul.f32 %v861, %v862
  %v864 = vsub.f32 1.0, %v863
  %v865 = vmul.f32 %v862, %v864
  %v866 = vadd.f32 %v862, %v865
  %vm867 = vweird.f32 %v861
  %vm868 = vweird.f32 %v862
  %vm869 = vmor %vm867, %vm868
  %v870 = vsel %vm869, %v862, %v866
  %v871 = vand.u32 2147483647, %v861
  %vm872 = vcmp.eq.f32.partialorder %v871, 8.507059e+37
  %v873 = vand.u32 %v861, 2147483648
  %v874 = vor.u32 1.1754944e-38, %v873
  %v875 = vsel %vm872, %v874, %v870
  %v876 = vmul.f32 1.0, %v875
  %v877 = vadd.f32 %v801, %v841
  %v878 = vxor.u32 %v877, 2147483648
  %v879 = vmul.f32 %v878, 1.442695
  %v880 = vpow.pop %v879
  %v881 = vadd.f32 %v880, 1.0
  %v882 = vrcp.pop %v881
  %v883 = vmul.f32 %v881, %v882
  %v884 = vsub.f32 1.0, %v883
  %v885 = vmul.f32 %v882, %v884
  %v886 = vadd.f32 %v882, %v885
  %vm887 = vweird.f32 %v881
  %vm888 = vweird.f32 %v882
  %vm889 = vmor %vm887, %vm888
  %v890 = vsel %vm889, %v882, %v886
  %v891 = vand.u32 2147483647, %v881
  %vm892 = vcmp.eq.f32.partialorder %v891, 8.507059e+37
  %v893 = vand.u32 %v881, 2147483648
  %v894 = vor.u32 1.1754944e-38, %v893
  %v895 = vsel %vm892, %v894, %v890
  %v896 = vmul.f32 1.0, %v895
  %v897 = vadd.f32 %v854, %v105
  %v898 = vmul.f32 %v876, %v897
  %v899 = vadd.f32 %v814, %v898
  %v900 = vtanh.pop %v899
  %v901 = vsub.f32 1.0, %v896
  %v902 = vmul.f32 %v901, %v900
  %v903 = vmul.f32 %v896, %v775
  %v904 = vadd.f32 %v902, %v903
  %v905 = vpack.c.bf16 %v904, %v904
  %s906 = scalar_lea.vmem %s6, 12
  %907 = vst [vmem:[%s906] sm:$0xf] %v905
  %s908 = sadd.s32 %s494, 3
  %p909 = scmp.lt.s32.totalorder %s908, 8
  %s910 = scalar_select %p909, 1, 0
  %v911 = vstv %s910
  %vm912 = vcmp.eq.s32.totalorder %v911, 1
  %v913 = vsel %vm912, %v904, %v775
  %s914 = scalar_lea.vmem %s0, 16
  %v915 = vld [vmem:[%s914] sm:$0xf]
  %916 = vmatpush.bf16.msra.mxu0 %v210
  %917 = vmatpush.bf16.msra.mxu0 %v207
  %918 = vmatpush.bf16.msra.mxu0 %v204
  %919 = vmatpush.bf16.msra.mxu0 %v201
  %920 = vmatpush.bf16.msra.mxu0 %v198
  %921 = vmatpush.bf16.msra.mxu0 %v195
  %922 = vmatpush.bf16.msra.mxu0 %v192
  %923 = vmatpush.bf16.msra.mxu0 %v189
  %924 = vmatmul.bf16.gmra.mxu0 %v915
  %v925 = vpop.f32.mrf.mxu0
  %v926 = vadd.f32 %v97, %v925
  %v927 = vpop.f32.mrf.mxu0
  %928 = vdwg.mxu0
  %929 = vmatpush.bf16.msra.mxu0 %v211
  %930 = vmatpush.bf16.msra.mxu0 %v208
  %931 = vmatpush.bf16.msra.mxu0 %v205
  %932 = vmatpush.bf16.msra.mxu0 %v202
  %933 = vmatpush.bf16.msra.mxu0 %v199
  %934 = vmatpush.bf16.msra.mxu0 %v196
  %935 = vmatpush.bf16.msra.mxu0 %v193
  %936 = vmatpush.bf16.msra.mxu0 %v190
  %937 = vmatmul.bf16.gmra.mxu0 %v915
  %v938 = vpop.f32.mrf.mxu0
  %v939 = vadd.f32 %v98, %v938
  %v940 = vpop.f32.mrf.mxu0
  %941 = vdwg.mxu0
  %942 = vmatpush.bf16.msra.mxu0 %v212
  %943 = vmatpush.bf16.msra.mxu0 %v209
  %944 = vmatpush.bf16.msra.mxu0 %v206
  %945 = vmatpush.bf16.msra.mxu0 %v203
  %946 = vmatpush.bf16.msra.mxu0 %v200
  %947 = vmatpush.bf16.msra.mxu0 %v197
  %948 = vmatpush.bf16.msra.mxu0 %v194
  %949 = vmatpush.bf16.msra.mxu0 %v191
  %950 = vmatmul.bf16.gmra.mxu0 %v915
  %v951 = vpop.f32.mrf.mxu0
  %v952 = vadd.f32 %v99, %v951
  %v953 = vpop.f32.mrf.mxu0
  %954 = vdwg.mxu0
  %v955 = vpack.c.bf16 %v913, %v913
  %956 = vmatpush.bf16.msra.mxu0 %v378
  %957 = vmatpush.bf16.msra.mxu0 %v375
  %958 = vmatpush.bf16.msra.mxu0 %v372
  %959 = vmatpush.bf16.msra.mxu0 %v369
  %960 = vmatpush.bf16.msra.mxu0 %v366
  %961 = vmatpush.bf16.msra.mxu0 %v363
  %962 = vmatpush.bf16.msra.mxu0 %v360
  %963 = vmatpush.bf16.msra.mxu0 %v357
  %964 = vmatmul.bf16.gmra.mxu0 %v955
  %v965 = vpop.f32.mrf.mxu0
  %v966 = vadd.f32 0.0, %v965
  %v967 = vpop.f32.mrf.mxu0
  %968 = vdwg.mxu0
  %969 = vmatpush.bf16.msra.mxu0 %v379
  %970 = vmatpush.bf16.msra.mxu0 %v376
  %971 = vmatpush.bf16.msra.mxu0 %v373
  %972 = vmatpush.bf16.msra.mxu0 %v370
  %973 = vmatpush.bf16.msra.mxu0 %v367
  %974 = vmatpush.bf16.msra.mxu0 %v364
  %975 = vmatpush.bf16.msra.mxu0 %v361
  %976 = vmatpush.bf16.msra.mxu0 %v358
  %977 = vmatmul.bf16.gmra.mxu0 %v955
  %v978 = vpop.f32.mrf.mxu0
  %v979 = vadd.f32 0.0, %v978
  %v980 = vpop.f32.mrf.mxu0
  %981 = vdwg.mxu0
  %982 = vmatpush.bf16.msra.mxu0 %v380
  %983 = vmatpush.bf16.msra.mxu0 %v377
  %984 = vmatpush.bf16.msra.mxu0 %v374
  %985 = vmatpush.bf16.msra.mxu0 %v371
  %986 = vmatpush.bf16.msra.mxu0 %v368
  %987 = vmatpush.bf16.msra.mxu0 %v365
  %988 = vmatpush.bf16.msra.mxu0 %v362
  %989 = vmatpush.bf16.msra.mxu0 %v359
  %990 = vmatmul.bf16.gmra.mxu0 %v955
  %v991 = vpop.f32.mrf.mxu0
  %v992 = vadd.f32 0.0, %v991
  %v993 = vpop.f32.mrf.mxu0
  %994 = vdwg.mxu0
  %v995 = vadd.f32 %v926, %v966
  %v996 = vxor.u32 %v995, 2147483648
  %v997 = vmul.f32 %v996, 1.442695
  %v998 = vpow.pop %v997
  %v999 = vadd.f32 %v998, 1.0
  %v1000 = vrcp.pop %v999
  %v1001 = vmul.f32 %v999, %v1000
  %v1002 = vsub.f32 1.0, %v1001
  %v1003 = vmul.f32 %v1000, %v1002
  %v1004 = vadd.f32 %v1000, %v1003
  %vm1005 = vweird.f32 %v999
  %vm1006 = vweird.f32 %v1000
  %vm1007 = vmor %vm1005, %vm1006
  %v1008 = vsel %vm1007, %v1000, %v1004
  %v1009 = vand.u32 2147483647, %v999
  %vm1010 = vcmp.eq.f32.partialorder %v1009, 8.507059e+37
  %v1011 = vand.u32 %v999, 2147483648
  %v1012 = vor.u32 1.1754944e-38, %v1011
  %v1013 = vsel %vm1010, %v1012, %v1008
  %v1014 = vmul.f32 1.0, %v1013
  %v1015 = vadd.f32 %v939, %v979
  %v1016 = vxor.u32 %v1015, 2147483648
  %v1017 = vmul.f32 %v1016, 1.442695
  %v1018 = vpow.pop %v1017
  %v1019 = vadd.f32 %v1018, 1.0
  %v1020 = vrcp.pop %v1019
  %v1021 = vmul.f32 %v1019, %v1020
  %v1022 = vsub.f32 1.0, %v1021
  %v1023 = vmul.f32 %v1020, %v1022
  %v1024 = vadd.f32 %v1020, %v1023
  %vm1025 = vweird.f32 %v1019
  %vm1026 = vweird.f32 %v1020
  %vm1027 = vmor %vm1025, %vm1026
  %v1028 = vsel %vm1027, %v1020, %v1024
  %v1029 = vand.u32 2147483647, %v1019
  %vm1030 = vcmp.eq.f32.partialorder %v1029, 8.507059e+37
  %v1031 = vand.u32 %v1019, 2147483648
  %v1032 = vor.u32 1.1754944e-38, %v1031
  %v1033 = vsel %vm1030, %v1032, %v1028
  %v1034 = vmul.f32 1.0, %v1033
  %v1035 = vadd.f32 %v992, %v105
  %v1036 = vmul.f32 %v1014, %v1035
  %v1037 = vadd.f32 %v952, %v1036
  %v1038 = vtanh.pop %v1037
  %v1039 = vsub.f32 1.0, %v1034
  %v1040 = vmul.f32 %v1039, %v1038
  %v1041 = vmul.f32 %v1034, %v913
  %v1042 = vadd.f32 %v1040, %v1041
  %v1043 = vpack.c.bf16 %v1042, %v1042
  %s1044 = scalar_lea.vmem %s6, 16
  %1045 = vst [vmem:[%s1044] sm:$0xf] %v1043
  %s1046 = sadd.s32 %s494, 4
  %p1047 = scmp.lt.s32.totalorder %s1046, 8
  %s1048 = scalar_select %p1047, 1, 0
  %v1049 = vstv %s1048
  %vm1050 = vcmp.eq.s32.totalorder %v1049, 1
  %v1051 = vsel %vm1050, %v1042, %v913
  %s1052 = scalar_lea.vmem %s0, 20
  %v1053 = vld [vmem:[%s1052] sm:$0xf]
  %1054 = vmatpush.bf16.msra.mxu0 %v210
  %1055 = vmatpush.bf16.msra.mxu0 %v207
  %1056 = vmatpush.bf16.msra.mxu0 %v204
  %1057 = vmatpush.bf16.msra.mxu0 %v201
  %1058 = vmatpush.bf16.msra.mxu0 %v198
  %1059 = vmatpush.bf16.msra.mxu0 %v195
  %1060 = vmatpush.bf16.msra.mxu0 %v192
  %1061 = vmatpush.bf16.msra.mxu0 %v189
  %1062 = vmatmul.bf16.gmra.mxu0 %v1053
  %v1063 = vpop.f32.mrf.mxu0
  %v1064 = vadd.f32 %v97, %v1063
  %v1065 = vpop.f32.mrf.mxu0
  %1066 = vdwg.mxu0
  %1067 = vmatpush.bf16.msra.mxu0 %v211
  %1068 = vmatpush.bf16.msra.mxu0 %v208
  %1069 = vmatpush.bf16.msra.mxu0 %v205
  %1070 = vmatpush.bf16.msra.mxu0 %v202
  %1071 = vmatpush.bf16.msra.mxu0 %v199
  %1072 = vmatpush.bf16.msra.mxu0 %v196
  %1073 = vmatpush.bf16.msra.mxu0 %v193
  %1074 = vmatpush.bf16.msra.mxu0 %v190
  %1075 = vmatmul.bf16.gmra.mxu0 %v1053
  %v1076 = vpop.f32.mrf.mxu0
  %v1077 = vadd.f32 %v98, %v1076
  %v1078 = vpop.f32.mrf.mxu0
  %1079 = vdwg.mxu0
  %1080 = vmatpush.bf16.msra.mxu0 %v212
  %1081 = vmatpush.bf16.msra.mxu0 %v209
  %1082 = vmatpush.bf16.msra.mxu0 %v206
  %1083 = vmatpush.bf16.msra.mxu0 %v203
  %1084 = vmatpush.bf16.msra.mxu0 %v200
  %1085 = vmatpush.bf16.msra.mxu0 %v197
  %1086 = vmatpush.bf16.msra.mxu0 %v194
  %1087 = vmatpush.bf16.msra.mxu0 %v191
  %1088 = vmatmul.bf16.gmra.mxu0 %v1053
  %v1089 = vpop.f32.mrf.mxu0
  %v1090 = vadd.f32 %v99, %v1089
  %v1091 = vpop.f32.mrf.mxu0
  %1092 = vdwg.mxu0
  %v1093 = vpack.c.bf16 %v1051, %v1051
  %1094 = vmatpush.bf16.msra.mxu0 %v378
  %1095 = vmatpush.bf16.msra.mxu0 %v375
  %1096 = vmatpush.bf16.msra.mxu0 %v372
  %1097 = vmatpush.bf16.msra.mxu0 %v369
  %1098 = vmatpush.bf16.msra.mxu0 %v366
  %1099 = vmatpush.bf16.msra.mxu0 %v363
  %1100 = vmatpush.bf16.msra.mxu0 %v360
  %1101 = vmatpush.bf16.msra.mxu0 %v357
  %1102 = vmatmul.bf16.gmra.mxu0 %v1093
  %v1103 = vpop.f32.mrf.mxu0
  %v1104 = vadd.f32 0.0, %v1103
  %v1105 = vpop.f32.mrf.mxu0
  %1106 = vdwg.mxu0
  %1107 = vmatpush.bf16.msra.mxu0 %v379
  %1108 = vmatpush.bf16.msra.mxu0 %v376
  %1109 = vmatpush.bf16.msra.mxu0 %v373
  %1110 = vmatpush.bf16.msra.mxu0 %v370
  %1111 = vmatpush.bf16.msra.mxu0 %v367
  %1112 = vmatpush.bf16.msra.mxu0 %v364
  %1113 = vmatpush.bf16.msra.mxu0 %v361
  %1114 = vmatpush.bf16.msra.mxu0 %v358
  %1115 = vmatmul.bf16.gmra.mxu0 %v1093
  %v1116 = vpop.f32.mrf.mxu0
  %v1117 = vadd.f32 0.0, %v1116
  %v1118 = vpop.f32.mrf.mxu0
  %1119 = vdwg.mxu0
  %1120 = vmatpush.bf16.msra.mxu0 %v380
  %1121 = vmatpush.bf16.msra.mxu0 %v377
  %1122 = vmatpush.bf16.msra.mxu0 %v374
  %1123 = vmatpush.bf16.msra.mxu0 %v371
  %1124 = vmatpush.bf16.msra.mxu0 %v368
  %1125 = vmatpush.bf16.msra.mxu0 %v365
  %1126 = vmatpush.bf16.msra.mxu0 %v362
  %1127 = vmatpush.bf16.msra.mxu0 %v359
  %1128 = vmatmul.bf16.gmra.mxu0 %v1093
  %v1129 = vpop.f32.mrf.mxu0
  %v1130 = vadd.f32 0.0, %v1129
  %v1131 = vpop.f32.mrf.mxu0
  %1132 = vdwg.mxu0
  %v1133 = vadd.f32 %v1064, %v1104
  %v1134 = vxor.u32 %v1133, 2147483648
  %v1135 = vmul.f32 %v1134, 1.442695
  %v1136 = vpow.pop %v1135
  %v1137 = vadd.f32 %v1136, 1.0
  %v1138 = vrcp.pop %v1137
  %v1139 = vmul.f32 %v1137, %v1138
  %v1140 = vsub.f32 1.0, %v1139
  %v1141 = vmul.f32 %v1138, %v1140
  %v1142 = vadd.f32 %v1138, %v1141
  %vm1143 = vweird.f32 %v1137
  %vm1144 = vweird.f32 %v1138
  %vm1145 = vmor %vm1143, %vm1144
  %v1146 = vsel %vm1145, %v1138, %v1142
  %v1147 = vand.u32 2147483647, %v1137
  %vm1148 = vcmp.eq.f32.partialorder %v1147, 8.507059e+37
  %v1149 = vand.u32 %v1137, 2147483648
  %v1150 = vor.u32 1.1754944e-38, %v1149
  %v1151 = vsel %vm1148, %v1150, %v1146
  %v1152 = vmul.f32 1.0, %v1151
  %v1153 = vadd.f32 %v1077, %v1117
  %v1154 = vxor.u32 %v1153, 2147483648
  %v1155 = vmul.f32 %v1154, 1.442695
  %v1156 = vpow.pop %v1155
  %v1157 = vadd.f32 %v1156, 1.0
  %v1158 = vrcp.pop %v1157
  %v1159 = vmul.f32 %v1157, %v1158
  %v1160 = vsub.f32 1.0, %v1159
  %v1161 = vmul.f32 %v1158, %v1160
  %v1162 = vadd.f32 %v1158, %v1161
  %vm1163 = vweird.f32 %v1157
  %vm1164 = vweird.f32 %v1158
  %vm1165 = vmor %vm1163, %vm1164
  %v1166 = vsel %vm1165, %v1158, %v1162
  %v1167 = vand.u32 2147483647, %v1157
  %vm1168 = vcmp.eq.f32.partialorder %v1167, 8.507059e+37
  %v1169 = vand.u32 %v1157, 2147483648
  %v1170 = vor.u32 1.1754944e-38, %v1169
  %v1171 = vsel %vm1168, %v1170, %v1166
  %v1172 = vmul.f32 1.0, %v1171
  %v1173 = vadd.f32 %v1130, %v105
  %v1174 = vmul.f32 %v1152, %v1173
  %v1175 = vadd.f32 %v1090, %v1174
  %v1176 = vtanh.pop %v1175
  %v1177 = vsub.f32 1.0, %v1172
  %v1178 = vmul.f32 %v1177, %v1176
  %v1179 = vmul.f32 %v1172, %v1051
  %v1180 = vadd.f32 %v1178, %v1179
  %v1181 = vpack.c.bf16 %v1180, %v1180
  %s1182 = scalar_lea.vmem %s6, 20
  %1183 = vst [vmem:[%s1182] sm:$0xf] %v1181
  %s1184 = sadd.s32 %s494, 5
  %p1185 = scmp.lt.s32.totalorder %s1184, 8
  %s1186 = scalar_select %p1185, 1, 0
  %v1187 = vstv %s1186
  %vm1188 = vcmp.eq.s32.totalorder %v1187, 1
  %v1189 = vsel %vm1188, %v1180, %v1051
  %s1190 = scalar_lea.vmem %s0, 24
  %v1191 = vld [vmem:[%s1190] sm:$0xf]
  %1192 = vmatpush.bf16.msra.mxu0 %v210
  %1193 = vmatpush.bf16.msra.mxu0 %v207
  %1194 = vmatpush.bf16.msra.mxu0 %v204
  %1195 = vmatpush.bf16.msra.mxu0 %v201
  %1196 = vmatpush.bf16.msra.mxu0 %v198
  %1197 = vmatpush.bf16.msra.mxu0 %v195
  %1198 = vmatpush.bf16.msra.mxu0 %v192
  %1199 = vmatpush.bf16.msra.mxu0 %v189
  %1200 = vmatmul.bf16.gmra.mxu0 %v1191
  %v1201 = vpop.f32.mrf.mxu0
  %v1202 = vadd.f32 %v97, %v1201
  %v1203 = vpop.f32.mrf.mxu0
  %1204 = vdwg.mxu0
  %1205 = vmatpush.bf16.msra.mxu0 %v211
  %1206 = vmatpush.bf16.msra.mxu0 %v208
  %1207 = vmatpush.bf16.msra.mxu0 %v205
  %1208 = vmatpush.bf16.msra.mxu0 %v202
  %1209 = vmatpush.bf16.msra.mxu0 %v199
  %1210 = vmatpush.bf16.msra.mxu0 %v196
  %1211 = vmatpush.bf16.msra.mxu0 %v193
  %1212 = vmatpush.bf16.msra.mxu0 %v190
  %1213 = vmatmul.bf16.gmra.mxu0 %v1191
  %v1214 = vpop.f32.mrf.mxu0
  %v1215 = vadd.f32 %v98, %v1214
  %v1216 = vpop.f32.mrf.mxu0
  %1217 = vdwg.mxu0
  %1218 = vmatpush.bf16.msra.mxu0 %v212
  %1219 = vmatpush.bf16.msra.mxu0 %v209
  %1220 = vmatpush.bf16.msra.mxu0 %v206
  %1221 = vmatpush.bf16.msra.mxu0 %v203
  %1222 = vmatpush.bf16.msra.mxu0 %v200
  %1223 = vmatpush.bf16.msra.mxu0 %v197
  %1224 = vmatpush.bf16.msra.mxu0 %v194
  %1225 = vmatpush.bf16.msra.mxu0 %v191
  %1226 = vmatmul.bf16.gmra.mxu0 %v1191
  %v1227 = vpop.f32.mrf.mxu0
  %v1228 = vadd.f32 %v99, %v1227
  %v1229 = vpop.f32.mrf.mxu0
  %1230 = vdwg.mxu0
  %v1231 = vpack.c.bf16 %v1189, %v1189
  %1232 = vmatpush.bf16.msra.mxu0 %v378
  %1233 = vmatpush.bf16.msra.mxu0 %v375
  %1234 = vmatpush.bf16.msra.mxu0 %v372
  %1235 = vmatpush.bf16.msra.mxu0 %v369
  %1236 = vmatpush.bf16.msra.mxu0 %v366
  %1237 = vmatpush.bf16.msra.mxu0 %v363
  %1238 = vmatpush.bf16.msra.mxu0 %v360
  %1239 = vmatpush.bf16.msra.mxu0 %v357
  %1240 = vmatmul.bf16.gmra.mxu0 %v1231
  %v1241 = vpop.f32.mrf.mxu0
  %v1242 = vadd.f32 0.0, %v1241
  %v1243 = vpop.f32.mrf.mxu0
  %1244 = vdwg.mxu0
  %1245 = vmatpush.bf16.msra.mxu0 %v379
  %1246 = vmatpush.bf16.msra.mxu0 %v376
  %1247 = vmatpush.bf16.msra.mxu0 %v373
  %1248 = vmatpush.bf16.msra.mxu0 %v370
  %1249 = vmatpush.bf16.msra.mxu0 %v367
  %1250 = vmatpush.bf16.msra.mxu0 %v364
  %1251 = vmatpush.bf16.msra.mxu0 %v361
  %1252 = vmatpush.bf16.msra.mxu0 %v358
  %1253 = vmatmul.bf16.gmra.mxu0 %v1231
  %v1254 = vpop.f32.mrf.mxu0
  %v1255 = vadd.f32 0.0, %v1254
  %v1256 = vpop.f32.mrf.mxu0
  %1257 = vdwg.mxu0
  %1258 = vmatpush.bf16.msra.mxu0 %v380
  %1259 = vmatpush.bf16.msra.mxu0 %v377
  %1260 = vmatpush.bf16.msra.mxu0 %v374
  %1261 = vmatpush.bf16.msra.mxu0 %v371
  %1262 = vmatpush.bf16.msra.mxu0 %v368
  %1263 = vmatpush.bf16.msra.mxu0 %v365
  %1264 = vmatpush.bf16.msra.mxu0 %v362
  %1265 = vmatpush.bf16.msra.mxu0 %v359
  %1266 = vmatmul.bf16.gmra.mxu0 %v1231
  %v1267 = vpop.f32.mrf.mxu0
  %v1268 = vadd.f32 0.0, %v1267
  %v1269 = vpop.f32.mrf.mxu0
  %1270 = vdwg.mxu0
  %v1271 = vadd.f32 %v1202, %v1242
  %v1272 = vxor.u32 %v1271, 2147483648
  %v1273 = vmul.f32 %v1272, 1.442695
  %v1274 = vpow.pop %v1273
  %v1275 = vadd.f32 %v1274, 1.0
  %v1276 = vrcp.pop %v1275
  %v1277 = vmul.f32 %v1275, %v1276
  %v1278 = vsub.f32 1.0, %v1277
  %v1279 = vmul.f32 %v1276, %v1278
  %v1280 = vadd.f32 %v1276, %v1279
  %vm1281 = vweird.f32 %v1275
  %vm1282 = vweird.f32 %v1276
  %vm1283 = vmor %vm1281, %vm1282
  %v1284 = vsel %vm1283, %v1276, %v1280
  %v1285 = vand.u32 2147483647, %v1275
  %vm1286 = vcmp.eq.f32.partialorder %v1285, 8.507059e+37
  %v1287 = vand.u32 %v1275, 2147483648
  %v1288 = vor.u32 1.1754944e-38, %v1287
  %v1289 = vsel %vm1286, %v1288, %v1284
  %v1290 = vmul.f32 1.0, %v1289
  %v1291 = vadd.f32 %v1215, %v1255
  %v1292 = vxor.u32 %v1291, 2147483648
  %v1293 = vmul.f32 %v1292, 1.442695
  %v1294 = vpow.pop %v1293
  %v1295 = vadd.f32 %v1294, 1.0
  %v1296 = vrcp.pop %v1295
  %v1297 = vmul.f32 %v1295, %v1296
  %v1298 = vsub.f32 1.0, %v1297
  %v1299 = vmul.f32 %v1296, %v1298
  %v1300 = vadd.f32 %v1296, %v1299
  %vm1301 = vweird.f32 %v1295
  %vm1302 = vweird.f32 %v1296
  %vm1303 = vmor %vm1301, %vm1302
  %v1304 = vsel %vm1303, %v1296, %v1300
  %v1305 = vand.u32 2147483647, %v1295
  %vm1306 = vcmp.eq.f32.partialorder %v1305, 8.507059e+37
  %v1307 = vand.u32 %v1295, 2147483648
  %v1308 = vor.u32 1.1754944e-38, %v1307
  %v1309 = vsel %vm1306, %v1308, %v1304
  %v1310 = vmul.f32 1.0, %v1309
  %v1311 = vadd.f32 %v1268, %v105
  %v1312 = vmul.f32 %v1290, %v1311
  %v1313 = vadd.f32 %v1228, %v1312
  %v1314 = vtanh.pop %v1313
  %v1315 = vsub.f32 1.0, %v1310
  %v1316 = vmul.f32 %v1315, %v1314
  %v1317 = vmul.f32 %v1310, %v1189
  %v1318 = vadd.f32 %v1316, %v1317
  %v1319 = vpack.c.bf16 %v1318, %v1318
  %s1320 = scalar_lea.vmem %s6, 24
  %1321 = vst [vmem:[%s1320] sm:$0xf] %v1319
  %s1322 = sadd.s32 %s494, 6
  %p1323 = scmp.lt.s32.totalorder %s1322, 8
  %s1324 = scalar_select %p1323, 1, 0
  %v1325 = vstv %s1324
  %vm1326 = vcmp.eq.s32.totalorder %v1325, 1
  %v1327 = vsel %vm1326, %v1318, %v1189
  %s1328 = scalar_lea.vmem %s0, 28
  %v1329 = vld [vmem:[%s1328] sm:$0xf]
  %1330 = vmatpush.bf16.msra.mxu0 %v210
  %1331 = vmatpush.bf16.msra.mxu0 %v207
  %1332 = vmatpush.bf16.msra.mxu0 %v204
  %1333 = vmatpush.bf16.msra.mxu0 %v201
  %1334 = vmatpush.bf16.msra.mxu0 %v198
  %1335 = vmatpush.bf16.msra.mxu0 %v195
  %1336 = vmatpush.bf16.msra.mxu0 %v192
  %1337 = vmatpush.bf16.msra.mxu0 %v189
  %1338 = vmatmul.bf16.gmra.mxu0 %v1329
  %v1339 = vpop.f32.mrf.mxu0
  %v1340 = vadd.f32 %v97, %v1339
  %v1341 = vpop.f32.mrf.mxu0
  %1342 = vdwg.mxu0
  %1343 = vmatpush.bf16.msra.mxu0 %v211
  %1344 = vmatpush.bf16.msra.mxu0 %v208
  %1345 = vmatpush.bf16.msra.mxu0 %v205
  %1346 = vmatpush.bf16.msra.mxu0 %v202
  %1347 = vmatpush.bf16.msra.mxu0 %v199
  %1348 = vmatpush.bf16.msra.mxu0 %v196
  %1349 = vmatpush.bf16.msra.mxu0 %v193
  %1350 = vmatpush.bf16.msra.mxu0 %v190
  %1351 = vmatmul.bf16.gmra.mxu0 %v1329
  %v1352 = vpop.f32.mrf.mxu0
  %v1353 = vadd.f32 %v98, %v1352
  %v1354 = vpop.f32.mrf.mxu0
  %1355 = vdwg.mxu0
  %1356 = vmatpush.bf16.msra.mxu0 %v212
  %1357 = vmatpush.bf16.msra.mxu0 %v209
  %1358 = vmatpush.bf16.msra.mxu0 %v206
  %1359 = vmatpush.bf16.msra.mxu0 %v203
  %1360 = vmatpush.bf16.msra.mxu0 %v200
  %1361 = vmatpush.bf16.msra.mxu0 %v197
  %1362 = vmatpush.bf16.msra.mxu0 %v194
  %1363 = vmatpush.bf16.msra.mxu0 %v191
  %1364 = vmatmul.bf16.gmra.mxu0 %v1329
  %v1365 = vpop.f32.mrf.mxu0
  %v1366 = vadd.f32 %v99, %v1365
  %v1367 = vpop.f32.mrf.mxu0
  %1368 = vdwg.mxu0
  %v1369 = vpack.c.bf16 %v1327, %v1327
  %1370 = vmatpush.bf16.msra.mxu0 %v378
  %1371 = vmatpush.bf16.msra.mxu0 %v375
  %1372 = vmatpush.bf16.msra.mxu0 %v372
  %1373 = vmatpush.bf16.msra.mxu0 %v369
  %1374 = vmatpush.bf16.msra.mxu0 %v366
  %1375 = vmatpush.bf16.msra.mxu0 %v363
  %1376 = vmatpush.bf16.msra.mxu0 %v360
  %1377 = vmatpush.bf16.msra.mxu0 %v357
  %1378 = vmatmul.bf16.gmra.mxu0 %v1369
  %v1379 = vpop.f32.mrf.mxu0
  %v1380 = vadd.f32 0.0, %v1379
  %v1381 = vpop.f32.mrf.mxu0
  %1382 = vdwg.mxu0
  %1383 = vmatpush.bf16.msra.mxu0 %v379
  %1384 = vmatpush.bf16.msra.mxu0 %v376
  %1385 = vmatpush.bf16.msra.mxu0 %v373
  %1386 = vmatpush.bf16.msra.mxu0 %v370
  %1387 = vmatpush.bf16.msra.mxu0 %v367
  %1388 = vmatpush.bf16.msra.mxu0 %v364
  %1389 = vmatpush.bf16.msra.mxu0 %v361
  %1390 = vmatpush.bf16.msra.mxu0 %v358
  %1391 = vmatmul.bf16.gmra.mxu0 %v1369
  %v1392 = vpop.f32.mrf.mxu0
  %v1393 = vadd.f32 0.0, %v1392
  %v1394 = vpop.f32.mrf.mxu0
  %1395 = vdwg.mxu0
  %1396 = vmatpush.bf16.msra.mxu0 %v380
  %1397 = vmatpush.bf16.msra.mxu0 %v377
  %1398 = vmatpush.bf16.msra.mxu0 %v374
  %1399 = vmatpush.bf16.msra.mxu0 %v371
  %1400 = vmatpush.bf16.msra.mxu0 %v368
  %1401 = vmatpush.bf16.msra.mxu0 %v365
  %1402 = vmatpush.bf16.msra.mxu0 %v362
  %1403 = vmatpush.bf16.msra.mxu0 %v359
  %1404 = vmatmul.bf16.gmra.mxu0 %v1369
  %v1405 = vpop.f32.mrf.mxu0
  %v1406 = vadd.f32 0.0, %v1405
  %v1407 = vpop.f32.mrf.mxu0
  %1408 = vdwg.mxu0
  %v1409 = vadd.f32 %v1340, %v1380
  %v1410 = vxor.u32 %v1409, 2147483648
  %v1411 = vmul.f32 %v1410, 1.442695
  %v1412 = vpow.pop %v1411
  %v1413 = vadd.f32 %v1412, 1.0
  %v1414 = vrcp.pop %v1413
  %v1415 = vmul.f32 %v1413, %v1414
  %v1416 = vsub.f32 1.0, %v1415
  %v1417 = vmul.f32 %v1414, %v1416
  %v1418 = vadd.f32 %v1414, %v1417
  %vm1419 = vweird.f32 %v1413
  %vm1420 = vweird.f32 %v1414
  %vm1421 = vmor %vm1419, %vm1420
  %v1422 = vsel %vm1421, %v1414, %v1418
  %v1423 = vand.u32 2147483647, %v1413
  %vm1424 = vcmp.eq.f32.partialorder %v1423, 8.507059e+37
  %v1425 = vand.u32 %v1413, 2147483648
  %v1426 = vor.u32 1.1754944e-38, %v1425
  %v1427 = vsel %vm1424, %v1426, %v1422
  %v1428 = vmul.f32 1.0, %v1427
  %v1429 = vadd.f32 %v1353, %v1393
  %v1430 = vxor.u32 %v1429, 2147483648
  %v1431 = vmul.f32 %v1430, 1.442695
  %v1432 = vpow.pop %v1431
  %v1433 = vadd.f32 %v1432, 1.0
  %v1434 = vrcp.pop %v1433
  %v1435 = vmul.f32 %v1433, %v1434
  %v1436 = vsub.f32 1.0, %v1435
  %v1437 = vmul.f32 %v1434, %v1436
  %v1438 = vadd.f32 %v1434, %v1437
  %vm1439 = vweird.f32 %v1433
  %vm1440 = vweird.f32 %v1434
  %vm1441 = vmor %vm1439, %vm1440
  %v1442 = vsel %vm1441, %v1434, %v1438
  %v1443 = vand.u32 2147483647, %v1433
  %vm1444 = vcmp.eq.f32.partialorder %v1443, 8.507059e+37
  %v1445 = vand.u32 %v1433, 2147483648
  %v1446 = vor.u32 1.1754944e-38, %v1445
  %v1447 = vsel %vm1444, %v1446, %v1442
  %v1448 = vmul.f32 1.0, %v1447
  %v1449 = vadd.f32 %v1406, %v105
  %v1450 = vmul.f32 %v1428, %v1449
  %v1451 = vadd.f32 %v1366, %v1450
  %v1452 = vtanh.pop %v1451
  %v1453 = vsub.f32 1.0, %v1448
  %v1454 = vmul.f32 %v1453, %v1452
  %v1455 = vmul.f32 %v1448, %v1327
  %v1456 = vadd.f32 %v1454, %v1455
  %v1457 = vpack.c.bf16 %v1456, %v1456
  %s1458 = scalar_lea.vmem %s6, 28
  %1459 = vst [vmem:[%s1458] sm:$0xf] %v1457
  %s1460 = sadd.s32 %s494, 7
  %p1461 = scmp.lt.s32.totalorder %s1460, 8
  %s1462 = scalar_select %p1461, 1, 0
  %v1463 = vstv %s1462
  %vm1464 = vcmp.eq.s32.totalorder %v1463, 1
  %v1465 = vsel %vm1464, %v1456, %v1327
  %1466 = vst [vmem:[%s7] sm:$0xff] %v1465
  // Predicated region
  $region30: #{seq2seq_forward.4} parent=0 // pred_check
    _
  $region31: #{seq2seq_forward.4} parent=0 // pred_check_branch
    %1468 = sbr.rel (0) target = $region33
  $region32: #{seq2seq_forward.4} parent=0 // pred_region
    _
  $region33: #{seq2seq_forward.4} parent=0 // pred_fallthru
    _
  // Predicated region
  $region34: #{seq2seq_forward.4} parent=0 // pred_check
    _
  $region35: #{seq2seq_forward.4} parent=0 // pred_check_branch
    %1470 = sbr.rel (0) target = $region37
  $region36: #{seq2seq_forward.4} parent=0 // pred_region
    _
  $region37: #{seq2seq_forward.4} parent=0 // pred_fallthru
    _
  // Predicated region
  $region38: #{seq2seq_forward.4} parent=0 // pred_check
    _
  $region39: #{seq2seq_forward.4} parent=0 // pred_check_branch
    %1472 = sbr.rel (0) target = $region41
  $region40: #{seq2seq_forward.4} parent=0 // pred_region
    _
  $region41: #{seq2seq_forward.4} parent=0 // pred_fallthru
    _
  // Predicated region
  $region42: #{seq2seq_forward.4} parent=0 // pred_check
    _
  $region43: #{seq2seq_forward.4} parent=0 // pred_check_branch
    %1474 = sbr.rel (0) target = $region45
  $region44: #{seq2seq_forward.4} parent=0 // pred_region
    _
  $region45: #{seq2seq_forward.4} parent=0 // pred_fallthru
    _

</llo_original>
